<compile_context>
chip_gen: v5e
topology: v5e:2x2
jax: 0.10.0
libtpu: 0.0.40
codegen_flags: <defaults>
</compile_context>

<pallas_src>
import functools

import jax
import jax.numpy as jnp
from jax.experimental import pallas as pl
from jax.experimental.pallas import tpu as pltpu


def _make_stage1_kernel(N, H, W, K0, P0, K1, P1, dil, n_acc=4):
    """Fused depthwise conv (K0, pad P0) -> depthwise dilated conv (K1, dil, pad P1)."""

    def kernel(x_ref, w0_ref, b0_ref, w1_ref, b1_ref, attn_ref, buf0, buf1):
        c = pl.program_id(0)
        xs = x_ref[...][:, 0]                                   # (N, H, W)

        # Zero the padded scratch buffers every step (borders must stay 0;
        # safe under megacore "parallel" sharding of the channel grid axis).
        buf0[...] = jnp.zeros(buf0.shape, jnp.float32)
        buf1[...] = jnp.zeros(buf1.shape, jnp.float32)

        # ---- depthwise K0 x K0, stride 1, 'same' padding --------------------
        buf0[:, P0:P0 + H, P0:P0 + W] = xs
        acc = [jnp.zeros((N, H, W), jnp.float32) for _ in range(n_acc)]
        t = 0
        for dy in range(K0):
            for dx in range(K0):
                w = w0_ref[c, dy * K0 + dx]                     # SMEM scalar
                acc[t % n_acc] = acc[t % n_acc] + w * buf0[:, dy:dy + H, dx:dx + W]
                t += 1
        y = acc[0]
        for a in acc[1:]:
            y = y + a
        y = y + b0_ref[c]

        # ---- depthwise K1 x K1, dilation `dil`, 'same' padding --------------
        buf1[:, P1:P1 + H, P1:P1 + W] = y
        acc = [jnp.zeros((N, H, W), jnp.float32) for _ in range(n_acc)]
        t = 0
        for dy in range(K1):
            for dx in range(K1):
                w = w1_ref[c, dy * K1 + dx]                     # SMEM scalar
                acc[t % n_acc] = acc[t % n_acc] + w * buf1[:, dil * dy:dil * dy + H,
                                                              dil * dx:dil * dx + W]
                t += 1
        z = acc[0]
        for a in acc[1:]:
            z = z + a
        z = z + b1_ref[c]

        attn_ref[...] = z[:, None]                              # (N, 1, H, W)

    return kernel


def _stage2_kernel(attn_ref, x_ref, wpw_ref, bpw_ref, w1_ref, w2_ref, out_ref):
    """Per-image: 1x1 conv on MXU + squeeze-excite MLP + se * f_x * u gating."""
    u = x_ref[0]                                                # (C, HW)
    at = attn_ref[0]                                            # (C, HW)

    # Squeeze-excite:  se = sigmoid(W2 @ relu(W1 @ mean_hw(x)))
    pooled = jnp.mean(u, axis=-1, keepdims=True)                # (C, 1)
    h = jnp.dot(w1_ref[...], pooled, preferred_element_type=jnp.float32)
    h = jnp.maximum(h, 0.0)                                     # (hid, 1)
    zz = jnp.dot(w2_ref[...], h, preferred_element_type=jnp.float32)
    se = 1.0 / (1.0 + jnp.exp(-zz))                             # (C, 1)

    # Pointwise 1x1 conv on the MXU: (C, C) @ (C, H*W) + bias
    f = jnp.dot(wpw_ref[...], at, preferred_element_type=jnp.float32) + bpw_ref[...]

    out_ref[0] = se * f * u                                     # (C, HW)


@functools.partial(jax.jit, static_argnames=("dilation",))
def temporal_attention(x, w_c0, b_c0, w_cs, b_cs, w_pw, b_pw, w_fc1, w_fc2,
                       *, dilation=3):
    f32 = jnp.float32
    N, C, H, W = x.shape
    K0 = w_c0.shape[-1]
    P0 = (K0 - 1) // 2
    K1 = w_cs.shape[-1]
    P1 = dilation * (K1 - 1) // 2
    HW = H * W
    hid = w_fc1.shape[0]

    x = x.astype(f32)
    w0f = w_c0.reshape(C, K0 * K0).astype(f32)
    w1f = w_cs.reshape(C, K1 * K1).astype(f32)
    wpw = w_pw.reshape(C, C).astype(f32)
    bpw = b_pw.reshape(C, 1).astype(f32)

    # ---- stage 1: fused depthwise convs, grid over channels -----------------
    attn = pl.pallas_call(
        _make_stage1_kernel(N, H, W, K0, P0, K1, P1, dilation),
        out_shape=jax.ShapeDtypeStruct((N, C, H, W), f32),
        grid=(C,),
        in_specs=[
            pl.BlockSpec((N, 1, H, W), lambda c: (0, c, 0, 0)),          # x channel slab
            pl.BlockSpec(memory_space=pltpu.MemorySpace.SMEM),           # conv0 weights
            pl.BlockSpec(memory_space=pltpu.MemorySpace.SMEM),           # conv0 bias
            pl.BlockSpec(memory_space=pltpu.MemorySpace.SMEM),           # conv_spatial weights
            pl.BlockSpec(memory_space=pltpu.MemorySpace.SMEM),           # conv_spatial bias
        ],
        out_specs=pl.BlockSpec((N, 1, H, W), lambda c: (0, c, 0, 0)),
        scratch_shapes=[
            pltpu.VMEM((N, H + 2 * P0, W + 2 * P0), f32),                # padded x
            pltpu.VMEM((N, H + 2 * P1, W + 2 * P1), f32),                # padded conv0 out
        ],
        compiler_params=pltpu.CompilerParams(
            dimension_semantics=("parallel",),
            vmem_limit_bytes=32 * 1024 * 1024,
        ),
    )(x, w0f, b_c0.astype(f32), w1f, b_cs.astype(f32))

    # ---- stage 2: 1x1 conv (MXU) + squeeze-excite + gating, grid over batch --
    attn_f = attn.reshape(N, C, HW)          # free row-major reshapes (no transpose)
    x_f = x.reshape(N, C, HW)

    out_f = pl.pallas_call(
        _stage2_kernel,
        out_shape=jax.ShapeDtypeStruct((N, C, HW), f32),
        grid=(N,),
        in_specs=[
            pl.BlockSpec((1, C, HW), lambda n: (n, 0, 0)),               # attn
            pl.BlockSpec((1, C, HW), lambda n: (n, 0, 0)),               # u = x
            pl.BlockSpec((C, C), lambda n: (0, 0)),                      # conv1 weight
            pl.BlockSpec((C, 1), lambda n: (0, 0)),                      # conv1 bias
            pl.BlockSpec((hid, C), lambda n: (0, 0)),                    # fc1 weight
            pl.BlockSpec((C, hid), lambda n: (0, 0)),                    # fc2 weight
        ],
        out_specs=pl.BlockSpec((1, C, HW), lambda n: (n, 0, 0)),
        compiler_params=pltpu.CompilerParams(
            dimension_semantics=("parallel",),
            vmem_limit_bytes=32 * 1024 * 1024,
        ),
    )(attn_f, x_f, wpw, bpw, w_fc1.astype(f32), w_fc2.astype(f32))

    return out_f.reshape(N, C, H, W)


def _reference(x, w_c0, b_c0, w_cs, b_cs, w_pw, b_pw, w_fc1, w_fc2, dilation):
    """Pure-JAX reference of the PyTorch forward."""
    N, C, H, W = x.shape
    dn = ("NCHW", "OIHW", "NCHW")
    P0 = (w_c0.shape[-1] - 1) // 2
    P1 = dilation * (w_cs.shape[-1] - 1) // 2
    a = jax.lax.conv_general_dilated(x, w_c0, (1, 1), [(P0, P0), (P0, P0)],
                                     dimension_numbers=dn, feature_group_count=C)
    a = a + b_c0.reshape(1, -1, 1, 1)
    a = jax.lax.conv_general_dilated(a, w_cs, (1, 1), [(P1, P1), (P1, P1)],
                                     rhs_dilation=(dilation, dilation),
                                     dimension_numbers=dn, feature_group_count=C)
    a = a + b_cs.reshape(1, -1, 1, 1)
    f = jax.lax.conv_general_dilated(a, w_pw, (1, 1), [(0, 0), (0, 0)],
                                     dimension_numbers=dn)
    f = f + b_pw.reshape(1, -1, 1, 1)
    pooled = jnp.mean(x, axis=(2, 3))                       # (N, C)
    h = jnp.maximum(pooled @ w_fc1.T, 0.0)                  # (N, hid)
    se = jax.nn.sigmoid(h @ w_fc2.T)                        # (N, C)
    return se[:, :, None, None] * f * x


if __name__ == "__main__":
    dim, kernel_size, dilation, reduction = 32, 21, 3, 16
    N, H, W = 2, 16, 16

    d_k = 2 * dilation - 1                                        # conv0 kernel = 5
    dd_k = kernel_size // dilation + (kernel_size // dilation % 2 - 1)   # = 7
    red = max(dim // reduction, 4)
    hid = dim // red                                              # = 8

    key = jax.random.PRNGKey(0)
    ks = jax.random.split(key, 9)
    x = jax.random.normal(ks[0], (N, dim, H, W), jnp.float32)
    w_c0 = 0.2 * jax.random.normal(ks[1], (dim, 1, d_k, d_k), jnp.float32)
    b_c0 = 0.1 * jax.random.normal(ks[2], (dim,), jnp.float32)
    w_cs = 0.1 * jax.random.normal(ks[3], (dim, 1, dd_k, dd_k), jnp.float32)
    b_cs = 0.1 * jax.random.normal(ks[4], (dim,), jnp.float32)
    w_pw = 0.2 * jax.random.normal(ks[5], (dim, dim, 1, 1), jnp.float32)
    b_pw = 0.1 * jax.random.normal(ks[6], (dim,), jnp.float32)
    w_fc1 = 0.3 * jax.random.normal(ks[7], (hid, dim), jnp.float32)
    w_fc2 = 0.3 * jax.random.normal(ks[8], (dim, hid), jnp.float32)

    out = temporal_attention(x, w_c0, b_c0, w_cs, b_cs, w_pw, b_pw,
                             w_fc1, w_fc2, dilation=dilation)
    out = jax.block_until_ready(out)

    ref = _reference(x, w_c0, b_c0, w_cs, b_cs, w_pw, b_pw, w_fc1, w_fc2, dilation)
    err = float(jnp.max(jnp.abs(out - ref)))
    assert out.shape == x.shape and err < 1e-3, f"mismatch vs reference: {err}"
    print("KERNEL_OK")
</pallas_src>

<mosaic_0001>
module attributes {stable_mosaic.version = 11 : i64} {
  func.func @kernel(%arg0: i32, %arg1: memref<2x1x16x16xf32, #tpu.memory_space<vmem>>, %arg2: memref<32x25xf32, #tpu.memory_space<smem>>, %arg3: memref<32xf32, #tpu.memory_space<smem>>, %arg4: memref<32x49xf32, #tpu.memory_space<smem>>, %arg5: memref<32xf32, #tpu.memory_space<smem>>, %arg6: memref<2x1x16x16xf32, #tpu.memory_space<vmem>>, %arg7: memref<2x20x20xf32, #tpu.memory_space<vmem>>, %arg8: memref<2x34x34xf32, #tpu.memory_space<vmem>>) attributes {dimension_semantics = [#tpu.dimension_semantics<parallel>], iteration_bounds = array<i64: 32>, scalar_prefetch = 0 : i64, scratch_operands = 2 : i64, tpu.core_type = #tpu.core_type<tc>, window_params = [{transform_indices = @transform_0, window_bounds = array<i64: 2, 1, 16, 16>}, {transform_indices = @transform_1, window_bounds = array<i64: 32, 25>}, {transform_indices = @transform_2, window_bounds = array<i64: 32>}, {transform_indices = @transform_3, window_bounds = array<i64: 32, 49>}, {transform_indices = @transform_4, window_bounds = array<i64: 32>}, {transform_indices = @transform_5, window_bounds = array<i64: 2, 1, 16, 16>}]} {
    %c0 = arith.constant 0 : index
    %c0_0 = arith.constant 0 : index
    %c0_1 = arith.constant 0 : index
    %c0_2 = arith.constant 0 : index
    %0 = vector.load %arg1[%c0, %c0_0, %c0_1, %c0_2] : memref<2x1x16x16xf32, #tpu.memory_space<vmem>>, vector<2x1x16x16xf32>
    %1 = vector.shape_cast %0 : vector<2x1x16x16xf32> to vector<2x16x16xf32>
    %cst = arith.constant 0.000000e+00 : f32
    %2 = vector.broadcast %cst : f32 to vector<2x20x20xf32>
    %c0_3 = arith.constant 0 : index
    %c0_4 = arith.constant 0 : index
    %c0_5 = arith.constant 0 : index
    %3 = vector.load %arg7[%c0_3, %c0_4, %c0_5] : memref<2x20x20xf32, #tpu.memory_space<vmem>>, vector<2x20x20xf32>
    tpu.vector_store %arg7[%c0_3, %c0_4, %c0_5], %2 {strides = array<i32>} : memref<2x20x20xf32, #tpu.memory_space<vmem>>, vector<2x20x20xf32>,
    %cst_6 = arith.constant 0.000000e+00 : f32
    %4 = vector.broadcast %cst_6 : f32 to vector<2x34x34xf32>
    %c0_7 = arith.constant 0 : index
    %c0_8 = arith.constant 0 : index
    %c0_9 = arith.constant 0 : index
    %5 = vector.load %arg8[%c0_7, %c0_8, %c0_9] : memref<2x34x34xf32, #tpu.memory_space<vmem>>, vector<2x34x34xf32>
    tpu.vector_store %arg8[%c0_7, %c0_8, %c0_9], %4 {strides = array<i32>} : memref<2x34x34xf32, #tpu.memory_space<vmem>>, vector<2x34x34xf32>,
    %c0_10 = arith.constant 0 : index
    %c2 = arith.constant 2 : index
    %c2_11 = arith.constant 2 : index
    %6 = vector.load %arg7[%c0_10, %c2, %c2_11] : memref<2x20x20xf32, #tpu.memory_space<vmem>>, vector<2x16x16xf32>
    tpu.vector_store %arg7[%c0_10, %c2, %c2_11], %1 {strides = array<i32>} : memref<2x20x20xf32, #tpu.memory_space<vmem>>, vector<2x16x16xf32>,
    %cst_12 = arith.constant 0.000000e+00 : f32
    %7 = vector.broadcast %cst_12 : f32 to vector<2x16x16xf32>
    %cst_13 = arith.constant 0.000000e+00 : f32
    %8 = vector.broadcast %cst_13 : f32 to vector<2x16x16xf32>
    %cst_14 = arith.constant 0.000000e+00 : f32
    %9 = vector.broadcast %cst_14 : f32 to vector<2x16x16xf32>
    %cst_15 = arith.constant 0.000000e+00 : f32
    %10 = vector.broadcast %cst_15 : f32 to vector<2x16x16xf32>
    %11 = arith.index_cast %arg0 : i32 to index
    %c0_16 = arith.constant 0 : index
    %12 = memref.load %arg2[%11, %c0_16] : memref<32x25xf32, #tpu.memory_space<smem>>
    %c0_17 = arith.constant 0 : index
    %c0_18 = arith.constant 0 : index
    %c0_19 = arith.constant 0 : index
    %13 = vector.load %arg7[%c0_17, %c0_18, %c0_19] : memref<2x20x20xf32, #tpu.memory_space<vmem>>, vector<2x16x16xf32>
    %14 = vector.broadcast %12 : f32 to vector<2x16x16xf32>
    %15 = arith.mulf %14, %13 : vector<2x16x16xf32>
    %16 = arith.addf %7, %15 : vector<2x16x16xf32>
    %17 = arith.index_cast %arg0 : i32 to index
    %c1 = arith.constant 1 : index
    %18 = memref.load %arg2[%17, %c1] : memref<32x25xf32, #tpu.memory_space<smem>>
    %c0_20 = arith.constant 0 : index
    %c0_21 = arith.constant 0 : index
    %c1_22 = arith.constant 1 : index
    %19 = vector.load %arg7[%c0_20, %c0_21, %c1_22] : memref<2x20x20xf32, #tpu.memory_space<vmem>>, vector<2x16x16xf32>
    %20 = vector.broadcast %18 : f32 to vector<2x16x16xf32>
    %21 = arith.mulf %20, %19 : vector<2x16x16xf32>
    %22 = arith.addf %8, %21 : vector<2x16x16xf32>
    %23 = arith.index_cast %arg0 : i32 to index
    %c2_23 = arith.constant 2 : index
    %24 = memref.load %arg2[%23, %c2_23] : memref<32x25xf32, #tpu.memory_space<smem>>
    %c0_24 = arith.constant 0 : index
    %c0_25 = arith.constant 0 : index
    %c2_26 = arith.constant 2 : index
    %25 = vector.load %arg7[%c0_24, %c0_25, %c2_26] : memref<2x20x20xf32, #tpu.memory_space<vmem>>, vector<2x16x16xf32>
    %26 = vector.broadcast %24 : f32 to vector<2x16x16xf32>
    %27 = arith.mulf %26, %25 : vector<2x16x16xf32>
    %28 = arith.addf %9, %27 : vector<2x16x16xf32>
    %29 = arith.index_cast %arg0 : i32 to index
    %c3 = arith.constant 3 : index
    %30 = memref.load %arg2[%29, %c3] : memref<32x25xf32, #tpu.memory_space<smem>>
    %c0_27 = arith.constant 0 : index
    %c0_28 = arith.constant 0 : index
    %c3_29 = arith.constant 3 : index
    %31 = vector.load %arg7[%c0_27, %c0_28, %c3_29] : memref<2x20x20xf32, #tpu.memory_space<vmem>>, vector<2x16x16xf32>
    %32 = vector.broadcast %30 : f32 to vector<2x16x16xf32>
    %33 = arith.mulf %32, %31 : vector<2x16x16xf32>
    %34 = arith.addf %10, %33 : vector<2x16x16xf32>
    %35 = arith.index_cast %arg0 : i32 to index
    %c4 = arith.constant 4 : index
    %36 = memref.load %arg2[%35, %c4] : memref<32x25xf32, #tpu.memory_space<smem>>
    %c0_30 = arith.constant 0 : index
    %c0_31 = arith.constant 0 : index
    %c4_32 = arith.constant 4 : index
    %37 = vector.load %arg7[%c0_30, %c0_31, %c4_32] : memref<2x20x20xf32, #tpu.memory_space<vmem>>, vector<2x16x16xf32>
    %38 = vector.broadcast %36 : f32 to vector<2x16x16xf32>
    %39 = arith.mulf %38, %37 : vector<2x16x16xf32>
    %40 = arith.addf %16, %39 : vector<2x16x16xf32>
    %41 = arith.index_cast %arg0 : i32 to index
    %c5 = arith.constant 5 : index
    %42 = memref.load %arg2[%41, %c5] : memref<32x25xf32, #tpu.memory_space<smem>>
    %c0_33 = arith.constant 0 : index
    %c1_34 = arith.constant 1 : index
    %c0_35 = arith.constant 0 : index
    %43 = vector.load %arg7[%c0_33, %c1_34, %c0_35] : memref<2x20x20xf32, #tpu.memory_space<vmem>>, vector<2x16x16xf32>
    %44 = vector.broadcast %42 : f32 to vector<2x16x16xf32>
    %45 = arith.mulf %44, %43 : vector<2x16x16xf32>
    %46 = arith.addf %22, %45 : vector<2x16x16xf32>
    %47 = arith.index_cast %arg0 : i32 to index
    %c6 = arith.constant 6 : index
    %48 = memref.load %arg2[%47, %c6] : memref<32x25xf32, #tpu.memory_space<smem>>
    %c0_36 = arith.constant 0 : index
    %c1_37 = arith.constant 1 : index
    %c1_38 = arith.constant 1 : index
    %49 = vector.load %arg7[%c0_36, %c1_37, %c1_38] : memref<2x20x20xf32, #tpu.memory_space<vmem>>, vector<2x16x16xf32>
    %50 = vector.broadcast %48 : f32 to vector<2x16x16xf32>
    %51 = arith.mulf %50, %49 : vector<2x16x16xf32>
    %52 = arith.addf %28, %51 : vector<2x16x16xf32>
    %53 = arith.index_cast %arg0 : i32 to index
    %c7 = arith.constant 7 : index
    %54 = memref.load %arg2[%53, %c7] : memref<32x25xf32, #tpu.memory_space<smem>>
    %c0_39 = arith.constant 0 : index
    %c1_40 = arith.constant 1 : index
    %c2_41 = arith.constant 2 : index
    %55 = vector.load %arg7[%c0_39, %c1_40, %c2_41] : memref<2x20x20xf32, #tpu.memory_space<vmem>>, vector<2x16x16xf32>
    %56 = vector.broadcast %54 : f32 to vector<2x16x16xf32>
    %57 = arith.mulf %56, %55 : vector<2x16x16xf32>
    %58 = arith.addf %34, %57 : vector<2x16x16xf32>
    %59 = arith.index_cast %arg0 : i32 to index
    %c8 = arith.constant 8 : index
    %60 = memref.load %arg2[%59, %c8] : memref<32x25xf32, #tpu.memory_space<smem>>
    %c0_42 = arith.constant 0 : index
    %c1_43 = arith.constant 1 : index
    %c3_44 = arith.constant 3 : index
    %61 = vector.load %arg7[%c0_42, %c1_43, %c3_44] : memref<2x20x20xf32, #tpu.memory_space<vmem>>, vector<2x16x16xf32>
    %62 = vector.broadcast %60 : f32 to vector<2x16x16xf32>
    %63 = arith.mulf %62, %61 : vector<2x16x16xf32>
    %64 = arith.addf %40, %63 : vector<2x16x16xf32>
    %65 = arith.index_cast %arg0 : i32 to index
    %c9 = arith.constant 9 : index
    %66 = memref.load %arg2[%65, %c9] : memref<32x25xf32, #tpu.memory_space<smem>>
    %c0_45 = arith.constant 0 : index
    %c1_46 = arith.constant 1 : index
    %c4_47 = arith.constant 4 : index
    %67 = vector.load %arg7[%c0_45, %c1_46, %c4_47] : memref<2x20x20xf32, #tpu.memory_space<vmem>>, vector<2x16x16xf32>
    %68 = vector.broadcast %66 : f32 to vector<2x16x16xf32>
    %69 = arith.mulf %68, %67 : vector<2x16x16xf32>
    %70 = arith.addf %46, %69 : vector<2x16x16xf32>
    %71 = arith.index_cast %arg0 : i32 to index
    %c10 = arith.constant 10 : index
    %72 = memref.load %arg2[%71, %c10] : memref<32x25xf32, #tpu.memory_space<smem>>
    %c0_48 = arith.constant 0 : index
    %c2_49 = arith.constant 2 : index
    %c0_50 = arith.constant 0 : index
    %73 = vector.load %arg7[%c0_48, %c2_49, %c0_50] : memref<2x20x20xf32, #tpu.memory_space<vmem>>, vector<2x16x16xf32>
    %74 = vector.broadcast %72 : f32 to vector<2x16x16xf32>
    %75 = arith.mulf %74, %73 : vector<2x16x16xf32>
    %76 = arith.addf %52, %75 : vector<2x16x16xf32>
    %77 = arith.index_cast %arg0 : i32 to index
    %c11 = arith.constant 11 : index
    %78 = memref.load %arg2[%77, %c11] : memref<32x25xf32, #tpu.memory_space<smem>>
    %c0_51 = arith.constant 0 : index
    %c2_52 = arith.constant 2 : index
    %c1_53 = arith.constant 1 : index
    %79 = vector.load %arg7[%c0_51, %c2_52, %c1_53] : memref<2x20x20xf32, #tpu.memory_space<vmem>>, vector<2x16x16xf32>
    %80 = vector.broadcast %78 : f32 to vector<2x16x16xf32>
    %81 = arith.mulf %80, %79 : vector<2x16x16xf32>
    %82 = arith.addf %58, %81 : vector<2x16x16xf32>
    %83 = arith.index_cast %arg0 : i32 to index
    %c12 = arith.constant 12 : index
    %84 = memref.load %arg2[%83, %c12] : memref<32x25xf32, #tpu.memory_space<smem>>
    %c0_54 = arith.constant 0 : index
    %c2_55 = arith.constant 2 : index
    %c2_56 = arith.constant 2 : index
    %85 = vector.load %arg7[%c0_54, %c2_55, %c2_56] : memref<2x20x20xf32, #tpu.memory_space<vmem>>, vector<2x16x16xf32>
    %86 = vector.broadcast %84 : f32 to vector<2x16x16xf32>
    %87 = arith.mulf %86, %85 : vector<2x16x16xf32>
    %88 = arith.addf %64, %87 : vector<2x16x16xf32>
    %89 = arith.index_cast %arg0 : i32 to index
    %c13 = arith.constant 13 : index
    %90 = memref.load %arg2[%89, %c13] : memref<32x25xf32, #tpu.memory_space<smem>>
    %c0_57 = arith.constant 0 : index
    %c2_58 = arith.constant 2 : index
    %c3_59 = arith.constant 3 : index
    %91 = vector.load %arg7[%c0_57, %c2_58, %c3_59] : memref<2x20x20xf32, #tpu.memory_space<vmem>>, vector<2x16x16xf32>
    %92 = vector.broadcast %90 : f32 to vector<2x16x16xf32>
    %93 = arith.mulf %92, %91 : vector<2x16x16xf32>
    %94 = arith.addf %70, %93 : vector<2x16x16xf32>
    %95 = arith.index_cast %arg0 : i32 to index
    %c14 = arith.constant 14 : index
    %96 = memref.load %arg2[%95, %c14] : memref<32x25xf32, #tpu.memory_space<smem>>
    %c0_60 = arith.constant 0 : index
    %c2_61 = arith.constant 2 : index
    %c4_62 = arith.constant 4 : index
    %97 = vector.load %arg7[%c0_60, %c2_61, %c4_62] : memref<2x20x20xf32, #tpu.memory_space<vmem>>, vector<2x16x16xf32>
    %98 = vector.broadcast %96 : f32 to vector<2x16x16xf32>
    %99 = arith.mulf %98, %97 : vector<2x16x16xf32>
    %100 = arith.addf %76, %99 : vector<2x16x16xf32>
    %101 = arith.index_cast %arg0 : i32 to index
    %c15 = arith.constant 15 : index
    %102 = memref.load %arg2[%101, %c15] : memref<32x25xf32, #tpu.memory_space<smem>>
    %c0_63 = arith.constant 0 : index
    %c3_64 = arith.constant 3 : index
    %c0_65 = arith.constant 0 : index
    %103 = vector.load %arg7[%c0_63, %c3_64, %c0_65] : memref<2x20x20xf32, #tpu.memory_space<vmem>>, vector<2x16x16xf32>
    %104 = vector.broadcast %102 : f32 to vector<2x16x16xf32>
    %105 = arith.mulf %104, %103 : vector<2x16x16xf32>
    %106 = arith.addf %82, %105 : vector<2x16x16xf32>
    %107 = arith.index_cast %arg0 : i32 to index
    %c16 = arith.constant 16 : index
    %108 = memref.load %arg2[%107, %c16] : memref<32x25xf32, #tpu.memory_space<smem>>
    %c0_66 = arith.constant 0 : index
    %c3_67 = arith.constant 3 : index
    %c1_68 = arith.constant 1 : index
    %109 = vector.load %arg7[%c0_66, %c3_67, %c1_68] : memref<2x20x20xf32, #tpu.memory_space<vmem>>, vector<2x16x16xf32>
    %110 = vector.broadcast %108 : f32 to vector<2x16x16xf32>
    %111 = arith.mulf %110, %109 : vector<2x16x16xf32>
    %112 = arith.addf %88, %111 : vector<2x16x16xf32>
    %113 = arith.index_cast %arg0 : i32 to index
    %c17 = arith.constant 17 : index
    %114 = memref.load %arg2[%113, %c17] : memref<32x25xf32, #tpu.memory_space<smem>>
    %c0_69 = arith.constant 0 : index
    %c3_70 = arith.constant 3 : index
    %c2_71 = arith.constant 2 : index
    %115 = vector.load %arg7[%c0_69, %c3_70, %c2_71] : memref<2x20x20xf32, #tpu.memory_space<vmem>>, vector<2x16x16xf32>
    %116 = vector.broadcast %114 : f32 to vector<2x16x16xf32>
    %117 = arith.mulf %116, %115 : vector<2x16x16xf32>
    %118 = arith.addf %94, %117 : vector<2x16x16xf32>
    %119 = arith.index_cast %arg0 : i32 to index
    %c18 = arith.constant 18 : index
    %120 = memref.load %arg2[%119, %c18] : memref<32x25xf32, #tpu.memory_space<smem>>
    %c0_72 = arith.constant 0 : index
    %c3_73 = arith.constant 3 : index
    %c3_74 = arith.constant 3 : index
    %121 = vector.load %arg7[%c0_72, %c3_73, %c3_74] : memref<2x20x20xf32, #tpu.memory_space<vmem>>, vector<2x16x16xf32>
    %122 = vector.broadcast %120 : f32 to vector<2x16x16xf32>
    %123 = arith.mulf %122, %121 : vector<2x16x16xf32>
    %124 = arith.addf %100, %123 : vector<2x16x16xf32>
    %125 = arith.index_cast %arg0 : i32 to index
    %c19 = arith.constant 19 : index
    %126 = memref.load %arg2[%125, %c19] : memref<32x25xf32, #tpu.memory_space<smem>>
    %c0_75 = arith.constant 0 : index
    %c3_76 = arith.constant 3 : index
    %c4_77 = arith.constant 4 : index
    %127 = vector.load %arg7[%c0_75, %c3_76, %c4_77] : memref<2x20x20xf32, #tpu.memory_space<vmem>>, vector<2x16x16xf32>
    %128 = vector.broadcast %126 : f32 to vector<2x16x16xf32>
    %129 = arith.mulf %128, %127 : vector<2x16x16xf32>
    %130 = arith.addf %106, %129 : vector<2x16x16xf32>
    %131 = arith.index_cast %arg0 : i32 to index
    %c20 = arith.constant 20 : index
    %132 = memref.load %arg2[%131, %c20] : memref<32x25xf32, #tpu.memory_space<smem>>
    %c0_78 = arith.constant 0 : index
    %c4_79 = arith.constant 4 : index
    %c0_80 = arith.constant 0 : index
    %133 = vector.load %arg7[%c0_78, %c4_79, %c0_80] : memref<2x20x20xf32, #tpu.memory_space<vmem>>, vector<2x16x16xf32>
    %134 = vector.broadcast %132 : f32 to vector<2x16x16xf32>
    %135 = arith.mulf %134, %133 : vector<2x16x16xf32>
    %136 = arith.addf %112, %135 : vector<2x16x16xf32>
    %137 = arith.index_cast %arg0 : i32 to index
    %c21 = arith.constant 21 : index
    %138 = memref.load %arg2[%137, %c21] : memref<32x25xf32, #tpu.memory_space<smem>>
    %c0_81 = arith.constant 0 : index
    %c4_82 = arith.constant 4 : index
    %c1_83 = arith.constant 1 : index
    %139 = vector.load %arg7[%c0_81, %c4_82, %c1_83] : memref<2x20x20xf32, #tpu.memory_space<vmem>>, vector<2x16x16xf32>
    %140 = vector.broadcast %138 : f32 to vector<2x16x16xf32>
    %141 = arith.mulf %140, %139 : vector<2x16x16xf32>
    %142 = arith.addf %118, %141 : vector<2x16x16xf32>
    %143 = arith.index_cast %arg0 : i32 to index
    %c22 = arith.constant 22 : index
    %144 = memref.load %arg2[%143, %c22] : memref<32x25xf32, #tpu.memory_space<smem>>
    %c0_84 = arith.constant 0 : index
    %c4_85 = arith.constant 4 : index
    %c2_86 = arith.constant 2 : index
    %145 = vector.load %arg7[%c0_84, %c4_85, %c2_86] : memref<2x20x20xf32, #tpu.memory_space<vmem>>, vector<2x16x16xf32>
    %146 = vector.broadcast %144 : f32 to vector<2x16x16xf32>
    %147 = arith.mulf %146, %145 : vector<2x16x16xf32>
    %148 = arith.addf %124, %147 : vector<2x16x16xf32>
    %149 = arith.index_cast %arg0 : i32 to index
    %c23 = arith.constant 23 : index
    %150 = memref.load %arg2[%149, %c23] : memref<32x25xf32, #tpu.memory_space<smem>>
    %c0_87 = arith.constant 0 : index
    %c4_88 = arith.constant 4 : index
    %c3_89 = arith.constant 3 : index
    %151 = vector.load %arg7[%c0_87, %c4_88, %c3_89] : memref<2x20x20xf32, #tpu.memory_space<vmem>>, vector<2x16x16xf32>
    %152 = vector.broadcast %150 : f32 to vector<2x16x16xf32>
    %153 = arith.mulf %152, %151 : vector<2x16x16xf32>
    %154 = arith.addf %130, %153 : vector<2x16x16xf32>
    %155 = arith.index_cast %arg0 : i32 to index
    %c24 = arith.constant 24 : index
    %156 = memref.load %arg2[%155, %c24] : memref<32x25xf32, #tpu.memory_space<smem>>
    %c0_90 = arith.constant 0 : index
    %c4_91 = arith.constant 4 : index
    %c4_92 = arith.constant 4 : index
    %157 = vector.load %arg7[%c0_90, %c4_91, %c4_92] : memref<2x20x20xf32, #tpu.memory_space<vmem>>, vector<2x16x16xf32>
    %158 = vector.broadcast %156 : f32 to vector<2x16x16xf32>
    %159 = arith.mulf %158, %157 : vector<2x16x16xf32>
    %160 = arith.addf %136, %159 : vector<2x16x16xf32>
    %161 = arith.addf %160, %142 : vector<2x16x16xf32>
    %162 = arith.addf %161, %148 : vector<2x16x16xf32>
    %163 = arith.addf %162, %154 : vector<2x16x16xf32>
    %164 = arith.index_cast %arg0 : i32 to index
    %165 = memref.load %arg3[%164] : memref<32xf32, #tpu.memory_space<smem>>
    %166 = vector.broadcast %165 : f32 to vector<2x16x16xf32>
    %167 = arith.addf %163, %166 : vector<2x16x16xf32>
    %c0_93 = arith.constant 0 : index
    %c9_94 = arith.constant 9 : index
    %c9_95 = arith.constant 9 : index
    %168 = vector.load %arg8[%c0_93, %c9_94, %c9_95] : memref<2x34x34xf32, #tpu.memory_space<vmem>>, vector<2x16x16xf32>
    tpu.vector_store %arg8[%c0_93, %c9_94, %c9_95], %167 {strides = array<i32>} : memref<2x34x34xf32, #tpu.memory_space<vmem>>, vector<2x16x16xf32>,
    %cst_96 = arith.constant 0.000000e+00 : f32
    %169 = vector.broadcast %cst_96 : f32 to vector<2x16x16xf32>
    %cst_97 = arith.constant 0.000000e+00 : f32
    %170 = vector.broadcast %cst_97 : f32 to vector<2x16x16xf32>
    %cst_98 = arith.constant 0.000000e+00 : f32
    %171 = vector.broadcast %cst_98 : f32 to vector<2x16x16xf32>
    %cst_99 = arith.constant 0.000000e+00 : f32
    %172 = vector.broadcast %cst_99 : f32 to vector<2x16x16xf32>
    %173 = arith.index_cast %arg0 : i32 to index
    %c0_100 = arith.constant 0 : index
    %174 = memref.load %arg4[%173, %c0_100] : memref<32x49xf32, #tpu.memory_space<smem>>
    %c0_101 = arith.constant 0 : index
    %c0_102 = arith.constant 0 : index
    %c0_103 = arith.constant 0 : index
    %175 = vector.load %arg8[%c0_101, %c0_102, %c0_103] : memref<2x34x34xf32, #tpu.memory_space<vmem>>, vector<2x16x16xf32>
    %176 = vector.broadcast %174 : f32 to vector<2x16x16xf32>
    %177 = arith.mulf %176, %175 : vector<2x16x16xf32>
    %178 = arith.addf %169, %177 : vector<2x16x16xf32>
    %179 = arith.index_cast %arg0 : i32 to index
    %c1_104 = arith.constant 1 : index
    %180 = memref.load %arg4[%179, %c1_104] : memref<32x49xf32, #tpu.memory_space<smem>>
    %c0_105 = arith.constant 0 : index
    %c0_106 = arith.constant 0 : index
    %c3_107 = arith.constant 3 : index
    %181 = vector.load %arg8[%c0_105, %c0_106, %c3_107] : memref<2x34x34xf32, #tpu.memory_space<vmem>>, vector<2x16x16xf32>
    %182 = vector.broadcast %180 : f32 to vector<2x16x16xf32>
    %183 = arith.mulf %182, %181 : vector<2x16x16xf32>
    %184 = arith.addf %170, %183 : vector<2x16x16xf32>
    %185 = arith.index_cast %arg0 : i32 to index
    %c2_108 = arith.constant 2 : index
    %186 = memref.load %arg4[%185, %c2_108] : memref<32x49xf32, #tpu.memory_space<smem>>
    %c0_109 = arith.constant 0 : index
    %c0_110 = arith.constant 0 : index
    %c6_111 = arith.constant 6 : index
    %187 = vector.load %arg8[%c0_109, %c0_110, %c6_111] : memref<2x34x34xf32, #tpu.memory_space<vmem>>, vector<2x16x16xf32>
    %188 = vector.broadcast %186 : f32 to vector<2x16x16xf32>
    %189 = arith.mulf %188, %187 : vector<2x16x16xf32>
    %190 = arith.addf %171, %189 : vector<2x16x16xf32>
    %191 = arith.index_cast %arg0 : i32 to index
    %c3_112 = arith.constant 3 : index
    %192 = memref.load %arg4[%191, %c3_112] : memref<32x49xf32, #tpu.memory_space<smem>>
    %c0_113 = arith.constant 0 : index
    %c0_114 = arith.constant 0 : index
    %c9_115 = arith.constant 9 : index
    %193 = vector.load %arg8[%c0_113, %c0_114, %c9_115] : memref<2x34x34xf32, #tpu.memory_space<vmem>>, vector<2x16x16xf32>
    %194 = vector.broadcast %192 : f32 to vector<2x16x16xf32>
    %195 = arith.mulf %194, %193 : vector<2x16x16xf32>
    %196 = arith.addf %172, %195 : vector<2x16x16xf32>
    %197 = arith.index_cast %arg0 : i32 to index
    %c4_116 = arith.constant 4 : index
    %198 = memref.load %arg4[%197, %c4_116] : memref<32x49xf32, #tpu.memory_space<smem>>
    %c0_117 = arith.constant 0 : index
    %c0_118 = arith.constant 0 : index
    %c12_119 = arith.constant 12 : index
    %199 = vector.load %arg8[%c0_117, %c0_118, %c12_119] : memref<2x34x34xf32, #tpu.memory_space<vmem>>, vector<2x16x16xf32>
    %200 = vector.broadcast %198 : f32 to vector<2x16x16xf32>
    %201 = arith.mulf %200, %199 : vector<2x16x16xf32>
    %202 = arith.addf %178, %201 : vector<2x16x16xf32>
    %203 = arith.index_cast %arg0 : i32 to index
    %c5_120 = arith.constant 5 : index
    %204 = memref.load %arg4[%203, %c5_120] : memref<32x49xf32, #tpu.memory_space<smem>>
    %c0_121 = arith.constant 0 : index
    %c0_122 = arith.constant 0 : index
    %c15_123 = arith.constant 15 : index
    %205 = vector.load %arg8[%c0_121, %c0_122, %c15_123] : memref<2x34x34xf32, #tpu.memory_space<vmem>>, vector<2x16x16xf32>
    %206 = vector.broadcast %204 : f32 to vector<2x16x16xf32>
    %207 = arith.mulf %206, %205 : vector<2x16x16xf32>
    %208 = arith.addf %184, %207 : vector<2x16x16xf32>
    %209 = arith.index_cast %arg0 : i32 to index
    %c6_124 = arith.constant 6 : index
    %210 = memref.load %arg4[%209, %c6_124] : memref<32x49xf32, #tpu.memory_space<smem>>
    %c0_125 = arith.constant 0 : index
    %c0_126 = arith.constant 0 : index
    %c18_127 = arith.constant 18 : index
    %211 = vector.load %arg8[%c0_125, %c0_126, %c18_127] : memref<2x34x34xf32, #tpu.memory_space<vmem>>, vector<2x16x16xf32>
    %212 = vector.broadcast %210 : f32 to vector<2x16x16xf32>
    %213 = arith.mulf %212, %211 : vector<2x16x16xf32>
    %214 = arith.addf %190, %213 : vector<2x16x16xf32>
    %215 = arith.index_cast %arg0 : i32 to index
    %c7_128 = arith.constant 7 : index
    %216 = memref.load %arg4[%215, %c7_128] : memref<32x49xf32, #tpu.memory_space<smem>>
    %c0_129 = arith.constant 0 : index
    %c3_130 = arith.constant 3 : index
    %c0_131 = arith.constant 0 : index
    %217 = vector.load %arg8[%c0_129, %c3_130, %c0_131] : memref<2x34x34xf32, #tpu.memory_space<vmem>>, vector<2x16x16xf32>
    %218 = vector.broadcast %216 : f32 to vector<2x16x16xf32>
    %219 = arith.mulf %218, %217 : vector<2x16x16xf32>
    %220 = arith.addf %196, %219 : vector<2x16x16xf32>
    %221 = arith.index_cast %arg0 : i32 to index
    %c8_132 = arith.constant 8 : index
    %222 = memref.load %arg4[%221, %c8_132] : memref<32x49xf32, #tpu.memory_space<smem>>
    %c0_133 = arith.constant 0 : index
    %c3_134 = arith.constant 3 : index
    %c3_135 = arith.constant 3 : index
    %223 = vector.load %arg8[%c0_133, %c3_134, %c3_135] : memref<2x34x34xf32, #tpu.memory_space<vmem>>, vector<2x16x16xf32>
    %224 = vector.broadcast %222 : f32 to vector<2x16x16xf32>
    %225 = arith.mulf %224, %223 : vector<2x16x16xf32>
    %226 = arith.addf %202, %225 : vector<2x16x16xf32>
    %227 = arith.index_cast %arg0 : i32 to index
    %c9_136 = arith.constant 9 : index
    %228 = memref.load %arg4[%227, %c9_136] : memref<32x49xf32, #tpu.memory_space<smem>>
    %c0_137 = arith.constant 0 : index
    %c3_138 = arith.constant 3 : index
    %c6_139 = arith.constant 6 : index
    %229 = vector.load %arg8[%c0_137, %c3_138, %c6_139] : memref<2x34x34xf32, #tpu.memory_space<vmem>>, vector<2x16x16xf32>
    %230 = vector.broadcast %228 : f32 to vector<2x16x16xf32>
    %231 = arith.mulf %230, %229 : vector<2x16x16xf32>
    %232 = arith.addf %208, %231 : vector<2x16x16xf32>
    %233 = arith.index_cast %arg0 : i32 to index
    %c10_140 = arith.constant 10 : index
    %234 = memref.load %arg4[%233, %c10_140] : memref<32x49xf32, #tpu.memory_space<smem>>
    %c0_141 = arith.constant 0 : index
    %c3_142 = arith.constant 3 : index
    %c9_143 = arith.constant 9 : index
    %235 = vector.load %arg8[%c0_141, %c3_142, %c9_143] : memref<2x34x34xf32, #tpu.memory_space<vmem>>, vector<2x16x16xf32>
    %236 = vector.broadcast %234 : f32 to vector<2x16x16xf32>
    %237 = arith.mulf %236, %235 : vector<2x16x16xf32>
    %238 = arith.addf %214, %237 : vector<2x16x16xf32>
    %239 = arith.index_cast %arg0 : i32 to index
    %c11_144 = arith.constant 11 : index
    %240 = memref.load %arg4[%239, %c11_144] : memref<32x49xf32, #tpu.memory_space<smem>>
    %c0_145 = arith.constant 0 : index
    %c3_146 = arith.constant 3 : index
    %c12_147 = arith.constant 12 : index
    %241 = vector.load %arg8[%c0_145, %c3_146, %c12_147] : memref<2x34x34xf32, #tpu.memory_space<vmem>>, vector<2x16x16xf32>
    %242 = vector.broadcast %240 : f32 to vector<2x16x16xf32>
    %243 = arith.mulf %242, %241 : vector<2x16x16xf32>
    %244 = arith.addf %220, %243 : vector<2x16x16xf32>
    %245 = arith.index_cast %arg0 : i32 to index
    %c12_148 = arith.constant 12 : index
    %246 = memref.load %arg4[%245, %c12_148] : memref<32x49xf32, #tpu.memory_space<smem>>
    %c0_149 = arith.constant 0 : index
    %c3_150 = arith.constant 3 : index
    %c15_151 = arith.constant 15 : index
    %247 = vector.load %arg8[%c0_149, %c3_150, %c15_151] : memref<2x34x34xf32, #tpu.memory_space<vmem>>, vector<2x16x16xf32>
    %248 = vector.broadcast %246 : f32 to vector<2x16x16xf32>
    %249 = arith.mulf %248, %247 : vector<2x16x16xf32>
    %250 = arith.addf %226, %249 : vector<2x16x16xf32>
    %251 = arith.index_cast %arg0 : i32 to index
    %c13_152 = arith.constant 13 : index
    %252 = memref.load %arg4[%251, %c13_152] : memref<32x49xf32, #tpu.memory_space<smem>>
    %c0_153 = arith.constant 0 : index
    %c3_154 = arith.constant 3 : index
    %c18_155 = arith.constant 18 : index
    %253 = vector.load %arg8[%c0_153, %c3_154, %c18_155] : memref<2x34x34xf32, #tpu.memory_space<vmem>>, vector<2x16x16xf32>
    %254 = vector.broadcast %252 : f32 to vector<2x16x16xf32>
    %255 = arith.mulf %254, %253 : vector<2x16x16xf32>
    %256 = arith.addf %232, %255 : vector<2x16x16xf32>
    %257 = arith.index_cast %arg0 : i32 to index
    %c14_156 = arith.constant 14 : index
    %258 = memref.load %arg4[%257, %c14_156] : memref<32x49xf32, #tpu.memory_space<smem>>
    %c0_157 = arith.constant 0 : index
    %c6_158 = arith.constant 6 : index
    %c0_159 = arith.constant 0 : index
    %259 = vector.load %arg8[%c0_157, %c6_158, %c0_159] : memref<2x34x34xf32, #tpu.memory_space<vmem>>, vector<2x16x16xf32>
    %260 = vector.broadcast %258 : f32 to vector<2x16x16xf32>
    %261 = arith.mulf %260, %259 : vector<2x16x16xf32>
    %262 = arith.addf %238, %261 : vector<2x16x16xf32>
    %263 = arith.index_cast %arg0 : i32 to index
    %c15_160 = arith.constant 15 : index
    %264 = memref.load %arg4[%263, %c15_160] : memref<32x49xf32, #tpu.memory_space<smem>>
    %c0_161 = arith.constant 0 : index
    %c6_162 = arith.constant 6 : index
    %c3_163 = arith.constant 3 : index
    %265 = vector.load %arg8[%c0_161, %c6_162, %c3_163] : memref<2x34x34xf32, #tpu.memory_space<vmem>>, vector<2x16x16xf32>
    %266 = vector.broadcast %264 : f32 to vector<2x16x16xf32>
    %267 = arith.mulf %266, %265 : vector<2x16x16xf32>
    %268 = arith.addf %244, %267 : vector<2x16x16xf32>
    %269 = arith.index_cast %arg0 : i32 to index
    %c16_164 = arith.constant 16 : index
    %270 = memref.load %arg4[%269, %c16_164] : memref<32x49xf32, #tpu.memory_space<smem>>
    %c0_165 = arith.constant 0 : index
    %c6_166 = arith.constant 6 : index
    %c6_167 = arith.constant 6 : index
    %271 = vector.load %arg8[%c0_165, %c6_166, %c6_167] : memref<2x34x34xf32, #tpu.memory_space<vmem>>, vector<2x16x16xf32>
    %272 = vector.broadcast %270 : f32 to vector<2x16x16xf32>
    %273 = arith.mulf %272, %271 : vector<2x16x16xf32>
    %274 = arith.addf %250, %273 : vector<2x16x16xf32>
    %275 = arith.index_cast %arg0 : i32 to index
    %c17_168 = arith.constant 17 : index
    %276 = memref.load %arg4[%275, %c17_168] : memref<32x49xf32, #tpu.memory_space<smem>>
    %c0_169 = arith.constant 0 : index
    %c6_170 = arith.constant 6 : index
    %c9_171 = arith.constant 9 : index
    %277 = vector.load %arg8[%c0_169, %c6_170, %c9_171] : memref<2x34x34xf32, #tpu.memory_space<vmem>>, vector<2x16x16xf32>
    %278 = vector.broadcast %276 : f32 to vector<2x16x16xf32>
    %279 = arith.mulf %278, %277 : vector<2x16x16xf32>
    %280 = arith.addf %256, %279 : vector<2x16x16xf32>
    %281 = arith.index_cast %arg0 : i32 to index
    %c18_172 = arith.constant 18 : index
    %282 = memref.load %arg4[%281, %c18_172] : memref<32x49xf32, #tpu.memory_space<smem>>
    %c0_173 = arith.constant 0 : index
    %c6_174 = arith.constant 6 : index
    %c12_175 = arith.constant 12 : index
    %283 = vector.load %arg8[%c0_173, %c6_174, %c12_175] : memref<2x34x34xf32, #tpu.memory_space<vmem>>, vector<2x16x16xf32>
    %284 = vector.broadcast %282 : f32 to vector<2x16x16xf32>
    %285 = arith.mulf %284, %283 : vector<2x16x16xf32>
    %286 = arith.addf %262, %285 : vector<2x16x16xf32>
    %287 = arith.index_cast %arg0 : i32 to index
    %c19_176 = arith.constant 19 : index
    %288 = memref.load %arg4[%287, %c19_176] : memref<32x49xf32, #tpu.memory_space<smem>>
    %c0_177 = arith.constant 0 : index
    %c6_178 = arith.constant 6 : index
    %c15_179 = arith.constant 15 : index
    %289 = vector.load %arg8[%c0_177, %c6_178, %c15_179] : memref<2x34x34xf32, #tpu.memory_space<vmem>>, vector<2x16x16xf32>
    %290 = vector.broadcast %288 : f32 to vector<2x16x16xf32>
    %291 = arith.mulf %290, %289 : vector<2x16x16xf32>
    %292 = arith.addf %268, %291 : vector<2x16x16xf32>
    %293 = arith.index_cast %arg0 : i32 to index
    %c20_180 = arith.constant 20 : index
    %294 = memref.load %arg4[%293, %c20_180] : memref<32x49xf32, #tpu.memory_space<smem>>
    %c0_181 = arith.constant 0 : index
    %c6_182 = arith.constant 6 : index
    %c18_183 = arith.constant 18 : index
    %295 = vector.load %arg8[%c0_181, %c6_182, %c18_183] : memref<2x34x34xf32, #tpu.memory_space<vmem>>, vector<2x16x16xf32>
    %296 = vector.broadcast %294 : f32 to vector<2x16x16xf32>
    %297 = arith.mulf %296, %295 : vector<2x16x16xf32>
    %298 = arith.addf %274, %297 : vector<2x16x16xf32>
    %299 = arith.index_cast %arg0 : i32 to index
    %c21_184 = arith.constant 21 : index
    %300 = memref.load %arg4[%299, %c21_184] : memref<32x49xf32, #tpu.memory_space<smem>>
    %c0_185 = arith.constant 0 : index
    %c9_186 = arith.constant 9 : index
    %c0_187 = arith.constant 0 : index
    %301 = vector.load %arg8[%c0_185, %c9_186, %c0_187] : memref<2x34x34xf32, #tpu.memory_space<vmem>>, vector<2x16x16xf32>
    %302 = vector.broadcast %300 : f32 to vector<2x16x16xf32>
    %303 = arith.mulf %302, %301 : vector<2x16x16xf32>
    %304 = arith.addf %280, %303 : vector<2x16x16xf32>
    %305 = arith.index_cast %arg0 : i32 to index
    %c22_188 = arith.constant 22 : index
    %306 = memref.load %arg4[%305, %c22_188] : memref<32x49xf32, #tpu.memory_space<smem>>
    %c0_189 = arith.constant 0 : index
    %c9_190 = arith.constant 9 : index
    %c3_191 = arith.constant 3 : index
    %307 = vector.load %arg8[%c0_189, %c9_190, %c3_191] : memref<2x34x34xf32, #tpu.memory_space<vmem>>, vector<2x16x16xf32>
    %308 = vector.broadcast %306 : f32 to vector<2x16x16xf32>
    %309 = arith.mulf %308, %307 : vector<2x16x16xf32>
    %310 = arith.addf %286, %309 : vector<2x16x16xf32>
    %311 = arith.index_cast %arg0 : i32 to index
    %c23_192 = arith.constant 23 : index
    %312 = memref.load %arg4[%311, %c23_192] : memref<32x49xf32, #tpu.memory_space<smem>>
    %c0_193 = arith.constant 0 : index
    %c9_194 = arith.constant 9 : index
    %c6_195 = arith.constant 6 : index
    %313 = vector.load %arg8[%c0_193, %c9_194, %c6_195] : memref<2x34x34xf32, #tpu.memory_space<vmem>>, vector<2x16x16xf32>
    %314 = vector.broadcast %312 : f32 to vector<2x16x16xf32>
    %315 = arith.mulf %314, %313 : vector<2x16x16xf32>
    %316 = arith.addf %292, %315 : vector<2x16x16xf32>
    %317 = arith.index_cast %arg0 : i32 to index
    %c24_196 = arith.constant 24 : index
    %318 = memref.load %arg4[%317, %c24_196] : memref<32x49xf32, #tpu.memory_space<smem>>
    %c0_197 = arith.constant 0 : index
    %c9_198 = arith.constant 9 : index
    %c9_199 = arith.constant 9 : index
    %319 = vector.load %arg8[%c0_197, %c9_198, %c9_199] : memref<2x34x34xf32, #tpu.memory_space<vmem>>, vector<2x16x16xf32>
    %320 = vector.broadcast %318 : f32 to vector<2x16x16xf32>
    %321 = arith.mulf %320, %319 : vector<2x16x16xf32>
    %322 = arith.addf %298, %321 : vector<2x16x16xf32>
    %323 = arith.index_cast %arg0 : i32 to index
    %c25 = arith.constant 25 : index
    %324 = memref.load %arg4[%323, %c25] : memref<32x49xf32, #tpu.memory_space<smem>>
    %c0_200 = arith.constant 0 : index
    %c9_201 = arith.constant 9 : index
    %c12_202 = arith.constant 12 : index
    %325 = vector.load %arg8[%c0_200, %c9_201, %c12_202] : memref<2x34x34xf32, #tpu.memory_space<vmem>>, vector<2x16x16xf32>
    %326 = vector.broadcast %324 : f32 to vector<2x16x16xf32>
    %327 = arith.mulf %326, %325 : vector<2x16x16xf32>
    %328 = arith.addf %304, %327 : vector<2x16x16xf32>
    %329 = arith.index_cast %arg0 : i32 to index
    %c26 = arith.constant 26 : index
    %330 = memref.load %arg4[%329, %c26] : memref<32x49xf32, #tpu.memory_space<smem>>
    %c0_203 = arith.constant 0 : index
    %c9_204 = arith.constant 9 : index
    %c15_205 = arith.constant 15 : index
    %331 = vector.load %arg8[%c0_203, %c9_204, %c15_205] : memref<2x34x34xf32, #tpu.memory_space<vmem>>, vector<2x16x16xf32>
    %332 = vector.broadcast %330 : f32 to vector<2x16x16xf32>
    %333 = arith.mulf %332, %331 : vector<2x16x16xf32>
    %334 = arith.addf %310, %333 : vector<2x16x16xf32>
    %335 = arith.index_cast %arg0 : i32 to index
    %c27 = arith.constant 27 : index
    %336 = memref.load %arg4[%335, %c27] : memref<32x49xf32, #tpu.memory_space<smem>>
    %c0_206 = arith.constant 0 : index
    %c9_207 = arith.constant 9 : index
    %c18_208 = arith.constant 18 : index
    %337 = vector.load %arg8[%c0_206, %c9_207, %c18_208] : memref<2x34x34xf32, #tpu.memory_space<vmem>>, vector<2x16x16xf32>
    %338 = vector.broadcast %336 : f32 to vector<2x16x16xf32>
    %339 = arith.mulf %338, %337 : vector<2x16x16xf32>
    %340 = arith.addf %316, %339 : vector<2x16x16xf32>
    %341 = arith.index_cast %arg0 : i32 to index
    %c28 = arith.constant 28 : index
    %342 = memref.load %arg4[%341, %c28] : memref<32x49xf32, #tpu.memory_space<smem>>
    %c0_209 = arith.constant 0 : index
    %c12_210 = arith.constant 12 : index
    %c0_211 = arith.constant 0 : index
    %343 = vector.load %arg8[%c0_209, %c12_210, %c0_211] : memref<2x34x34xf32, #tpu.memory_space<vmem>>, vector<2x16x16xf32>
    %344 = vector.broadcast %342 : f32 to vector<2x16x16xf32>
    %345 = arith.mulf %344, %343 : vector<2x16x16xf32>
    %346 = arith.addf %322, %345 : vector<2x16x16xf32>
    %347 = arith.index_cast %arg0 : i32 to index
    %c29 = arith.constant 29 : index
    %348 = memref.load %arg4[%347, %c29] : memref<32x49xf32, #tpu.memory_space<smem>>
    %c0_212 = arith.constant 0 : index
    %c12_213 = arith.constant 12 : index
    %c3_214 = arith.constant 3 : index
    %349 = vector.load %arg8[%c0_212, %c12_213, %c3_214] : memref<2x34x34xf32, #tpu.memory_space<vmem>>, vector<2x16x16xf32>
    %350 = vector.broadcast %348 : f32 to vector<2x16x16xf32>
    %351 = arith.mulf %350, %349 : vector<2x16x16xf32>
    %352 = arith.addf %328, %351 : vector<2x16x16xf32>
    %353 = arith.index_cast %arg0 : i32 to index
    %c30 = arith.constant 30 : index
    %354 = memref.load %arg4[%353, %c30] : memref<32x49xf32, #tpu.memory_space<smem>>
    %c0_215 = arith.constant 0 : index
    %c12_216 = arith.constant 12 : index
    %c6_217 = arith.constant 6 : index
    %355 = vector.load %arg8[%c0_215, %c12_216, %c6_217] : memref<2x34x34xf32, #tpu.memory_space<vmem>>, vector<2x16x16xf32>
    %356 = vector.broadcast %354 : f32 to vector<2x16x16xf32>
    %357 = arith.mulf %356, %355 : vector<2x16x16xf32>
    %358 = arith.addf %334, %357 : vector<2x16x16xf32>
    %359 = arith.index_cast %arg0 : i32 to index
    %c31 = arith.constant 31 : index
    %360 = memref.load %arg4[%359, %c31] : memref<32x49xf32, #tpu.memory_space<smem>>
    %c0_218 = arith.constant 0 : index
    %c12_219 = arith.constant 12 : index
    %c9_220 = arith.constant 9 : index
    %361 = vector.load %arg8[%c0_218, %c12_219, %c9_220] : memref<2x34x34xf32, #tpu.memory_space<vmem>>, vector<2x16x16xf32>
    %362 = vector.broadcast %360 : f32 to vector<2x16x16xf32>
    %363 = arith.mulf %362, %361 : vector<2x16x16xf32>
    %364 = arith.addf %340, %363 : vector<2x16x16xf32>
    %365 = arith.index_cast %arg0 : i32 to index
    %c32 = arith.constant 32 : index
    %366 = memref.load %arg4[%365, %c32] : memref<32x49xf32, #tpu.memory_space<smem>>
    %c0_221 = arith.constant 0 : index
    %c12_222 = arith.constant 12 : index
    %c12_223 = arith.constant 12 : index
    %367 = vector.load %arg8[%c0_221, %c12_222, %c12_223] : memref<2x34x34xf32, #tpu.memory_space<vmem>>, vector<2x16x16xf32>
    %368 = vector.broadcast %366 : f32 to vector<2x16x16xf32>
    %369 = arith.mulf %368, %367 : vector<2x16x16xf32>
    %370 = arith.addf %346, %369 : vector<2x16x16xf32>
    %371 = arith.index_cast %arg0 : i32 to index
    %c33 = arith.constant 33 : index
    %372 = memref.load %arg4[%371, %c33] : memref<32x49xf32, #tpu.memory_space<smem>>
    %c0_224 = arith.constant 0 : index
    %c12_225 = arith.constant 12 : index
    %c15_226 = arith.constant 15 : index
    %373 = vector.load %arg8[%c0_224, %c12_225, %c15_226] : memref<2x34x34xf32, #tpu.memory_space<vmem>>, vector<2x16x16xf32>
    %374 = vector.broadcast %372 : f32 to vector<2x16x16xf32>
    %375 = arith.mulf %374, %373 : vector<2x16x16xf32>
    %376 = arith.addf %352, %375 : vector<2x16x16xf32>
    %377 = arith.index_cast %arg0 : i32 to index
    %c34 = arith.constant 34 : index
    %378 = memref.load %arg4[%377, %c34] : memref<32x49xf32, #tpu.memory_space<smem>>
    %c0_227 = arith.constant 0 : index
    %c12_228 = arith.constant 12 : index
    %c18_229 = arith.constant 18 : index
    %379 = vector.load %arg8[%c0_227, %c12_228, %c18_229] : memref<2x34x34xf32, #tpu.memory_space<vmem>>, vector<2x16x16xf32>
    %380 = vector.broadcast %378 : f32 to vector<2x16x16xf32>
    %381 = arith.mulf %380, %379 : vector<2x16x16xf32>
    %382 = arith.addf %358, %381 : vector<2x16x16xf32>
    %383 = arith.index_cast %arg0 : i32 to index
    %c35 = arith.constant 35 : index
    %384 = memref.load %arg4[%383, %c35] : memref<32x49xf32, #tpu.memory_space<smem>>
    %c0_230 = arith.constant 0 : index
    %c15_231 = arith.constant 15 : index
    %c0_232 = arith.constant 0 : index
    %385 = vector.load %arg8[%c0_230, %c15_231, %c0_232] : memref<2x34x34xf32, #tpu.memory_space<vmem>>, vector<2x16x16xf32>
    %386 = vector.broadcast %384 : f32 to vector<2x16x16xf32>
    %387 = arith.mulf %386, %385 : vector<2x16x16xf32>
    %388 = arith.addf %364, %387 : vector<2x16x16xf32>
    %389 = arith.index_cast %arg0 : i32 to index
    %c36 = arith.constant 36 : index
    %390 = memref.load %arg4[%389, %c36] : memref<32x49xf32, #tpu.memory_space<smem>>
    %c0_233 = arith.constant 0 : index
    %c15_234 = arith.constant 15 : index
    %c3_235 = arith.constant 3 : index
    %391 = vector.load %arg8[%c0_233, %c15_234, %c3_235] : memref<2x34x34xf32, #tpu.memory_space<vmem>>, vector<2x16x16xf32>
    %392 = vector.broadcast %390 : f32 to vector<2x16x16xf32>
    %393 = arith.mulf %392, %391 : vector<2x16x16xf32>
    %394 = arith.addf %370, %393 : vector<2x16x16xf32>
    %395 = arith.index_cast %arg0 : i32 to index
    %c37 = arith.constant 37 : index
    %396 = memref.load %arg4[%395, %c37] : memref<32x49xf32, #tpu.memory_space<smem>>
    %c0_236 = arith.constant 0 : index
    %c15_237 = arith.constant 15 : index
    %c6_238 = arith.constant 6 : index
    %397 = vector.load %arg8[%c0_236, %c15_237, %c6_238] : memref<2x34x34xf32, #tpu.memory_space<vmem>>, vector<2x16x16xf32>
    %398 = vector.broadcast %396 : f32 to vector<2x16x16xf32>
    %399 = arith.mulf %398, %397 : vector<2x16x16xf32>
    %400 = arith.addf %376, %399 : vector<2x16x16xf32>
    %401 = arith.index_cast %arg0 : i32 to index
    %c38 = arith.constant 38 : index
    %402 = memref.load %arg4[%401, %c38] : memref<32x49xf32, #tpu.memory_space<smem>>
    %c0_239 = arith.constant 0 : index
    %c15_240 = arith.constant 15 : index
    %c9_241 = arith.constant 9 : index
    %403 = vector.load %arg8[%c0_239, %c15_240, %c9_241] : memref<2x34x34xf32, #tpu.memory_space<vmem>>, vector<2x16x16xf32>
    %404 = vector.broadcast %402 : f32 to vector<2x16x16xf32>
    %405 = arith.mulf %404, %403 : vector<2x16x16xf32>
    %406 = arith.addf %382, %405 : vector<2x16x16xf32>
    %407 = arith.index_cast %arg0 : i32 to index
    %c39 = arith.constant 39 : index
    %408 = memref.load %arg4[%407, %c39] : memref<32x49xf32, #tpu.memory_space<smem>>
    %c0_242 = arith.constant 0 : index
    %c15_243 = arith.constant 15 : index
    %c12_244 = arith.constant 12 : index
    %409 = vector.load %arg8[%c0_242, %c15_243, %c12_244] : memref<2x34x34xf32, #tpu.memory_space<vmem>>, vector<2x16x16xf32>
    %410 = vector.broadcast %408 : f32 to vector<2x16x16xf32>
    %411 = arith.mulf %410, %409 : vector<2x16x16xf32>
    %412 = arith.addf %388, %411 : vector<2x16x16xf32>
    %413 = arith.index_cast %arg0 : i32 to index
    %c40 = arith.constant 40 : index
    %414 = memref.load %arg4[%413, %c40] : memref<32x49xf32, #tpu.memory_space<smem>>
    %c0_245 = arith.constant 0 : index
    %c15_246 = arith.constant 15 : index
    %c15_247 = arith.constant 15 : index
    %415 = vector.load %arg8[%c0_245, %c15_246, %c15_247] : memref<2x34x34xf32, #tpu.memory_space<vmem>>, vector<2x16x16xf32>
    %416 = vector.broadcast %414 : f32 to vector<2x16x16xf32>
    %417 = arith.mulf %416, %415 : vector<2x16x16xf32>
    %418 = arith.addf %394, %417 : vector<2x16x16xf32>
    %419 = arith.index_cast %arg0 : i32 to index
    %c41 = arith.constant 41 : index
    %420 = memref.load %arg4[%419, %c41] : memref<32x49xf32, #tpu.memory_space<smem>>
    %c0_248 = arith.constant 0 : index
    %c15_249 = arith.constant 15 : index
    %c18_250 = arith.constant 18 : index
    %421 = vector.load %arg8[%c0_248, %c15_249, %c18_250] : memref<2x34x34xf32, #tpu.memory_space<vmem>>, vector<2x16x16xf32>
    %422 = vector.broadcast %420 : f32 to vector<2x16x16xf32>
    %423 = arith.mulf %422, %421 : vector<2x16x16xf32>
    %424 = arith.addf %400, %423 : vector<2x16x16xf32>
    %425 = arith.index_cast %arg0 : i32 to index
    %c42 = arith.constant 42 : index
    %426 = memref.load %arg4[%425, %c42] : memref<32x49xf32, #tpu.memory_space<smem>>
    %c0_251 = arith.constant 0 : index
    %c18_252 = arith.constant 18 : index
    %c0_253 = arith.constant 0 : index
    %427 = vector.load %arg8[%c0_251, %c18_252, %c0_253] : memref<2x34x34xf32, #tpu.memory_space<vmem>>, vector<2x16x16xf32>
    %428 = vector.broadcast %426 : f32 to vector<2x16x16xf32>
    %429 = arith.mulf %428, %427 : vector<2x16x16xf32>
    %430 = arith.addf %406, %429 : vector<2x16x16xf32>
    %431 = arith.index_cast %arg0 : i32 to index
    %c43 = arith.constant 43 : index
    %432 = memref.load %arg4[%431, %c43] : memref<32x49xf32, #tpu.memory_space<smem>>
    %c0_254 = arith.constant 0 : index
    %c18_255 = arith.constant 18 : index
    %c3_256 = arith.constant 3 : index
    %433 = vector.load %arg8[%c0_254, %c18_255, %c3_256] : memref<2x34x34xf32, #tpu.memory_space<vmem>>, vector<2x16x16xf32>
    %434 = vector.broadcast %432 : f32 to vector<2x16x16xf32>
    %435 = arith.mulf %434, %433 : vector<2x16x16xf32>
    %436 = arith.addf %412, %435 : vector<2x16x16xf32>
    %437 = arith.index_cast %arg0 : i32 to index
    %c44 = arith.constant 44 : index
    %438 = memref.load %arg4[%437, %c44] : memref<32x49xf32, #tpu.memory_space<smem>>
    %c0_257 = arith.constant 0 : index
    %c18_258 = arith.constant 18 : index
    %c6_259 = arith.constant 6 : index
    %439 = vector.load %arg8[%c0_257, %c18_258, %c6_259] : memref<2x34x34xf32, #tpu.memory_space<vmem>>, vector<2x16x16xf32>
    %440 = vector.broadcast %438 : f32 to vector<2x16x16xf32>
    %441 = arith.mulf %440, %439 : vector<2x16x16xf32>
    %442 = arith.addf %418, %441 : vector<2x16x16xf32>
    %443 = arith.index_cast %arg0 : i32 to index
    %c45 = arith.constant 45 : index
    %444 = memref.load %arg4[%443, %c45] : memref<32x49xf32, #tpu.memory_space<smem>>
    %c0_260 = arith.constant 0 : index
    %c18_261 = arith.constant 18 : index
    %c9_262 = arith.constant 9 : index
    %445 = vector.load %arg8[%c0_260, %c18_261, %c9_262] : memref<2x34x34xf32, #tpu.memory_space<vmem>>, vector<2x16x16xf32>
    %446 = vector.broadcast %444 : f32 to vector<2x16x16xf32>
    %447 = arith.mulf %446, %445 : vector<2x16x16xf32>
    %448 = arith.addf %424, %447 : vector<2x16x16xf32>
    %449 = arith.index_cast %arg0 : i32 to index
    %c46 = arith.constant 46 : index
    %450 = memref.load %arg4[%449, %c46] : memref<32x49xf32, #tpu.memory_space<smem>>
    %c0_263 = arith.constant 0 : index
    %c18_264 = arith.constant 18 : index
    %c12_265 = arith.constant 12 : index
    %451 = vector.load %arg8[%c0_263, %c18_264, %c12_265] : memref<2x34x34xf32, #tpu.memory_space<vmem>>, vector<2x16x16xf32>
    %452 = vector.broadcast %450 : f32 to vector<2x16x16xf32>
    %453 = arith.mulf %452, %451 : vector<2x16x16xf32>
    %454 = arith.addf %430, %453 : vector<2x16x16xf32>
    %455 = arith.index_cast %arg0 : i32 to index
    %c47 = arith.constant 47 : index
    %456 = memref.load %arg4[%455, %c47] : memref<32x49xf32, #tpu.memory_space<smem>>
    %c0_266 = arith.constant 0 : index
    %c18_267 = arith.constant 18 : index
    %c15_268 = arith.constant 15 : index
    %457 = vector.load %arg8[%c0_266, %c18_267, %c15_268] : memref<2x34x34xf32, #tpu.memory_space<vmem>>, vector<2x16x16xf32>
    %458 = vector.broadcast %456 : f32 to vector<2x16x16xf32>
    %459 = arith.mulf %458, %457 : vector<2x16x16xf32>
    %460 = arith.addf %436, %459 : vector<2x16x16xf32>
    %461 = arith.index_cast %arg0 : i32 to index
    %c48 = arith.constant 48 : index
    %462 = memref.load %arg4[%461, %c48] : memref<32x49xf32, #tpu.memory_space<smem>>
    %c0_269 = arith.constant 0 : index
    %c18_270 = arith.constant 18 : index
    %c18_271 = arith.constant 18 : index
    %463 = vector.load %arg8[%c0_269, %c18_270, %c18_271] : memref<2x34x34xf32, #tpu.memory_space<vmem>>, vector<2x16x16xf32>
    %464 = vector.broadcast %462 : f32 to vector<2x16x16xf32>
    %465 = arith.mulf %464, %463 : vector<2x16x16xf32>
    %466 = arith.addf %442, %465 : vector<2x16x16xf32>
    %467 = arith.addf %466, %448 : vector<2x16x16xf32>
    %468 = arith.addf %467, %454 : vector<2x16x16xf32>
    %469 = arith.addf %468, %460 : vector<2x16x16xf32>
    %470 = arith.index_cast %arg0 : i32 to index
    %471 = memref.load %arg5[%470] : memref<32xf32, #tpu.memory_space<smem>>
    %472 = vector.broadcast %471 : f32 to vector<2x16x16xf32>
    %473 = arith.addf %469, %472 : vector<2x16x16xf32>
    %474 = vector.shape_cast %473 : vector<2x16x16xf32> to vector<2x1x16x16xf32>
    %c0_272 = arith.constant 0 : index
    %c0_273 = arith.constant 0 : index
    %c0_274 = arith.constant 0 : index
    %c0_275 = arith.constant 0 : index
    %475 = vector.load %arg6[%c0_272, %c0_273, %c0_274, %c0_275] : memref<2x1x16x16xf32, #tpu.memory_space<vmem>>, vector<2x1x16x16xf32>
    tpu.vector_store %arg6[%c0_272, %c0_273, %c0_274, %c0_275], %474 {strides = array<i32>} : memref<2x1x16x16xf32, #tpu.memory_space<vmem>>, vector<2x1x16x16xf32>,
    return
  }
  func.func @transform_0(%arg0: i32) -> (i32, i32, i32, i32) {
    %c0_i32 = arith.constant 0 : i32
    %c0_i32_0 = arith.constant 0 : i32
    %c0_i32_1 = arith.constant 0 : i32
    %c0_i32_2 = arith.constant 0 : i32
    return %c0_i32, %arg0, %c0_i32_0, %c0_i32_1 : i32, i32, i32, i32
  }
  func.func @transform_1(%arg0: i32) -> (i32, i32) {
    %c0_i32 = arith.constant 0 : i32
    %c0_i32_0 = arith.constant 0 : i32
    %c0_i32_1 = arith.constant 0 : i32
    return %c0_i32, %c0_i32_0 : i32, i32
  }
  func.func @transform_2(%arg0: i32) -> i32 {
    %c0_i32 = arith.constant 0 : i32
    %c0_i32_0 = arith.constant 0 : i32
    return %c0_i32 : i32
  }
  func.func @transform_3(%arg0: i32) -> (i32, i32) {
    %c0_i32 = arith.constant 0 : i32
    %c0_i32_0 = arith.constant 0 : i32
    %c0_i32_1 = arith.constant 0 : i32
    return %c0_i32, %c0_i32_0 : i32, i32
  }
  func.func @transform_4(%arg0: i32) -> i32 {
    %c0_i32 = arith.constant 0 : i32
    %c0_i32_0 = arith.constant 0 : i32
    return %c0_i32 : i32
  }
  func.func @transform_5(%arg0: i32) -> (i32, i32, i32, i32) {
    %c0_i32 = arith.constant 0 : i32
    %c0_i32_0 = arith.constant 0 : i32
    %c0_i32_1 = arith.constant 0 : i32
    %c0_i32_2 = arith.constant 0 : i32
    return %c0_i32, %arg0, %c0_i32_0, %c0_i32_1 : i32, i32, i32, i32
  }
}

module attributes {stable_mosaic.version = 11 : i64} {
  func.func @_stage2_kernel(%arg0: i32, %arg1: memref<1x32x256xf32, #tpu.memory_space<vmem>>, %arg2: memref<1x32x256xf32, #tpu.memory_space<vmem>>, %arg3: memref<32x32xf32, #tpu.memory_space<vmem>>, %arg4: memref<32x1xf32, #tpu.memory_space<vmem>>, %arg5: memref<8x32xf32, #tpu.memory_space<vmem>>, %arg6: memref<32x8xf32, #tpu.memory_space<vmem>>, %arg7: memref<1x32x256xf32, #tpu.memory_space<vmem>>) attributes {dimension_semantics = [#tpu.dimension_semantics<parallel>], iteration_bounds = array<i64: 2>, scalar_prefetch = 0 : i64, scratch_operands = 0 : i64, tpu.core_type = #tpu.core_type<tc>, window_params = [{transform_indices = @transform_0, window_bounds = array<i64: 1, 32, 256>}, {transform_indices = @transform_1, window_bounds = array<i64: 1, 32, 256>}, {pipeline_mode = #tpu.pipeline_mode<synchronous>, transform_indices = @transform_2, window_bounds = array<i64: 32, 32>}, {pipeline_mode = #tpu.pipeline_mode<synchronous>, transform_indices = @transform_3, window_bounds = array<i64: 32, 1>}, {pipeline_mode = #tpu.pipeline_mode<synchronous>, transform_indices = @transform_4, window_bounds = array<i64: 8, 32>}, {pipeline_mode = #tpu.pipeline_mode<synchronous>, transform_indices = @transform_5, window_bounds = array<i64: 32, 8>}, {transform_indices = @transform_6, window_bounds = array<i64: 1, 32, 256>}]} {
    %c0 = arith.constant 0 : index
    %c0_0 = arith.constant 0 : index
    %c0_1 = arith.constant 0 : index
    %0 = vector.load %arg2[%c0, %c0_0, %c0_1] : memref<1x32x256xf32, #tpu.memory_space<vmem>>, vector<1x32x256xf32>
    %1 = vector.shape_cast %0 : vector<1x32x256xf32> to vector<32x256xf32>
    %c0_2 = arith.constant 0 : index
    %c0_3 = arith.constant 0 : index
    %c0_4 = arith.constant 0 : index
    %2 = vector.load %arg1[%c0_2, %c0_3, %c0_4] : memref<1x32x256xf32, #tpu.memory_space<vmem>>, vector<1x32x256xf32>
    %3 = vector.shape_cast %2 : vector<1x32x256xf32> to vector<32x256xf32>
    %cst = arith.constant dense<0.000000e+00> : vector<32xf32>
    %4 = vector.multi_reduction <add>, %1, %cst [1] : vector<32x256xf32> to vector<32xf32>
    %5 = vector.shape_cast %4 : vector<32xf32> to vector<32x1xf32>
    %cst_5 = arith.constant 2.560000e+02 : f32
    %6 = vector.broadcast %cst_5 : f32 to vector<32x1xf32>
    %7 = arith.divf %5, %6 : vector<32x1xf32>
    %c0_6 = arith.constant 0 : index
    %c0_7 = arith.constant 0 : index
    %8 = vector.load %arg5[%c0_6, %c0_7] : memref<8x32xf32, #tpu.memory_space<vmem>>, vector<8x32xf32>
    %cst_8 = arith.constant dense<0.000000e+00> : vector<8x1xf32>
    %9 = tpu.matmul %8, %7, %cst_8 {dimension_numbers = #tpu.dot_dimension_numbers<[1], [0], [0], [1], [0, 0, 1, 1], [], []>} : vector<8x32xf32>, vector<32x1xf32>, vector<8x1xf32> -> vector<8x1xf32>
    %cst_9 = arith.constant 0.000000e+00 : f32
    %10 = vector.broadcast %cst_9 : f32 to vector<8x1xf32>
    %11 = arith.maximumf %9, %10 : vector<8x1xf32>
    %c0_10 = arith.constant 0 : index
    %c0_11 = arith.constant 0 : index
    %12 = vector.load %arg6[%c0_10, %c0_11] : memref<32x8xf32, #tpu.memory_space<vmem>>, vector<32x8xf32>
    %cst_12 = arith.constant dense<0.000000e+00> : vector<32x1xf32>
    %13 = tpu.matmul %12, %11, %cst_12 {dimension_numbers = #tpu.dot_dimension_numbers<[1], [0], [0], [1], [0, 0, 1, 1], [], []>} : vector<32x8xf32>, vector<8x1xf32>, vector<32x1xf32> -> vector<32x1xf32>
    %cst_13 = arith.constant 0.000000e+00 : f32
    %14 = vector.broadcast %cst_13 : f32 to vector<32x1xf32>
    %15 = arith.subf %14, %13 : vector<32x1xf32>
    %16 = math.exp %15 : vector<32x1xf32>
    %cst_14 = arith.constant 1.000000e+00 : f32
    %17 = vector.broadcast %cst_14 : f32 to vector<32x1xf32>
    %18 = arith.addf %17, %16 : vector<32x1xf32>
    %cst_15 = arith.constant 1.000000e+00 : f32
    %19 = vector.broadcast %cst_15 : f32 to vector<32x1xf32>
    %20 = arith.divf %19, %18 : vector<32x1xf32>
    %c0_16 = arith.constant 0 : index
    %c0_17 = arith.constant 0 : index
    %21 = vector.load %arg3[%c0_16, %c0_17] : memref<32x32xf32, #tpu.memory_space<vmem>>, vector<32x32xf32>
    %cst_18 = arith.constant dense<0.000000e+00> : vector<32x256xf32>
    %22 = tpu.matmul %21, %3, %cst_18 {dimension_numbers = #tpu.dot_dimension_numbers<[1], [0], [0], [1], [0, 0, 1, 1], [], []>} : vector<32x32xf32>, vector<32x256xf32>, vector<32x256xf32> -> vector<32x256xf32>
    %c0_19 = arith.constant 0 : index
    %c0_20 = arith.constant 0 : index
    %23 = vector.load %arg4[%c0_19, %c0_20] : memref<32x1xf32, #tpu.memory_space<vmem>>, vector<32x1xf32>
    %24 = vector.broadcast %23 : vector<32x1xf32> to vector<32x256xf32>
    %25 = arith.addf %22, %24 : vector<32x256xf32>
    %26 = vector.broadcast %20 : vector<32x1xf32> to vector<32x256xf32>
    %27 = arith.mulf %26, %25 : vector<32x256xf32>
    %28 = arith.mulf %27, %1 : vector<32x256xf32>
    %c0_21 = arith.constant 0 : index
    %c0_22 = arith.constant 0 : index
    %c0_23 = arith.constant 0 : index
    %29 = vector.load %arg7[%c0_21, %c0_22, %c0_23] : memref<1x32x256xf32, #tpu.memory_space<vmem>>, vector<1x32x256xf32>
    %30 = vector.shape_cast %29 : vector<1x32x256xf32> to vector<32x256xf32>
    %31 = vector.shape_cast %28 : vector<32x256xf32> to vector<1x32x256xf32>
    tpu.vector_store %arg7[%c0_21, %c0_22, %c0_23], %31 {strides = array<i32>} : memref<1x32x256xf32, #tpu.memory_space<vmem>>, vector<1x32x256xf32>,
    return
  }
  func.func @transform_0(%arg0: i32) -> (i32, i32, i32) {
    %c0_i32 = arith.constant 0 : i32
    %c0_i32_0 = arith.constant 0 : i32
    %c0_i32_1 = arith.constant 0 : i32
    return %arg0, %c0_i32, %c0_i32_0 : i32, i32, i32
  }
  func.func @transform_1(%arg0: i32) -> (i32, i32, i32) {
    %c0_i32 = arith.constant 0 : i32
    %c0_i32_0 = arith.constant 0 : i32
    %c0_i32_1 = arith.constant 0 : i32
    return %arg0, %c0_i32, %c0_i32_0 : i32, i32, i32
  }
  func.func @transform_2(%arg0: i32) -> (i32, i32) {
    %c0_i32 = arith.constant 0 : i32
    %c0_i32_0 = arith.constant 0 : i32
    %c0_i32_1 = arith.constant 0 : i32
    return %c0_i32, %c0_i32_0 : i32, i32
  }
  func.func @transform_3(%arg0: i32) -> (i32, i32) {
    %c0_i32 = arith.constant 0 : i32
    %c0_i32_0 = arith.constant 0 : i32
    %c0_i32_1 = arith.constant 0 : i32
    return %c0_i32, %c0_i32_0 : i32, i32
  }
  func.func @transform_4(%arg0: i32) -> (i32, i32) {
    %c0_i32 = arith.constant 0 : i32
    %c0_i32_0 = arith.constant 0 : i32
    %c0_i32_1 = arith.constant 0 : i32
    return %c0_i32, %c0_i32_0 : i32, i32
  }
  func.func @transform_5(%arg0: i32) -> (i32, i32) {
    %c0_i32 = arith.constant 0 : i32
    %c0_i32_0 = arith.constant 0 : i32
    %c0_i32_1 = arith.constant 0 : i32
    return %c0_i32, %c0_i32_0 : i32, i32
  }
  func.func @transform_6(%arg0: i32) -> (i32, i32, i32) {
    %c0_i32 = arith.constant 0 : i32
    %c0_i32_0 = arith.constant 0 : i32
    %c0_i32_1 = arith.constant 0 : i32
    return %arg0, %c0_i32, %c0_i32_0 : i32, i32, i32
  }
}

</mosaic_0001>

<llo_original>
// kernel: temporal_attention.3
$region0: #{temporal_attention.3}
  #allocation0 [shape = 'u32[]', space=smem, size = 0x4, offset = 0x4, fixed_abs, tag = 'smem constant byte address 0x4 - core index']
  #allocation1 [shape = 'u32[72,128]{1,0:T(1,128)}', space=vmem, size = 0x9000, scoped, tag = 'internal scratch']
  %s0 = inlined_call_operand.vmem [shape: f32[2,32,256], index: 0, kind: input, shape index: {}]
  %s1 = inlined_call_operand.vmem [shape: f32[2,32,256], index: 1, kind: input, shape index: {}]
  %s2 = inlined_call_operand.vmem [shape: f32[32,32], index: 2, kind: input, shape index: {}]
  %s3 = inlined_call_operand.vmem [shape: f32[32,1], index: 3, kind: input, shape index: {}]
  %s4 = inlined_call_operand.vmem [shape: f32[8,32], index: 4, kind: input, shape index: {}]
  %s5 = inlined_call_operand.vmem [shape: f32[32,8], index: 5, kind: input, shape index: {}]
  %s6 = inlined_call_operand.vmem [shape: f32[2,32,256], index: 6, kind: output, shape index: {}]
  %s7 = sld [smem:[#allocation0]]
  $region57: #{temporal_attention.3} parent=0
    _
  %s9 = ssub.s32 1, %s7
  %s10 = scalar_select 0, %s9, %s7
  loop: start=0, step=1, limit=4
  $region2: #{temporal_attention.3} parent=0 // loop_pre_header
    _
  $region3: #{temporal_attention.3} parent=0 // loop_header
    %s12 = sphi 0, %s16
    %p13 = scmp.ge.s32.totalorder %s12, 4
    %s22 = sphi 0, %s24
    %s25 = sphi 0, %s22
    %s26 = sphi 0, %s25
    %s42 = sphi 0, %s26
    %s48 = sphi 0, %s50
    %s51 = sphi 0, %s48
    %s52 = sphi 0, %s51
    %s68 = sphi 0, %s52
    %s72 = sphi 0, %s72
    %s74 = sphi 0, %s72
    %s75 = sphi 0, %s74
    %s89 = sphi 0, %s75
    %s93 = sphi 0, %s93
    %s95 = sphi 0, %s93
    %s96 = sphi 0, %s95
    %s110 = sphi 0, %s96
    %s114 = sphi 0, %s114
    %s116 = sphi 0, %s114
    %s117 = sphi 0, %s116
    %s131 = sphi 0, %s117
    %s135 = sphi 0, %s135
    %s137 = sphi 0, %s135
    %s138 = sphi 0, %s137
    %s152 = sphi 0, %s138
    %s158 = sphi 0, %s160
    %s161 = sphi 0, %s158
    %s162 = sphi 0, %s161
    %s178 = sphi 0, %s162
  $region4: #{temporal_attention.3} parent=0 // loop_header_branch
    %15 = sbr.rel (%p13) target = $region8
  $region5: #{temporal_attention.3} parent=0 // loop_body
    %s17 = ssub.s32 %s12, 1
    %s18 = ssub.s32 %s12, 2
    %s19 = sadd.s32 %s12, 1
    %s20 = ssub.s32 %s12, %s19
    %p21 = scmp.eq.s32.totalorder %s20, 0
    %s23 = sadd.s32 %s22, 1
    %s24 = scalar_select %p21, %s22, %s23
    %p27 = pneg %p21
    %p28 = scmp.eq.s32.totalorder %s12, 1
    %p29 = por %p27, %p28
    %p30 = scmp.ne.s32.totalorder %s22, %s25
    %p31 = scmp.eq.s32.totalorder %s12, 0
    %p32 = por %p30, %p31
    %p33 = scmp.ne.s32.totalorder %s22, %s25
    %p34 = scmp.eq.s32.totalorder %s17, 1
    %p35 = por %p33, %p34
    %p36 = scmp.ne.s32.totalorder %s25, %s26
    %p37 = scmp.eq.s32.totalorder %s17, 0
    %p38 = por %p36, %p37
    %p39 = scmp.ne.s32.totalorder %s25, %s26
    %p40 = scmp.eq.s32.totalorder %s18, 1
    %p41 = por %p39, %p40
    %p43 = scmp.ne.s32.totalorder %s26, %s42
    %p44 = scmp.eq.s32.totalorder %s18, 0
    %p45 = por %p43, %p44
    %s46 = ssub.s32 %s12, %s19
    %p47 = scmp.eq.s32.totalorder %s46, 0
    %s49 = sadd.s32 %s48, 1
    %s50 = scalar_select %p47, %s48, %s49
    %p53 = pneg %p47
    %p54 = scmp.eq.s32.totalorder %s12, 1
    %p55 = por %p53, %p54
    %p56 = scmp.ne.s32.totalorder %s48, %s51
    %p57 = scmp.eq.s32.totalorder %s12, 0
    %p58 = por %p56, %p57
    %p59 = scmp.ne.s32.totalorder %s48, %s51
    %p60 = scmp.eq.s32.totalorder %s17, 1
    %p61 = por %p59, %p60
    %p62 = scmp.ne.s32.totalorder %s51, %s52
    %p63 = scmp.eq.s32.totalorder %s17, 0
    %p64 = por %p62, %p63
    %p65 = scmp.ne.s32.totalorder %s51, %s52
    %p66 = scmp.eq.s32.totalorder %s18, 1
    %p67 = por %p65, %p66
    %p69 = scmp.ne.s32.totalorder %s52, %s68
    %p70 = scmp.eq.s32.totalorder %s18, 0
    %p71 = por %p69, %p70
    %s73 = sadd.s32 %s72, 1
    %p76 = scmp.eq.s32.totalorder %s12, 1
    %p77 = scmp.ne.s32.totalorder %s72, %s74
    %p78 = scmp.eq.s32.totalorder %s12, 0
    %p79 = por %p77, %p78
    %p80 = scmp.ne.s32.totalorder %s72, %s74
    %p81 = scmp.eq.s32.totalorder %s17, 1
    %p82 = por %p80, %p81
    %p83 = scmp.ne.s32.totalorder %s74, %s75
    %p84 = scmp.eq.s32.totalorder %s17, 0
    %p85 = por %p83, %p84
    %p86 = scmp.ne.s32.totalorder %s74, %s75
    %p87 = scmp.eq.s32.totalorder %s18, 1
    %p88 = por %p86, %p87
    %p90 = scmp.ne.s32.totalorder %s75, %s89
    %p91 = scmp.eq.s32.totalorder %s18, 0
    %p92 = por %p90, %p91
    %s94 = sadd.s32 %s93, 1
    %p97 = scmp.eq.s32.totalorder %s12, 1
    %p98 = scmp.ne.s32.totalorder %s93, %s95
    %p99 = scmp.eq.s32.totalorder %s12, 0
    %p100 = por %p98, %p99
    %p101 = scmp.ne.s32.totalorder %s93, %s95
    %p102 = scmp.eq.s32.totalorder %s17, 1
    %p103 = por %p101, %p102
    %p104 = scmp.ne.s32.totalorder %s95, %s96
    %p105 = scmp.eq.s32.totalorder %s17, 0
    %p106 = por %p104, %p105
    %p107 = scmp.ne.s32.totalorder %s95, %s96
    %p108 = scmp.eq.s32.totalorder %s18, 1
    %p109 = por %p107, %p108
    %p111 = scmp.ne.s32.totalorder %s96, %s110
    %p112 = scmp.eq.s32.totalorder %s18, 0
    %p113 = por %p111, %p112
    %s115 = sadd.s32 %s114, 1
    %p118 = scmp.eq.s32.totalorder %s12, 1
    %p119 = scmp.ne.s32.totalorder %s114, %s116
    %p120 = scmp.eq.s32.totalorder %s12, 0
    %p121 = por %p119, %p120
    %p122 = scmp.ne.s32.totalorder %s114, %s116
    %p123 = scmp.eq.s32.totalorder %s17, 1
    %p124 = por %p122, %p123
    %p125 = scmp.ne.s32.totalorder %s116, %s117
    %p126 = scmp.eq.s32.totalorder %s17, 0
    %p127 = por %p125, %p126
    %p128 = scmp.ne.s32.totalorder %s116, %s117
    %p129 = scmp.eq.s32.totalorder %s18, 1
    %p130 = por %p128, %p129
    %p132 = scmp.ne.s32.totalorder %s117, %s131
    %p133 = scmp.eq.s32.totalorder %s18, 0
    %p134 = por %p132, %p133
    %s136 = sadd.s32 %s135, 1
    %p139 = scmp.eq.s32.totalorder %s12, 1
    %p140 = scmp.ne.s32.totalorder %s135, %s137
    %p141 = scmp.eq.s32.totalorder %s12, 0
    %p142 = por %p140, %p141
    %p143 = scmp.ne.s32.totalorder %s135, %s137
    %p144 = scmp.eq.s32.totalorder %s17, 1
    %p145 = por %p143, %p144
    %p146 = scmp.ne.s32.totalorder %s137, %s138
    %p147 = scmp.eq.s32.totalorder %s17, 0
    %p148 = por %p146, %p147
    %p149 = scmp.ne.s32.totalorder %s137, %s138
    %p150 = scmp.eq.s32.totalorder %s18, 1
    %p151 = por %p149, %p150
    %p153 = scmp.ne.s32.totalorder %s138, %s152
    %p154 = scmp.eq.s32.totalorder %s18, 0
    %p155 = por %p153, %p154
    %s156 = ssub.s32 %s12, %s19
    %p157 = scmp.eq.s32.totalorder %s156, 0
    %s159 = sadd.s32 %s158, 1
    %s160 = scalar_select %p157, %s158, %s159
    %p163 = pneg %p157
    %p164 = scmp.eq.s32.totalorder %s12, 1
    %p165 = por %p163, %p164
    %p166 = scmp.ne.s32.totalorder %s158, %s161
    %p167 = scmp.eq.s32.totalorder %s12, 0
    %p168 = por %p166, %p167
    %p169 = scmp.ne.s32.totalorder %s158, %s161
    %p170 = scmp.eq.s32.totalorder %s17, 1
    %p171 = por %p169, %p170
    %p172 = scmp.ne.s32.totalorder %s161, %s162
    %p173 = scmp.eq.s32.totalorder %s17, 0
    %p174 = por %p172, %p173
    %p175 = scmp.ne.s32.totalorder %s161, %s162
    %p176 = scmp.eq.s32.totalorder %s18, 1
    %p177 = por %p175, %p176
    %p179 = scmp.ne.s32.totalorder %s162, %s178
    %p180 = scmp.eq.s32.totalorder %s18, 0
    %p181 = por %p179, %p180
    %p182 = scmp.le.s32.totalorder 1, %s12
    %p183 = scmp.lt.s32.totalorder %s12, 3
    %p184 = pnand %p182, %p183
    %p185 = pneg %p184
    // Predicated region
    $region9: #{temporal_attention.3} parent=5 // pred_check
      _
    $region10: #{temporal_attention.3} parent=5 // pred_check_branch
      %187 = sbr.rel (%p184) target = $region12
    $region11: #{temporal_attention.3} parent=5 // pred_region
      %s188 = ssub.s32 %s12, 1
      // Predicated region
      $region13: #{temporal_attention.3} parent=11 // pred_check
        %p189 = pneg %p85
      $region14: #{temporal_attention.3} parent=11 // pred_check_branch
        %191 = sbr.rel (%p189) target = $region16
      $region15: #{temporal_attention.3} parent=11 // pred_region
        _
      $region16: #{temporal_attention.3} parent=11 // pred_fallthru
        _
      // Predicated region
      $region17: #{temporal_attention.3} parent=11 // pred_check
        %p192 = pneg %p106
      $region18: #{temporal_attention.3} parent=11 // pred_check_branch
        %194 = sbr.rel (%p192) target = $region20
      $region19: #{temporal_attention.3} parent=11 // pred_region
        _
      $region20: #{temporal_attention.3} parent=11 // pred_fallthru
        _
      // Predicated region
      $region21: #{temporal_attention.3} parent=11 // pred_check
        %p195 = pneg %p127
      $region22: #{temporal_attention.3} parent=11 // pred_check_branch
        %197 = sbr.rel (%p195) target = $region24
      $region23: #{temporal_attention.3} parent=11 // pred_region
        _
      $region24: #{temporal_attention.3} parent=11 // pred_fallthru
        _
      // Predicated region
      $region25: #{temporal_attention.3} parent=11 // pred_check
        %p198 = pneg %p148
      $region26: #{temporal_attention.3} parent=11 // pred_check_branch
        %200 = sbr.rel (%p198) target = $region28
      $region27: #{temporal_attention.3} parent=11 // pred_region
        _
      $region28: #{temporal_attention.3} parent=11 // pred_fallthru
        _
    $region12: #{temporal_attention.3} parent=5 // pred_fallthru
      _
    %p201 = scmp.lt.s32.totalorder %s12, 2
    // Predicated region
    $region29: #{temporal_attention.3} parent=5 // pred_check
      %p202 = pneg %p201
    $region30: #{temporal_attention.3} parent=5 // pred_check_branch
      %204 = sbr.rel (%p202) target = $region32
    $region31: #{temporal_attention.3} parent=5 // pred_region
      // Predicated region
      $region33: #{temporal_attention.3} parent=31 // pred_check
        %p205 = pneg %p32
      $region34: #{temporal_attention.3} parent=31 // pred_check_branch
        %207 = sbr.rel (%p205) target = $region36
      $region35: #{temporal_attention.3} parent=31 // pred_region
        %p208 = scmp.lt.s32.totalorder %s12, 1
        %s209 = scalar_select %p208, %s12, 1
        %s210 = smul.addr %s209, 8
        %s211 = smul.addr %s210, 8
        %s212 = scalar_lea.vmem %s0, %s211
      $region36: #{temporal_attention.3} parent=31 // pred_fallthru
        _
      // Predicated region
      $region37: #{temporal_attention.3} parent=31 // pred_check
        %p213 = pneg %p58
      $region38: #{temporal_attention.3} parent=31 // pred_check_branch
        %215 = sbr.rel (%p213) target = $region40
      $region39: #{temporal_attention.3} parent=31 // pred_region
        %p216 = scmp.lt.s32.totalorder %s12, 1
        %s217 = scalar_select %p216, %s12, 1
        %s218 = smul.addr %s217, 8
        %s219 = smul.addr %s218, 8
        %s220 = scalar_lea.vmem %s1, %s219
      $region40: #{temporal_attention.3} parent=31 // pred_fallthru
        _
    $region32: #{temporal_attention.3} parent=5 // pred_fallthru
      _
    %p221 = scmp.le.s32.totalorder 1, %s12
    %p222 = scmp.lt.s32.totalorder %s12, 3
    %p223 = pnand %p221, %p222
    %p224 = pneg %p223
    // Predicated region
    $region41: #{temporal_attention.3} parent=5 // pred_check
      _
    $region42: #{temporal_attention.3} parent=5 // pred_check_branch
      %226 = sbr.rel (%p223) target = $region44
    $region43: #{temporal_attention.3} parent=5 // pred_region
      %s227 = ssub.s32 %s12, 1
      %p228 = scmp.lt.s32.totalorder %s17, 1
      %s229 = scalar_select %p228, %s17, 1
      %s230 = smul.addr %s229, 8
      %s231 = smul.addr %s230, 8
      %s232 = scalar_lea.vmem %s0, %s231
      %p233 = pneg %p38
      %p234 = pneg %p35
      %p235 = scmp.lt.s32.totalorder %s17, 1
      %s236 = scalar_select %p235, %s17, 1
      %s237 = smul.addr %s236, 8
      %s238 = smul.addr %s237, 8
      %s239 = scalar_lea.vmem %s1, %s238
      %p240 = pneg %p64
      %p241 = pneg %p61
      %p242 = pneg %p85
      %p243 = pneg %p82
      %p244 = pneg %p106
      %p245 = pneg %p103
      %p246 = pneg %p127
      %p247 = pneg %p124
      %p248 = pneg %p148
      %p249 = pneg %p145
      %p250 = pneg %p174
      %p251 = pneg %p171
      %p252 = scmp.lt.s32.totalorder %s17, 1
      %s253 = scalar_select %p252, %s17, 1
      %s254 = smul.addr %s253, 8
      %s255 = smul.addr %s254, 8
      %s256 = scalar_lea.vmem %s6, %s255
      %p257 = scmp.lt.s32.totalorder %s17, 1
      %s258 = scalar_select %p257, %s17, 1
      %s259 = smul.addr %s258, 8
      %s260 = smul.addr %s259, 8
      %s261 = scalar_lea.vmem %s0, %s260
      %p262 = scmp.lt.s32.totalorder %s17, 1
      %s263 = scalar_select %p262, %s17, 1
      %s264 = smul.addr %s263, 8
      %s265 = smul.addr %s264, 8
      %s266 = scalar_lea.vmem %s1, %s265
      %p267 = scmp.lt.s32.totalorder %s17, 1
      %s268 = scalar_select %p267, %s17, 1
      %s269 = smul.addr %s268, 8
      %s270 = smul.addr %s269, 8
      %s271 = scalar_lea.vmem %s6, %s270
      %v272 = vld [vmem:[%s266] sm:$0xff]
      %v273 = vld [vmem:[%s266 + $0x8] sm:$0xff]
      %v274 = vld [vmem:[%s266 + $0x10] sm:$0xff]
      %v275 = vld [vmem:[%s266 + $0x18] sm:$0xff]
      %v276 = vld [vmem:[%s266 + $0x20] sm:$0xff]
      %v277 = vld [vmem:[%s266 + $0x28] sm:$0xff]
      %v278 = vld [vmem:[%s266 + $0x30] sm:$0xff]
      %v279 = vld [vmem:[%s266 + $0x38] sm:$0xff]
      %v280 = vld [vmem:[%s261] sm:$0xff]
      %v281 = vld [vmem:[%s261 + $0x8] sm:$0xff]
      %v282 = vld [vmem:[%s261 + $0x10] sm:$0xff]
      %v283 = vld [vmem:[%s261 + $0x18] sm:$0xff]
      %v284 = vld [vmem:[%s261 + $0x20] sm:$0xff]
      %v285 = vld [vmem:[%s261 + $0x28] sm:$0xff]
      %v286 = vld [vmem:[%s261 + $0x30] sm:$0xff]
      %v287 = vld [vmem:[%s261 + $0x38] sm:$0xff]
      %v288 = vadd.f32 %v272, %v273
      %289 = vadd.xlane.f32.xlu0 %v288
      %v290 = vpop.xlane.xlu0 %289
      %v291 = vadd.f32 %v274, %v275
      %292 = vadd.xlane.f32.xlu0 %v291
      %v293 = vpop.xlane.xlu0 %292
      %v294 = vadd.f32 %v276, %v277
      %295 = vadd.xlane.f32.xlu0 %v294
      %v296 = vpop.xlane.xlu0 %295
      %v297 = vadd.f32 %v278, %v279
      %298 = vadd.xlane.f32.xlu0 %v297
      %v299 = vpop.xlane.xlu0 %298
      %v300 = vrcp.pop 256.0
      %v301 = vmul.f32 256.0, %v300
      %v302 = vsub.f32 1.0, %v301
      %v303 = vmul.f32 %v300, %v302
      %v304 = vadd.f32 %v300, %v303
      %vm305 = vweird.f32 %v300
      %v306 = vsel %vm305, %v300, %v304
      %v307 = vmul.f32 %v290, %v306
      %v308 = vmul.f32 %v293, %v306
      %v309 = vmul.f32 %v296, %v306
      %v310 = vmul.f32 %v299, %v306
      %v311 = vld [vmem:[%s4] sm:$0xff]
      %vm312 = vcmask 261120
      %v314 = vsel %vm312, %v311, 0
      %316 = vmatpush.msra.mxu0 0.0
      %317 = vmatpush.msra.mxu0 0.0
      %318 = vmatpush.msra.mxu0 0.0
      %319 = vmatpush.msra.mxu0 0.0
      %320 = vmatpush.msra.mxu0 0.0
      %321 = vmatpush.msra.mxu0 0.0
      %322 = vmatpush.msra.mxu0 0.0
      %323 = vmatpush.msra.mxu0 0.0
      %324 = vmatpush.msra.mxu0 0.0
      %325 = vmatpush.msra.mxu0 0.0
      %326 = vmatpush.msra.mxu0 0.0
      %327 = vmatpush.msra.mxu0 0.0
      %328 = vmatpush.msra.mxu0 %v310
      %329 = vmatpush.msra.mxu0 %v309
      %330 = vmatpush.msra.mxu0 %v308
      %331 = vmatpush.msra.mxu0 %v307
      %332 = vmatmul.f32.gmra.mxu0 %v314
      %v333 = vpop.f32.mrf.mxu0
      %v334 = vadd.f32 0.0, %v333
      %335 = vdwg.mxu0
      %v336 = vmax.f32 %v334, 0.0
      %v337 = vld [vmem:[%s5] sm:$0xff]
      %v338 = vld [vmem:[%s5 + $0x8] sm:$0xff]
      %v339 = vld [vmem:[%s5 + $0x10] sm:$0xff]
      %v340 = vld [vmem:[%s5 + $0x18] sm:$0xff]
      %vm341 = vcmask 64512
      %v343 = vsel %vm341, %v337, 0
      %v346 = vsel %vm341, %v338, 0
      %v349 = vsel %vm341, %v339, 0
      %v352 = vsel %vm341, %v340, 0
      %354 = vmatpush.msra.mxu0 0.0
      %355 = vmatpush.msra.mxu0 0.0
      %356 = vmatpush.msra.mxu0 0.0
      %357 = vmatpush.msra.mxu0 0.0
      %358 = vmatpush.msra.mxu0 0.0
      %359 = vmatpush.msra.mxu0 0.0
      %360 = vmatpush.msra.mxu0 0.0
      %361 = vmatpush.msra.mxu0 0.0
      %362 = vmatpush.msra.mxu0 0.0
      %363 = vmatpush.msra.mxu0 0.0
      %364 = vmatpush.msra.mxu0 0.0
      %365 = vmatpush.msra.mxu0 0.0
      %366 = vmatpush.msra.mxu0 0.0
      %367 = vmatpush.msra.mxu0 0.0
      %368 = vmatpush.msra.mxu0 0.0
      %369 = vmatpush.msra.mxu0 %v336
      %370 = vmatmul.f32.gmra.mxu0 %v343
      %v371 = vpop.f32.mrf.mxu0
      %v372 = vadd.f32 0.0, %v371
      %373 = vmatmul.f32.gmra.mxu0 %v346
      %v374 = vpop.f32.mrf.mxu0
      %v375 = vadd.f32 0.0, %v374
      %376 = vmatmul.f32.gmra.mxu0 %v349
      %v377 = vpop.f32.mrf.mxu0
      %v378 = vadd.f32 0.0, %v377
      %379 = vmatmul.f32.gmra.mxu0 %v352
      %v380 = vpop.f32.mrf.mxu0
      %v381 = vadd.f32 0.0, %v380
      %382 = vdwg.mxu0
      %v383 = vsub.f32 0.0, %v372
      %v384 = vsub.f32 0.0, %v375
      %v385 = vsub.f32 0.0, %v378
      %v386 = vsub.f32 0.0, %v381
      %v387 = vmul.f32 %v383, 1.442695
      %v388 = vpow.pop %v387
      %v389 = vmul.f32 %v384, 1.442695
      %v390 = vpow.pop %v389
      %v391 = vmul.f32 %v385, 1.442695
      %v392 = vpow.pop %v391
      %v393 = vmul.f32 %v386, 1.442695
      %v394 = vpow.pop %v393
      %v395 = vadd.f32 %v388, 1.0
      %v396 = vadd.f32 %v390, 1.0
      %v397 = vadd.f32 %v392, 1.0
      %v398 = vadd.f32 %v394, 1.0
      %v399 = vrcp.pop %v395
      %v400 = vmul.f32 %v395, %v399
      %v401 = vsub.f32 1.0, %v400
      %v402 = vmul.f32 %v399, %v401
      %v403 = vadd.f32 %v399, %v402
      %vm404 = vweird.f32 %v395
      %vm405 = vweird.f32 %v399
      %vm406 = vmor %vm404, %vm405
      %v407 = vsel %vm406, %v399, %v403
      %v408 = vand.u32 2147483647, %v395
      %vm409 = vcmp.eq.f32.partialorder %v408, 8.507059e+37
      %v410 = vand.u32 %v395, 2147483648
      %v411 = vor.u32 1.1754944e-38, %v410
      %v412 = vsel %vm409, %v411, %v407
      %v413 = vmul.f32 1.0, %v412
      %v414 = vrcp.pop %v396
      %v415 = vmul.f32 %v396, %v414
      %v416 = vsub.f32 1.0, %v415
      %v417 = vmul.f32 %v414, %v416
      %v418 = vadd.f32 %v414, %v417
      %vm419 = vweird.f32 %v396
      %vm420 = vweird.f32 %v414
      %vm421 = vmor %vm419, %vm420
      %v422 = vsel %vm421, %v414, %v418
      %v423 = vand.u32 2147483647, %v396
      %vm424 = vcmp.eq.f32.partialorder %v423, 8.507059e+37
      %v425 = vand.u32 %v396, 2147483648
      %v426 = vor.u32 1.1754944e-38, %v425
      %v427 = vsel %vm424, %v426, %v422
      %v428 = vmul.f32 1.0, %v427
      %v429 = vrcp.pop %v397
      %v430 = vmul.f32 %v397, %v429
      %v431 = vsub.f32 1.0, %v430
      %v432 = vmul.f32 %v429, %v431
      %v433 = vadd.f32 %v429, %v432
      %vm434 = vweird.f32 %v397
      %vm435 = vweird.f32 %v429
      %vm436 = vmor %vm434, %vm435
      %v437 = vsel %vm436, %v429, %v433
      %v438 = vand.u32 2147483647, %v397
      %vm439 = vcmp.eq.f32.partialorder %v438, 8.507059e+37
      %v440 = vand.u32 %v397, 2147483648
      %v441 = vor.u32 1.1754944e-38, %v440
      %v442 = vsel %vm439, %v441, %v437
      %v443 = vmul.f32 1.0, %v442
      %v444 = vrcp.pop %v398
      %v445 = vmul.f32 %v398, %v444
      %v446 = vsub.f32 1.0, %v445
      %v447 = vmul.f32 %v444, %v446
      %v448 = vadd.f32 %v444, %v447
      %vm449 = vweird.f32 %v398
      %vm450 = vweird.f32 %v444
      %vm451 = vmor %vm449, %vm450
      %v452 = vsel %vm451, %v444, %v448
      %v453 = vand.u32 2147483647, %v398
      %vm454 = vcmp.eq.f32.partialorder %v453, 8.507059e+37
      %v455 = vand.u32 %v398, 2147483648
      %v456 = vor.u32 1.1754944e-38, %v455
      %v457 = vsel %vm454, %v456, %v452
      %v458 = vmul.f32 1.0, %v457
      %v459 = vld [vmem:[%s2] sm:$0xff]
      %v460 = vld [vmem:[%s2 + $0x8] sm:$0xff]
      %v461 = vld [vmem:[%s2 + $0x10] sm:$0xff]
      %v462 = vld [vmem:[%s2 + $0x18] sm:$0xff]
      %v463 = vld [vmem:[%s3] sm:$0xff]
      %v464 = vld [vmem:[%s3 + $0x8] sm:$0xff]
      %v465 = vld [vmem:[%s3 + $0x10] sm:$0xff]
      %v466 = vld [vmem:[%s3 + $0x18] sm:$0xff]
      %468 = vset.pattern.permute.xlu0 0
      %469 = vperm.xlu0 %468, %v463
      %v470 = vpop.permute.xlu0 %469
      %473 = vset.pattern.permute.xlu0 0
      %474 = vperm.xlu0 %473, %v464
      %v475 = vpop.permute.xlu0 %474
      %478 = vset.pattern.permute.xlu0 0
      %479 = vperm.xlu0 %478, %v465
      %v480 = vpop.permute.xlu0 %479
      %483 = vset.pattern.permute.xlu0 0
      %484 = vperm.xlu0 %483, %v466
      %v485 = vpop.permute.xlu0 %484
      %v488 = vsel %vm312, %v459, 0
      %v491 = vsel %vm312, %v460, 0
      %v494 = vsel %vm312, %v461, 0
      %v497 = vsel %vm312, %v462, 0
      %499 = vmatpush.msra.mxu0 0.0
      %500 = vmatpush.msra.mxu0 0.0
      %501 = vmatpush.msra.mxu0 0.0
      %502 = vmatpush.msra.mxu0 0.0
      %503 = vmatpush.msra.mxu0 0.0
      %504 = vmatpush.msra.mxu0 0.0
      %505 = vmatpush.msra.mxu0 0.0
      %506 = vmatpush.msra.mxu0 0.0
      %507 = vmatpush.msra.mxu0 0.0
      %508 = vmatpush.msra.mxu0 0.0
      %509 = vmatpush.msra.mxu0 0.0
      %510 = vmatpush.msra.mxu0 0.0
      %511 = vmatpush.msra.mxu0 %v286
      %512 = vmatpush.msra.mxu0 %v284
      %513 = vmatpush.msra.mxu0 %v282
      %514 = vmatpush.msra.mxu0 %v280
      %515 = vmatmul.f32.gmra.mxu0 %v488
      %v516 = vpop.f32.mrf.mxu0
      %v517 = vadd.f32 %v470, %v516
      %518 = vmatmul.f32.gmra.mxu0 %v491
      %v519 = vpop.f32.mrf.mxu0
      %v520 = vadd.f32 %v475, %v519
      %521 = vmatmul.f32.gmra.mxu0 %v494
      %v522 = vpop.f32.mrf.mxu0
      %v523 = vadd.f32 %v480, %v522
      %524 = vmatmul.f32.gmra.mxu0 %v497
      %v525 = vpop.f32.mrf.mxu0
      %v526 = vadd.f32 %v485, %v525
      %527 = vdwg.mxu0
      %528 = vmatpush.msra.mxu0 0.0
      %529 = vmatpush.msra.mxu0 0.0
      %530 = vmatpush.msra.mxu0 0.0
      %531 = vmatpush.msra.mxu0 0.0
      %532 = vmatpush.msra.mxu0 0.0
      %533 = vmatpush.msra.mxu0 0.0
      %534 = vmatpush.msra.mxu0 0.0
      %535 = vmatpush.msra.mxu0 0.0
      %536 = vmatpush.msra.mxu0 0.0
      %537 = vmatpush.msra.mxu0 0.0
      %538 = vmatpush.msra.mxu0 0.0
      %539 = vmatpush.msra.mxu0 0.0
      %540 = vmatpush.msra.mxu0 %v287
      %541 = vmatpush.msra.mxu0 %v285
      %542 = vmatpush.msra.mxu0 %v283
      %543 = vmatpush.msra.mxu0 %v281
      %544 = vmatmul.f32.gmra.mxu0 %v488
      %v545 = vpop.f32.mrf.mxu0
      %v546 = vadd.f32 %v470, %v545
      %547 = vmatmul.f32.gmra.mxu0 %v491
      %v548 = vpop.f32.mrf.mxu0
      %v549 = vadd.f32 %v475, %v548
      %550 = vmatmul.f32.gmra.mxu0 %v494
      %v551 = vpop.f32.mrf.mxu0
      %v552 = vadd.f32 %v480, %v551
      %553 = vmatmul.f32.gmra.mxu0 %v497
      %v554 = vpop.f32.mrf.mxu0
      %v555 = vadd.f32 %v485, %v554
      %556 = vdwg.mxu0
      %558 = vset.pattern.permute.xlu0 0
      %559 = vperm.xlu0 %558, %v413
      %v560 = vpop.permute.xlu0 %559
      %563 = vset.pattern.permute.xlu0 0
      %564 = vperm.xlu0 %563, %v428
      %v565 = vpop.permute.xlu0 %564
      %568 = vset.pattern.permute.xlu0 0
      %569 = vperm.xlu0 %568, %v443
      %v570 = vpop.permute.xlu0 %569
      %573 = vset.pattern.permute.xlu0 0
      %574 = vperm.xlu0 %573, %v458
      %v575 = vpop.permute.xlu0 %574
      %v577 = vmul.f32 %v560, %v517
      %v578 = vmul.f32 %v560, %v546
      %v579 = vmul.f32 %v565, %v520
      %v580 = vmul.f32 %v565, %v549
      %v581 = vmul.f32 %v570, %v523
      %v582 = vmul.f32 %v570, %v552
      %v583 = vmul.f32 %v575, %v526
      %v584 = vmul.f32 %v575, %v555
      %v585 = vmul.f32 %v577, %v272
      %v586 = vmul.f32 %v578, %v273
      %v587 = vmul.f32 %v579, %v274
      %v588 = vmul.f32 %v580, %v275
      %v589 = vmul.f32 %v581, %v276
      %v590 = vmul.f32 %v582, %v277
      %v591 = vmul.f32 %v583, %v278
      %v592 = vmul.f32 %v584, %v279
      %593 = vst [vmem:[%s271] sm:$0xff] %v585
      %594 = vst [vmem:[%s271 + $0x8] sm:$0xff] %v586
      %595 = vst [vmem:[%s271 + $0x10] sm:$0xff] %v587
      %596 = vst [vmem:[%s271 + $0x18] sm:$0xff] %v588
      %597 = vst [vmem:[%s271 + $0x20] sm:$0xff] %v589
      %598 = vst [vmem:[%s271 + $0x28] sm:$0xff] %v590
      %599 = vst [vmem:[%s271 + $0x30] sm:$0xff] %v591
      %600 = vst [vmem:[%s271 + $0x38] sm:$0xff] %v592
      %p601 = scmp.lt.s32.totalorder %s17, 1
      %s602 = scalar_select %p601, %s17, 1
      %s603 = smul.addr %s602, 8
      %s604 = smul.addr %s603, 8
      %s605 = scalar_lea.vmem %s6, %s604
      // Predicated region
      $region45: #{temporal_attention.3} parent=43 // pred_check
        %p606 = pneg %p171
      $region46: #{temporal_attention.3} parent=43 // pred_check_branch
        %608 = sbr.rel (%p606) target = $region48
      $region47: #{temporal_attention.3} parent=43 // pred_region
        _
      $region48: #{temporal_attention.3} parent=43 // pred_fallthru
        _
    $region44: #{temporal_attention.3} parent=5 // pred_fallthru
      _
    %p609 = scmp.le.s32.totalorder 2, %s12
    // Predicated region
    $region49: #{temporal_attention.3} parent=5 // pred_check
      %p610 = pneg %p609
    $region50: #{temporal_attention.3} parent=5 // pred_check_branch
      %612 = sbr.rel (%p610) target = $region52
    $region51: #{temporal_attention.3} parent=5 // pred_region
      %s613 = ssub.s32 %s12, 2
      // Predicated region
      $region53: #{temporal_attention.3} parent=51 // pred_check
        %p614 = pneg %p177
      $region54: #{temporal_attention.3} parent=51 // pred_check_branch
        %616 = sbr.rel (%p614) target = $region56
      $region55: #{temporal_attention.3} parent=51 // pred_region
        %p617 = scmp.lt.s32.totalorder %s18, 1
        %s618 = scalar_select %p617, %s18, 1
        %s619 = smul.addr %s618, 8
        %s620 = smul.addr %s619, 8
        %s621 = scalar_lea.vmem %s6, %s620
      $region56: #{temporal_attention.3} parent=51 // pred_fallthru
        _
    $region52: #{temporal_attention.3} parent=5 // pred_fallthru
      _
  $region6: #{temporal_attention.3} parent=0 // loop_footer
    %s16 = sadd.s32 1, %s12
  $region7: #{temporal_attention.3} parent=0 // loop_footer_branch
    %11 = sbr.rel target = $region3
  $region8: #{temporal_attention.3} parent=0 // loop_exit
    _

// kernel: temporal_attention.2
$region0: #{temporal_attention.2}
  #allocation0 [shape = 'u32[]', space=smem, size = 0x4, offset = 0x4, fixed_abs, tag = 'smem constant byte address 0x4 - core index']
  #allocation1 [shape = 'u32[72,128]{1,0:T(1,128)}', space=vmem, size = 0x9000, scoped, tag = 'internal scratch']
  #allocation2 [shape = 'f32[2,20,20]{2,1,0:T(8,128)}', space=vmem, size = 0x6000, scoped, tag = 'scratch operand']
  #allocation3 [shape = 'f32[2,34,34]{2,1,0:T(8,128)}', space=vmem, size = 0xa000, scoped, tag = 'scratch operand']
  %s0 = inlined_call_operand.vmem [shape: f32[2,32,16,16], index: 0, kind: input, shape index: {}]
  %s1 = inlined_call_operand.vmem [shape: f32[32,25], index: 1, kind: input, shape index: {}]
  %s2 = inlined_call_operand.vmem [shape: f32[32], index: 2, kind: input, shape index: {}]
  %s3 = inlined_call_operand.vmem [shape: f32[32,49], index: 3, kind: input, shape index: {}]
  %s4 = inlined_call_operand.vmem [shape: f32[32], index: 4, kind: input, shape index: {}]
  %s5 = inlined_call_operand.vmem [shape: f32[2,32,16,16], index: 5, kind: output, shape index: {}]
  %s6 = sld [smem:[#allocation0]]
  $region141: #{temporal_attention.2} parent=0
    _
  %s8 = ssub.s32 1, %s6
  %s9 = scalar_select 0, %s8, %s6
  $region1: #{temporal_attention.2} parent=0
    #allocation4 [shape = 'u8[32768]{0}', space=vmem, size = 0x8000, scoped, tag = 'input window, operand 0']
    #allocation5 [shape = 'u8[16384]{0}', space=smem, size = 0x4000, scoped, tag = 'input window, operand 1, single buffered']
    #allocation6 [shape = 's32[2]{0}', space=sflag, size = 0x8, scoped, tag = 'scoped memory for temporal_attention.2']
    #allocation7 [shape = 'u8[512]{0}', space=smem, size = 0x200, scoped, tag = 'input window, operand 2, single buffered']
    #allocation8 [shape = 's32[1]{0}', space=sflag, size = 0x4, scoped, tag = 'scoped memory for temporal_attention.2']
    #allocation9 [shape = 'u8[16384]{0}', space=smem, size = 0x4000, scoped, tag = 'input window, operand 3, single buffered']
    #allocation10 [shape = 'u8[512]{0}', space=smem, size = 0x200, scoped, tag = 'input window, operand 4, single buffered']
    #allocation11 [shape = 's32[1]{0}', space=sflag, size = 0x4, scoped, tag = 'scoped memory for temporal_attention.2']
    #allocation12 [shape = 'u8[32768]{0}', space=vmem, size = 0x8000, scoped, tag = 'output window, operand 0']
    %10 = vsyncpa [#allocation6], 0
    %11 = vsyncpa [#allocation8], 0
    %12 = vsyncpa [#allocation11], 0
    loop: start=0, step=1, limit=34
    $region2: #{temporal_attention.2} parent=1 // loop_pre_header
      _
    $region3: #{temporal_attention.2} parent=1 // loop_header
      %s14 = sphi 0, %s18
      %p15 = scmp.ge.s32.totalorder %s14, 34
      %s24 = sphi 0, %s26
      %s27 = sphi 0, %s24
      %s28 = sphi 0, %s27
      %s44 = sphi 0, %s28
      %s48 = sphi 0, %s48
      %s50 = sphi 0, %s48
      %s51 = sphi 0, %s50
      %s65 = sphi 0, %s51
      %s69 = sphi 0, %s69
      %s71 = sphi 0, %s69
      %s72 = sphi 0, %s71
      %s86 = sphi 0, %s72
      %s90 = sphi 0, %s90
      %s92 = sphi 0, %s90
      %s93 = sphi 0, %s92
      %s107 = sphi 0, %s93
      %s111 = sphi 0, %s111
      %s113 = sphi 0, %s111
      %s114 = sphi 0, %s113
      %s128 = sphi 0, %s114
      %s134 = sphi 0, %s136
      %s137 = sphi 0, %s134
      %s138 = sphi 0, %s137
      %s154 = sphi 0, %s138
    $region4: #{temporal_attention.2} parent=1 // loop_header_branch
      %17 = sbr.rel (%p15) target = $region8
    $region5: #{temporal_attention.2} parent=1 // loop_body
      %s19 = ssub.s32 %s14, 1
      %s20 = ssub.s32 %s14, 2
      %s21 = sadd.s32 %s14, 1
      %s22 = ssub.s32 %s14, %s21
      %p23 = scmp.eq.s32.totalorder %s22, 0
      %s25 = sadd.s32 %s24, 1
      %s26 = scalar_select %p23, %s24, %s25
      %p29 = pneg %p23
      %p30 = scmp.eq.s32.totalorder %s14, 31
      %p31 = por %p29, %p30
      %p32 = scmp.ne.s32.totalorder %s24, %s27
      %p33 = scmp.eq.s32.totalorder %s14, 0
      %p34 = por %p32, %p33
      %p35 = scmp.ne.s32.totalorder %s24, %s27
      %p36 = scmp.eq.s32.totalorder %s19, 31
      %p37 = por %p35, %p36
      %p38 = scmp.ne.s32.totalorder %s27, %s28
      %p39 = scmp.eq.s32.totalorder %s19, 0
      %p40 = por %p38, %p39
      %p41 = scmp.ne.s32.totalorder %s27, %s28
      %p42 = scmp.eq.s32.totalorder %s20, 31
      %p43 = por %p41, %p42
      %p45 = scmp.ne.s32.totalorder %s28, %s44
      %p46 = scmp.eq.s32.totalorder %s20, 0
      %p47 = por %p45, %p46
      %s49 = sadd.s32 %s48, 1
      %p52 = scmp.eq.s32.totalorder %s14, 31
      %p53 = scmp.ne.s32.totalorder %s48, %s50
      %p54 = scmp.eq.s32.totalorder %s14, 0
      %p55 = por %p53, %p54
      %p56 = scmp.ne.s32.totalorder %s48, %s50
      %p57 = scmp.eq.s32.totalorder %s19, 31
      %p58 = por %p56, %p57
      %p59 = scmp.ne.s32.totalorder %s50, %s51
      %p60 = scmp.eq.s32.totalorder %s19, 0
      %p61 = por %p59, %p60
      %p62 = scmp.ne.s32.totalorder %s50, %s51
      %p63 = scmp.eq.s32.totalorder %s20, 31
      %p64 = por %p62, %p63
      %p66 = scmp.ne.s32.totalorder %s51, %s65
      %p67 = scmp.eq.s32.totalorder %s20, 0
      %p68 = por %p66, %p67
      %s70 = sadd.s32 %s69, 1
      %p73 = scmp.eq.s32.totalorder %s14, 31
      %p74 = scmp.ne.s32.totalorder %s69, %s71
      %p75 = scmp.eq.s32.totalorder %s14, 0
      %p76 = por %p74, %p75
      %p77 = scmp.ne.s32.totalorder %s69, %s71
      %p78 = scmp.eq.s32.totalorder %s19, 31
      %p79 = por %p77, %p78
      %p80 = scmp.ne.s32.totalorder %s71, %s72
      %p81 = scmp.eq.s32.totalorder %s19, 0
      %p82 = por %p80, %p81
      %p83 = scmp.ne.s32.totalorder %s71, %s72
      %p84 = scmp.eq.s32.totalorder %s20, 31
      %p85 = por %p83, %p84
      %p87 = scmp.ne.s32.totalorder %s72, %s86
      %p88 = scmp.eq.s32.totalorder %s20, 0
      %p89 = por %p87, %p88
      %s91 = sadd.s32 %s90, 1
      %p94 = scmp.eq.s32.totalorder %s14, 31
      %p95 = scmp.ne.s32.totalorder %s90, %s92
      %p96 = scmp.eq.s32.totalorder %s14, 0
      %p97 = por %p95, %p96
      %p98 = scmp.ne.s32.totalorder %s90, %s92
      %p99 = scmp.eq.s32.totalorder %s19, 31
      %p100 = por %p98, %p99
      %p101 = scmp.ne.s32.totalorder %s92, %s93
      %p102 = scmp.eq.s32.totalorder %s19, 0
      %p103 = por %p101, %p102
      %p104 = scmp.ne.s32.totalorder %s92, %s93
      %p105 = scmp.eq.s32.totalorder %s20, 31
      %p106 = por %p104, %p105
      %p108 = scmp.ne.s32.totalorder %s93, %s107
      %p109 = scmp.eq.s32.totalorder %s20, 0
      %p110 = por %p108, %p109
      %s112 = sadd.s32 %s111, 1
      %p115 = scmp.eq.s32.totalorder %s14, 31
      %p116 = scmp.ne.s32.totalorder %s111, %s113
      %p117 = scmp.eq.s32.totalorder %s14, 0
      %p118 = por %p116, %p117
      %p119 = scmp.ne.s32.totalorder %s111, %s113
      %p120 = scmp.eq.s32.totalorder %s19, 31
      %p121 = por %p119, %p120
      %p122 = scmp.ne.s32.totalorder %s113, %s114
      %p123 = scmp.eq.s32.totalorder %s19, 0
      %p124 = por %p122, %p123
      %p125 = scmp.ne.s32.totalorder %s113, %s114
      %p126 = scmp.eq.s32.totalorder %s20, 31
      %p127 = por %p125, %p126
      %p129 = scmp.ne.s32.totalorder %s114, %s128
      %p130 = scmp.eq.s32.totalorder %s20, 0
      %p131 = por %p129, %p130
      %s132 = ssub.s32 %s14, %s21
      %p133 = scmp.eq.s32.totalorder %s132, 0
      %s135 = sadd.s32 %s134, 1
      %s136 = scalar_select %p133, %s134, %s135
      %p139 = pneg %p133
      %p140 = scmp.eq.s32.totalorder %s14, 31
      %p141 = por %p139, %p140
      %p142 = scmp.ne.s32.totalorder %s134, %s137
      %p143 = scmp.eq.s32.totalorder %s14, 0
      %p144 = por %p142, %p143
      %p145 = scmp.ne.s32.totalorder %s134, %s137
      %p146 = scmp.eq.s32.totalorder %s19, 31
      %p147 = por %p145, %p146
      %p148 = scmp.ne.s32.totalorder %s137, %s138
      %p149 = scmp.eq.s32.totalorder %s19, 0
      %p150 = por %p148, %p149
      %p151 = scmp.ne.s32.totalorder %s137, %s138
      %p152 = scmp.eq.s32.totalorder %s20, 31
      %p153 = por %p151, %p152
      %p155 = scmp.ne.s32.totalorder %s138, %s154
      %p156 = scmp.eq.s32.totalorder %s20, 0
      %p157 = por %p155, %p156
      %p158 = scmp.le.s32.totalorder 1, %s14
      %p159 = scmp.lt.s32.totalorder %s14, 33
      %p160 = pnand %p158, %p159
      %p161 = pneg %p160
      // Predicated region
      $region9: #{temporal_attention.2} parent=5 // pred_check
        _
      $region10: #{temporal_attention.2} parent=5 // pred_check_branch
        %163 = sbr.rel (%p160) target = $region12
      $region11: #{temporal_attention.2} parent=5 // pred_region
        %s164 = ssub.s32 %s14, 1
        // Predicated region
        $region13: #{temporal_attention.2} parent=11 // pred_check
          %p165 = pneg %p61
        $region14: #{temporal_attention.2} parent=11 // pred_check_branch
          %167 = sbr.rel (%p165) target = $region16
        $region15: #{temporal_attention.2} parent=11 // pred_region
          %169 = vsyncadd [#allocation6], 0
          %s170 = sshll.u32 %s1, 4
          %s171 = int_to_ptr.vmem [resolvable:$true] %s170
          %176 = dma.vmem_to_smem %s171, 512, [#allocation5], [#allocation6], 128, 128, 8
        $region16: #{temporal_attention.2} parent=11 // pred_fallthru
          _
        // Predicated region
        $region17: #{temporal_attention.2} parent=11 // pred_check
          %p177 = pneg %p82
        $region18: #{temporal_attention.2} parent=11 // pred_check_branch
          %179 = sbr.rel (%p177) target = $region20
        $region19: #{temporal_attention.2} parent=11 // pred_region
          %181 = vsyncadd [#allocation8], 0
          %s183 = sshll.u32 %s2, 4
          %s184 = int_to_ptr.vmem [resolvable:$true] %s183
          %186 = dma.vmem_to_smem %s184, 16, [#allocation7], [#allocation8]
        $region20: #{temporal_attention.2} parent=11 // pred_fallthru
          _
        // Predicated region
        $region21: #{temporal_attention.2} parent=11 // pred_check
          %p187 = pneg %p103
        $region22: #{temporal_attention.2} parent=11 // pred_check_branch
          %189 = sbr.rel (%p187) target = $region24
        $region23: #{temporal_attention.2} parent=11 // pred_region
          %191 = vsyncadd [#allocation8], 0
          %s192 = sshll.u32 %s3, 4
          %s193 = int_to_ptr.vmem [resolvable:$true] %s192
          %198 = dma.vmem_to_smem %s193, 512, [#allocation9], [#allocation8], 128, 128, 8
        $region24: #{temporal_attention.2} parent=11 // pred_fallthru
          _
        // Predicated region
        $region25: #{temporal_attention.2} parent=11 // pred_check
          %p199 = pneg %p124
        $region26: #{temporal_attention.2} parent=11 // pred_check_branch
          %201 = sbr.rel (%p199) target = $region28
        $region27: #{temporal_attention.2} parent=11 // pred_region
          %203 = vsyncadd [#allocation11], 0
          %s205 = sshll.u32 %s4, 4
          %s206 = int_to_ptr.vmem [resolvable:$true] %s205
          %208 = dma.vmem_to_smem %s206, 16, [#allocation10], [#allocation11]
        $region28: #{temporal_attention.2} parent=11 // pred_fallthru
          _
      $region12: #{temporal_attention.2} parent=5 // pred_fallthru
        _
      %p209 = scmp.lt.s32.totalorder %s14, 32
      // Predicated region
      $region29: #{temporal_attention.2} parent=5 // pred_check
        %p210 = pneg %p209
      $region30: #{temporal_attention.2} parent=5 // pred_check_branch
        %212 = sbr.rel (%p210) target = $region32
      $region31: #{temporal_attention.2} parent=5 // pred_region
        // Predicated region
        $region33: #{temporal_attention.2} parent=31 // pred_check
          %p213 = pneg %p34
        $region34: #{temporal_attention.2} parent=31 // pred_check_branch
          %215 = sbr.rel (%p213) target = $region36
        $region35: #{temporal_attention.2} parent=31 // pred_region
          %s216 = sand.u32 %s24, 1
          %s217 = sand.u32 %s24, 1
          %s218 = smul.addr %s217, 32
          %s219 = scalar_lea.vmem [#allocation4], %s218
          %s220 = smul.addr %s14, 2
          %s221 = smul.addr %s220, 8
          %s222 = scalar_lea.vmem %s0, %s221
          // Predicated region
          $region37: #{temporal_attention.2} parent=35 // pred_check
            _
          $region38: #{temporal_attention.2} parent=35 // pred_check_branch
            %224 = sbr.rel (0) target = $region40
          $region39: #{temporal_attention.2} parent=35 // pred_region
            // Predicated region
            $region41: #{temporal_attention.2} parent=39 // pred_check
              _
            $region42: #{temporal_attention.2} parent=39 // pred_check_branch
              %226 = sbr.rel (0) target = $region44
            $region43: #{temporal_attention.2} parent=39 // pred_region
              // Predicated region
              $region56: #{temporal_attention.2} parent=43 // pred_check
                _
              $region57: #{temporal_attention.2} parent=43 // pred_check_branch
                %248 = sbr.rel (0) target = $region59
              $region58: #{temporal_attention.2} parent=43 // pred_region
                loop: start=0, step=1, limit=1
                $region60: #{temporal_attention.2} parent=58 // loop_pre_header
                  _
                $region61: #{temporal_attention.2} parent=58 // loop_header
                  %s250 = sphi 0, %s254
                  %p251 = scmp.ge.s32.totalorder %s250, 1
                  %s255 = sphi %s222, %s222
                  %s256 = sphi %s219, %s219
                $region62: #{temporal_attention.2} parent=58 // loop_header_branch
                  %253 = sbr.rel (%p251) target = $region66
                $region63: #{temporal_attention.2} parent=58 // loop_body
                  %v257 = vld [vmem:[%s255] sm:$0xff]
                  %258 = vst [vmem:[%s256] sm:$0xff] %v257
                  %v259 = vld [vmem:[%s255 + $0x8] sm:$0xff]
                  %260 = vst [vmem:[%s256 + $0x8] sm:$0xff] %v259
                  %v261 = vld [vmem:[%s255 + $0x200] sm:$0xff]
                  %262 = vst [vmem:[%s256 + $0x10] sm:$0xff] %v261
                  %v263 = vld [vmem:[%s255 + $0x208] sm:$0xff]
                  %264 = vst [vmem:[%s256 + $0x18] sm:$0xff] %v263
                $region64: #{temporal_attention.2} parent=58 // loop_footer
                  %s254 = sadd.s32 1, %s250
                $region65: #{temporal_attention.2} parent=58 // loop_footer_branch
                  %249 = sbr.rel target = $region61
                $region66: #{temporal_attention.2} parent=58 // loop_exit
                  _
              $region59: #{temporal_attention.2} parent=43 // pred_fallthru
                _
              // Predicated region
              $region67: #{temporal_attention.2} parent=43 // pred_check
                _
              $region68: #{temporal_attention.2} parent=43 // pred_check_branch
                %266 = sbr.rel target = $region70
              $region69: #{temporal_attention.2} parent=43 // pred_region
                _
              $region70: #{temporal_attention.2} parent=43 // pred_fallthru
                _
            $region44: #{temporal_attention.2} parent=39 // pred_fallthru
              _
            // Predicated region
            $region45: #{temporal_attention.2} parent=39 // pred_check
              _
            $region46: #{temporal_attention.2} parent=39 // pred_check_branch
              %228 = sbr.rel target = $region48
            $region47: #{temporal_attention.2} parent=39 // pred_region
              %s230 = ssub.s32 256, 1
              loop: start=0, step=1, limit=1
              $region49: #{temporal_attention.2} parent=47 // loop_pre_header
                _
              $region50: #{temporal_attention.2} parent=47 // loop_header
                %s232 = sphi 0, %s236
                %p233 = scmp.ge.s32.totalorder %s232, 1
                %s237 = sphi %s222, %s222
                %s238 = sphi %s219, %s219
              $region51: #{temporal_attention.2} parent=47 // loop_header_branch
                %235 = sbr.rel (%p233) target = $region55
              $region52: #{temporal_attention.2} parent=47 // loop_body
                %v239 = vld [vmem:[%s237] sm:%s230]
                %240 = vst [vmem:[%s238] sm:%s230] %v239
                %v241 = vld [vmem:[%s237 + $0x8] sm:%s230]
                %242 = vst [vmem:[%s238 + $0x8] sm:%s230] %v241
                %v243 = vld [vmem:[%s237 + $0x200] sm:%s230]
                %244 = vst [vmem:[%s238 + $0x10] sm:%s230] %v243
                %v245 = vld [vmem:[%s237 + $0x208] sm:%s230]
                %246 = vst [vmem:[%s238 + $0x18] sm:%s230] %v245
              $region53: #{temporal_attention.2} parent=47 // loop_footer
                %s236 = sadd.s32 1, %s232
              $region54: #{temporal_attention.2} parent=47 // loop_footer_branch
                %231 = sbr.rel target = $region50
              $region55: #{temporal_attention.2} parent=47 // loop_exit
                _
            $region48: #{temporal_attention.2} parent=39 // pred_fallthru
              _
          $region40: #{temporal_attention.2} parent=35 // pred_fallthru
            _
          %267 = vnop
        $region36: #{temporal_attention.2} parent=31 // pred_fallthru
          _
      $region32: #{temporal_attention.2} parent=5 // pred_fallthru
        _
      %p268 = scmp.le.s32.totalorder 1, %s14
      %p269 = scmp.lt.s32.totalorder %s14, 33
      %p270 = pnand %p268, %p269
      %p271 = pneg %p270
      // Predicated region
      $region71: #{temporal_attention.2} parent=5 // pred_check
        _
      $region72: #{temporal_attention.2} parent=5 // pred_check_branch
        %273 = sbr.rel (%p270) target = $region74
      $region73: #{temporal_attention.2} parent=5 // pred_region
        %s274 = ssub.s32 %s14, 1
        %s275 = sand.u32 %s27, 1
        %s276 = sand.u32 %s27, 1
        %s277 = smul.addr %s276, 32
        %s278 = scalar_lea.vmem [#allocation4], %s277
        // Predicated region
        $region75: #{temporal_attention.2} parent=73 // pred_check
          %p279 = pneg %p40
        $region76: #{temporal_attention.2} parent=73 // pred_check_branch
          %281 = sbr.rel (%p279) target = $region78
        $region77: #{temporal_attention.2} parent=73 // pred_region
          _
        $region78: #{temporal_attention.2} parent=73 // pred_fallthru
          _
        // Predicated region
        $region79: #{temporal_attention.2} parent=73 // pred_check
          %p282 = pneg %p61
        $region80: #{temporal_attention.2} parent=73 // pred_check_branch
          %284 = sbr.rel (%p282) target = $region82
        $region81: #{temporal_attention.2} parent=73 // pred_region
          %286 = dma.done [#allocation6], 512
        $region82: #{temporal_attention.2} parent=73 // pred_fallthru
          _
        // Predicated region
        $region83: #{temporal_attention.2} parent=73 // pred_check
          %p287 = pneg %p82
        $region84: #{temporal_attention.2} parent=73 // pred_check_branch
          %289 = sbr.rel (%p287) target = $region86
        $region85: #{temporal_attention.2} parent=73 // pred_region
          %291 = dma.done [#allocation8], 16
        $region86: #{temporal_attention.2} parent=73 // pred_fallthru
          _
        // Predicated region
        $region87: #{temporal_attention.2} parent=73 // pred_check
          %p292 = pneg %p103
        $region88: #{temporal_attention.2} parent=73 // pred_check_branch
          %294 = sbr.rel (%p292) target = $region90
        $region89: #{temporal_attention.2} parent=73 // pred_region
          %296 = dma.done [#allocation8], 512
        $region90: #{temporal_attention.2} parent=73 // pred_fallthru
          _
        // Predicated region
        $region91: #{temporal_attention.2} parent=73 // pred_check
          %p297 = pneg %p124
        $region92: #{temporal_attention.2} parent=73 // pred_check_branch
          %299 = sbr.rel (%p297) target = $region94
        $region93: #{temporal_attention.2} parent=73 // pred_region
          %301 = dma.done [#allocation11], 16
        $region94: #{temporal_attention.2} parent=73 // pred_fallthru
          _
        %302 = sfence
        %s303 = sand.u32 %s27, 1
        %s304 = sand.u32 %s27, 1
        %s305 = smul.addr %s304, 32
        %s306 = scalar_lea.vmem [#allocation4], %s305
        %p307 = pneg %p40
        %p308 = pneg %p37
        %p309 = pneg %p61
        %p310 = pneg %p58
        %p311 = pneg %p82
        %p312 = pneg %p79
        %p313 = pneg %p103
        %p314 = pneg %p100
        %p315 = pneg %p124
        %p316 = pneg %p121
        %p317 = pneg %p150
        %p318 = pneg %p147
        %s319 = sand.u32 %s137, 1
        %s320 = sand.u32 %s137, 1
        %s321 = smul.addr %s320, 32
        %s322 = scalar_lea.vmem [#allocation12], %s321
        %v323 = vld [vmem:[%s278] sm:$0xff]
        %v324 = vld [vmem:[%s278 + $0x8] sm:$0xff]
        %v325 = vld [vmem:[%s278 + $0x10] sm:$0xff]
        %v326 = vld [vmem:[%s278 + $0x18] sm:$0xff]
        %vm327 = vcmask 162816
        %328 = vst.msk [vmem:[#allocation2] sm:$0xff] %vm327, 0.0
        %329 = vst.msk [vmem:[#allocation2 + $0x8] sm:$0xff] %vm327, 0.0
        %vm330 = vcmask 158720
        %331 = vst.msk [vmem:[#allocation2 + $0x10] sm:$0xf] %vm330, 0.0
        %332 = vst.msk [vmem:[#allocation2 + $0x18] sm:$0xff] %vm327, 0.0
        %333 = vst.msk [vmem:[#allocation2 + $0x20] sm:$0xff] %vm327, 0.0
        %334 = vst.msk [vmem:[#allocation2 + $0x28] sm:$0xf] %vm330, 0.0
        %vm335 = vcmask 277504
        %336 = vst.msk [vmem:[#allocation3] sm:$0xff] %vm335, 0.0
        %337 = vst.msk [vmem:[#allocation3 + $0x8] sm:$0xff] %vm335, 0.0
        %338 = vst.msk [vmem:[#allocation3 + $0x10] sm:$0xff] %vm335, 0.0
        %339 = vst.msk [vmem:[#allocation3 + $0x18] sm:$0xff] %vm335, 0.0
        %vm340 = vcmask 271360
        %341 = vst.msk [vmem:[#allocation3 + $0x20] sm:$0x3] %vm340, 0.0
        %342 = vst.msk [vmem:[#allocation3 + $0x28] sm:$0xff] %vm335, 0.0
        %343 = vst.msk [vmem:[#allocation3 + $0x30] sm:$0xff] %vm335, 0.0
        %344 = vst.msk [vmem:[#allocation3 + $0x38] sm:$0xff] %vm335, 0.0
        %345 = vst.msk [vmem:[#allocation3 + $0x40] sm:$0xff] %vm335, 0.0
        %346 = vst.msk [vmem:[#allocation3 + $0x48] sm:$0x3] %vm340, 0.0
        %351 = vrot.lane.b32.xlu0 %v323, 2
        %v352 = vpop.permute.xlu0 %351
        %353 = vrot.lane.b32.xlu0 %v324, 2
        %v354 = vpop.permute.xlu0 %353
        %355 = vrot.lane.b32.xlu0 %v325, 2
        %v356 = vpop.permute.xlu0 %355
        %357 = vrot.lane.b32.xlu0 %v326, 2
        %v358 = vpop.permute.xlu0 %357
        %vm363 = vcmask 146448
        %364 = vst.msk [vmem:[#allocation2 + $0x2] sm:$0xff] %vm363, %v352
        %365 = vst.msk [vmem:[#allocation2 + $0xa] sm:$0xff] %vm363, %v354
        %366 = vst.msk [vmem:[#allocation2 + $0x1a] sm:$0xff] %vm363, %v356
        %367 = vst.msk [vmem:[#allocation2 + $0x22] sm:$0xff] %vm363, %v358
        %s368 = smul.u32 %s19, 128
        %s369 = sld [smem:[#allocation5 + %s368]]
        %v370 = vld [vmem:[#allocation2] sm:$0xff]
        %v371 = vld [vmem:[#allocation2 + $0x8] sm:$0xff]
        %v372 = vld [vmem:[#allocation2 + $0x18] sm:$0xff]
        %v373 = vld [vmem:[#allocation2 + $0x20] sm:$0xff]
        %v374 = vstv %s369
        %v375 = vmul.f32 %v374, %v370
        %v376 = vmul.f32 %v374, %v371
        %v377 = vmul.f32 %v374, %v372
        %v378 = vmul.f32 %v374, %v373
        %v379 = vadd.f32 %v375, 0.0
        %v380 = vadd.f32 %v376, 0.0
        %v381 = vadd.f32 %v377, 0.0
        %v382 = vadd.f32 %v378, 0.0
        %s383 = sadd.s32 %s368, 1
        %s384 = sld [smem:[#allocation5 + %s383]]
        %v385 = vstv %s384
        %v386 = vmul.f32 %v385, %v370
        %v387 = vmul.f32 %v385, %v371
        %v388 = vmul.f32 %v385, %v372
        %v389 = vmul.f32 %v385, %v373
        %v390 = vadd.f32 %v386, 0.0
        %v391 = vadd.f32 %v387, 0.0
        %v392 = vadd.f32 %v388, 0.0
        %v393 = vadd.f32 %v389, 0.0
        %s394 = sadd.s32 %s368, 2
        %s395 = sld [smem:[#allocation5 + %s394]]
        %v396 = vstv %s395
        %v397 = vmul.f32 %v396, %v370
        %v398 = vmul.f32 %v396, %v371
        %v399 = vmul.f32 %v396, %v372
        %v400 = vmul.f32 %v396, %v373
        %v401 = vadd.f32 %v397, 0.0
        %v402 = vadd.f32 %v398, 0.0
        %v403 = vadd.f32 %v399, 0.0
        %v404 = vadd.f32 %v400, 0.0
        %s405 = sadd.s32 %s368, 3
        %s406 = sld [smem:[#allocation5 + %s405]]
        %v407 = vstv %s406
        %v408 = vmul.f32 %v407, %v370
        %v409 = vmul.f32 %v407, %v371
        %v410 = vmul.f32 %v407, %v372
        %v411 = vmul.f32 %v407, %v373
        %v412 = vadd.f32 %v408, 0.0
        %v413 = vadd.f32 %v409, 0.0
        %v414 = vadd.f32 %v410, 0.0
        %v415 = vadd.f32 %v411, 0.0
        %s416 = sadd.s32 %s368, 4
        %s417 = sld [smem:[#allocation5 + %s416]]
        %v418 = vstv %s417
        %v419 = vmul.f32 %v418, %v370
        %v420 = vmul.f32 %v418, %v371
        %v421 = vmul.f32 %v418, %v372
        %v422 = vmul.f32 %v418, %v373
        %427 = vrot.lane.b32.xlu0 %v419, 124
        %v428 = vpop.permute.xlu0 %427
        %429 = vrot.lane.b32.xlu0 %v420, 124
        %v430 = vpop.permute.xlu0 %429
        %431 = vrot.lane.b32.xlu0 %v421, 124
        %v432 = vpop.permute.xlu0 %431
        %433 = vrot.lane.b32.xlu0 %v422, 124
        %v434 = vpop.permute.xlu0 %433
        %v439 = vadd.f32 %v379, %v428
        %v440 = vadd.f32 %v380, %v430
        %v441 = vadd.f32 %v381, %v432
        %v442 = vadd.f32 %v382, %v434
        %s443 = sadd.s32 %s368, 5
        %s444 = sld [smem:[#allocation5 + %s443]]
        %v445 = vld [vmem:[#allocation2 + $0x1] sm:$0xff]
        %v446 = vld [vmem:[#allocation2 + $0x9] sm:$0xff]
        %v447 = vld [vmem:[#allocation2 + $0x19] sm:$0xff]
        %v448 = vld [vmem:[#allocation2 + $0x21] sm:$0xff]
        %v449 = vstv %s444
        %v450 = vmul.f32 %v449, %v445
        %v451 = vmul.f32 %v449, %v446
        %v452 = vmul.f32 %v449, %v447
        %v453 = vmul.f32 %v449, %v448
        %458 = vrot.lane.b32.xlu0 %v450, 1
        %v459 = vpop.permute.xlu0 %458
        %460 = vrot.lane.b32.xlu0 %v451, 1
        %v461 = vpop.permute.xlu0 %460
        %462 = vrot.lane.b32.xlu0 %v452, 1
        %v463 = vpop.permute.xlu0 %462
        %464 = vrot.lane.b32.xlu0 %v453, 1
        %v465 = vpop.permute.xlu0 %464
        %v470 = vadd.f32 %v390, %v459
        %v471 = vadd.f32 %v391, %v461
        %v472 = vadd.f32 %v392, %v463
        %v473 = vadd.f32 %v393, %v465
        %s474 = sadd.s32 %s368, 6
        %s475 = sld [smem:[#allocation5 + %s474]]
        %v476 = vstv %s475
        %v477 = vmul.f32 %v476, %v445
        %v478 = vmul.f32 %v476, %v446
        %v479 = vmul.f32 %v476, %v447
        %v480 = vmul.f32 %v476, %v448
        %485 = vrot.lane.b32.xlu0 %v477, 1
        %v486 = vpop.permute.xlu0 %485
        %487 = vrot.lane.b32.xlu0 %v478, 1
        %v488 = vpop.permute.xlu0 %487
        %489 = vrot.lane.b32.xlu0 %v479, 1
        %v490 = vpop.permute.xlu0 %489
        %491 = vrot.lane.b32.xlu0 %v480, 1
        %v492 = vpop.permute.xlu0 %491
        %v497 = vadd.f32 %v401, %v486
        %v498 = vadd.f32 %v402, %v488
        %v499 = vadd.f32 %v403, %v490
        %v500 = vadd.f32 %v404, %v492
        %s501 = sadd.s32 %s368, 7
        %s502 = sld [smem:[#allocation5 + %s501]]
        %v503 = vstv %s502
        %v504 = vmul.f32 %v503, %v445
        %v505 = vmul.f32 %v503, %v446
        %v506 = vmul.f32 %v503, %v447
        %v507 = vmul.f32 %v503, %v448
        %512 = vrot.lane.b32.xlu0 %v504, 1
        %v513 = vpop.permute.xlu0 %512
        %514 = vrot.lane.b32.xlu0 %v505, 1
        %v515 = vpop.permute.xlu0 %514
        %516 = vrot.lane.b32.xlu0 %v506, 1
        %v517 = vpop.permute.xlu0 %516
        %518 = vrot.lane.b32.xlu0 %v507, 1
        %v519 = vpop.permute.xlu0 %518
        %v524 = vadd.f32 %v412, %v513
        %v525 = vadd.f32 %v413, %v515
        %v526 = vadd.f32 %v414, %v517
        %v527 = vadd.f32 %v415, %v519
        %s528 = sadd.s32 %s368, 8
        %s529 = sld [smem:[#allocation5 + %s528]]
        %v530 = vstv %s529
        %v531 = vmul.f32 %v530, %v445
        %v532 = vmul.f32 %v530, %v446
        %v533 = vmul.f32 %v530, %v447
        %v534 = vmul.f32 %v530, %v448
        %539 = vrot.lane.b32.xlu0 %v531, 125
        %v540 = vpop.permute.xlu0 %539
        %541 = vrot.lane.b32.xlu0 %v532, 125
        %v542 = vpop.permute.xlu0 %541
        %543 = vrot.lane.b32.xlu0 %v533, 125
        %v544 = vpop.permute.xlu0 %543
        %545 = vrot.lane.b32.xlu0 %v534, 125
        %v546 = vpop.permute.xlu0 %545
        %v551 = vadd.f32 %v439, %v540
        %v552 = vadd.f32 %v440, %v542
        %v553 = vadd.f32 %v441, %v544
        %v554 = vadd.f32 %v442, %v546
        %s555 = sadd.s32 %s368, 9
        %s556 = sld [smem:[#allocation5 + %s555]]
        %v557 = vstv %s556
        %v558 = vmul.f32 %v557, %v445
        %v559 = vmul.f32 %v557, %v446
        %v560 = vmul.f32 %v557, %v447
        %v561 = vmul.f32 %v557, %v448
        %566 = vrot.lane.b32.xlu0 %v558, 125
        %v567 = vpop.permute.xlu0 %566
        %568 = vrot.lane.b32.xlu0 %v559, 125
        %v569 = vpop.permute.xlu0 %568
        %570 = vrot.lane.b32.xlu0 %v560, 125
        %v571 = vpop.permute.xlu0 %570
        %572 = vrot.lane.b32.xlu0 %v561, 125
        %v573 = vpop.permute.xlu0 %572
        %v578 = vadd.f32 %v470, %v567
        %v579 = vadd.f32 %v471, %v569
        %v580 = vadd.f32 %v472, %v571
        %v581 = vadd.f32 %v473, %v573
        %s582 = sadd.s32 %s368, 10
        %s583 = sld [smem:[#allocation5 + %s582]]
        %v584 = vld [vmem:[#allocation2 + $0x2] sm:$0xff]
        %v585 = vld [vmem:[#allocation2 + $0xa] sm:$0xff]
        %v586 = vld [vmem:[#allocation2 + $0x1a] sm:$0xff]
        %v587 = vld [vmem:[#allocation2 + $0x22] sm:$0xff]
        %v588 = vstv %s583
        %v589 = vmul.f32 %v588, %v584
        %v590 = vmul.f32 %v588, %v585
        %v591 = vmul.f32 %v588, %v586
        %v592 = vmul.f32 %v588, %v587
        %597 = vrot.lane.b32.xlu0 %v589, 2
        %v598 = vpop.permute.xlu0 %597
        %599 = vrot.lane.b32.xlu0 %v590, 2
        %v600 = vpop.permute.xlu0 %599
        %601 = vrot.lane.b32.xlu0 %v591, 2
        %v602 = vpop.permute.xlu0 %601
        %603 = vrot.lane.b32.xlu0 %v592, 2
        %v604 = vpop.permute.xlu0 %603
        %v609 = vadd.f32 %v497, %v598
        %v610 = vadd.f32 %v498, %v600
        %v611 = vadd.f32 %v499, %v602
        %v612 = vadd.f32 %v500, %v604
        %s613 = sadd.s32 %s368, 11
        %s614 = sld [smem:[#allocation5 + %s613]]
        %v615 = vstv %s614
        %v616 = vmul.f32 %v615, %v584
        %v617 = vmul.f32 %v615, %v585
        %v618 = vmul.f32 %v615, %v586
        %v619 = vmul.f32 %v615, %v587
        %624 = vrot.lane.b32.xlu0 %v616, 2
        %v625 = vpop.permute.xlu0 %624
        %626 = vrot.lane.b32.xlu0 %v617, 2
        %v627 = vpop.permute.xlu0 %626
        %628 = vrot.lane.b32.xlu0 %v618, 2
        %v629 = vpop.permute.xlu0 %628
        %630 = vrot.lane.b32.xlu0 %v619, 2
        %v631 = vpop.permute.xlu0 %630
        %v636 = vadd.f32 %v524, %v625
        %v637 = vadd.f32 %v525, %v627
        %v638 = vadd.f32 %v526, %v629
        %v639 = vadd.f32 %v527, %v631
        %s640 = sadd.s32 %s368, 12
        %s641 = sld [smem:[#allocation5 + %s640]]
        %v642 = vstv %s641
        %v643 = vmul.f32 %v642, %v584
        %v644 = vmul.f32 %v642, %v585
        %v645 = vmul.f32 %v642, %v586
        %v646 = vmul.f32 %v642, %v587
        %651 = vrot.lane.b32.xlu0 %v643, 126
        %v652 = vpop.permute.xlu0 %651
        %653 = vrot.lane.b32.xlu0 %v644, 126
        %v654 = vpop.permute.xlu0 %653
        %655 = vrot.lane.b32.xlu0 %v645, 126
        %v656 = vpop.permute.xlu0 %655
        %657 = vrot.lane.b32.xlu0 %v646, 126
        %v658 = vpop.permute.xlu0 %657
        %v663 = vadd.f32 %v551, %v652
        %v664 = vadd.f32 %v552, %v654
        %v665 = vadd.f32 %v553, %v656
        %v666 = vadd.f32 %v554, %v658
        %s667 = sadd.s32 %s368, 13
        %s668 = sld [smem:[#allocation5 + %s667]]
        %v669 = vstv %s668
        %v670 = vmul.f32 %v669, %v584
        %v671 = vmul.f32 %v669, %v585
        %v672 = vmul.f32 %v669, %v586
        %v673 = vmul.f32 %v669, %v587
        %678 = vrot.lane.b32.xlu0 %v670, 126
        %v679 = vpop.permute.xlu0 %678
        %680 = vrot.lane.b32.xlu0 %v671, 126
        %v681 = vpop.permute.xlu0 %680
        %682 = vrot.lane.b32.xlu0 %v672, 126
        %v683 = vpop.permute.xlu0 %682
        %684 = vrot.lane.b32.xlu0 %v673, 126
        %v685 = vpop.permute.xlu0 %684
        %v690 = vadd.f32 %v578, %v679
        %v691 = vadd.f32 %v579, %v681
        %v692 = vadd.f32 %v580, %v683
        %v693 = vadd.f32 %v581, %v685
        %s694 = sadd.s32 %s368, 14
        %s695 = sld [smem:[#allocation5 + %s694]]
        %v696 = vstv %s695
        %v697 = vmul.f32 %v696, %v584
        %v698 = vmul.f32 %v696, %v585
        %v699 = vmul.f32 %v696, %v586
        %v700 = vmul.f32 %v696, %v587
        %705 = vrot.lane.b32.xlu0 %v697, 126
        %v706 = vpop.permute.xlu0 %705
        %707 = vrot.lane.b32.xlu0 %v698, 126
        %v708 = vpop.permute.xlu0 %707
        %709 = vrot.lane.b32.xlu0 %v699, 126
        %v710 = vpop.permute.xlu0 %709
        %711 = vrot.lane.b32.xlu0 %v700, 126
        %v712 = vpop.permute.xlu0 %711
        %v717 = vadd.f32 %v609, %v706
        %v718 = vadd.f32 %v610, %v708
        %v719 = vadd.f32 %v611, %v710
        %v720 = vadd.f32 %v612, %v712
        %s721 = sadd.s32 %s368, 15
        %s722 = sld [smem:[#allocation5 + %s721]]
        %v723 = vld [vmem:[#allocation2 + $0x3] sm:$0xff]
        %v724 = vld [vmem:[#allocation2 + $0xb] sm:$0xff]
        %v725 = vld [vmem:[#allocation2 + $0x1b] sm:$0xff]
        %v726 = vld [vmem:[#allocation2 + $0x23] sm:$0xff]
        %v727 = vstv %s722
        %v728 = vmul.f32 %v727, %v723
        %v729 = vmul.f32 %v727, %v724
        %v730 = vmul.f32 %v727, %v725
        %v731 = vmul.f32 %v727, %v726
        %736 = vrot.lane.b32.xlu0 %v728, 3
        %v737 = vpop.permute.xlu0 %736
        %738 = vrot.lane.b32.xlu0 %v729, 3
        %v739 = vpop.permute.xlu0 %738
        %740 = vrot.lane.b32.xlu0 %v730, 3
        %v741 = vpop.permute.xlu0 %740
        %742 = vrot.lane.b32.xlu0 %v731, 3
        %v743 = vpop.permute.xlu0 %742
        %v748 = vadd.f32 %v636, %v737
        %v749 = vadd.f32 %v637, %v739
        %v750 = vadd.f32 %v638, %v741
        %v751 = vadd.f32 %v639, %v743
        %s752 = sadd.s32 %s368, 16
        %s753 = sld [smem:[#allocation5 + %s752]]
        %v754 = vstv %s753
        %v755 = vmul.f32 %v754, %v723
        %v756 = vmul.f32 %v754, %v724
        %v757 = vmul.f32 %v754, %v725
        %v758 = vmul.f32 %v754, %v726
        %763 = vrot.lane.b32.xlu0 %v755, 127
        %v764 = vpop.permute.xlu0 %763
        %765 = vrot.lane.b32.xlu0 %v756, 127
        %v766 = vpop.permute.xlu0 %765
        %767 = vrot.lane.b32.xlu0 %v757, 127
        %v768 = vpop.permute.xlu0 %767
        %769 = vrot.lane.b32.xlu0 %v758, 127
        %v770 = vpop.permute.xlu0 %769
        %v775 = vadd.f32 %v663, %v764
        %v776 = vadd.f32 %v664, %v766
        %v777 = vadd.f32 %v665, %v768
        %v778 = vadd.f32 %v666, %v770
        %s779 = sadd.s32 %s368, 17
        %s780 = sld [smem:[#allocation5 + %s779]]
        %v781 = vstv %s780
        %v782 = vmul.f32 %v781, %v723
        %v783 = vmul.f32 %v781, %v724
        %v784 = vmul.f32 %v781, %v725
        %v785 = vmul.f32 %v781, %v726
        %790 = vrot.lane.b32.xlu0 %v782, 127
        %v791 = vpop.permute.xlu0 %790
        %792 = vrot.lane.b32.xlu0 %v783, 127
        %v793 = vpop.permute.xlu0 %792
        %794 = vrot.lane.b32.xlu0 %v784, 127
        %v795 = vpop.permute.xlu0 %794
        %796 = vrot.lane.b32.xlu0 %v785, 127
        %v797 = vpop.permute.xlu0 %796
        %v802 = vadd.f32 %v690, %v791
        %v803 = vadd.f32 %v691, %v793
        %v804 = vadd.f32 %v692, %v795
        %v805 = vadd.f32 %v693, %v797
        %s806 = sadd.s32 %s368, 18
        %s807 = sld [smem:[#allocation5 + %s806]]
        %v808 = vstv %s807
        %v809 = vmul.f32 %v808, %v723
        %v810 = vmul.f32 %v808, %v724
        %v811 = vmul.f32 %v808, %v725
        %v812 = vmul.f32 %v808, %v726
        %817 = vrot.lane.b32.xlu0 %v809, 127
        %v818 = vpop.permute.xlu0 %817
        %819 = vrot.lane.b32.xlu0 %v810, 127
        %v820 = vpop.permute.xlu0 %819
        %821 = vrot.lane.b32.xlu0 %v811, 127
        %v822 = vpop.permute.xlu0 %821
        %823 = vrot.lane.b32.xlu0 %v812, 127
        %v824 = vpop.permute.xlu0 %823
        %v829 = vadd.f32 %v717, %v818
        %v830 = vadd.f32 %v718, %v820
        %v831 = vadd.f32 %v719, %v822
        %v832 = vadd.f32 %v720, %v824
        %s833 = sadd.s32 %s368, 19
        %s834 = sld [smem:[#allocation5 + %s833]]
        %v835 = vstv %s834
        %v836 = vmul.f32 %v835, %v723
        %v837 = vmul.f32 %v835, %v724
        %v838 = vmul.f32 %v835, %v725
        %v839 = vmul.f32 %v835, %v726
        %844 = vrot.lane.b32.xlu0 %v836, 127
        %v845 = vpop.permute.xlu0 %844
        %846 = vrot.lane.b32.xlu0 %v837, 127
        %v847 = vpop.permute.xlu0 %846
        %848 = vrot.lane.b32.xlu0 %v838, 127
        %v849 = vpop.permute.xlu0 %848
        %850 = vrot.lane.b32.xlu0 %v839, 127
        %v851 = vpop.permute.xlu0 %850
        %v856 = vadd.f32 %v748, %v845
        %v857 = vadd.f32 %v749, %v847
        %v858 = vadd.f32 %v750, %v849
        %v859 = vadd.f32 %v751, %v851
        %s860 = sadd.s32 %s368, 20
        %s861 = sld [smem:[#allocation5 + %s860]]
        %v862 = vld [vmem:[#allocation2 + $0x4] sm:$0xff]
        %v863 = vld [vmem:[#allocation2 + $0xc] sm:$0xff]
        %v864 = vld [vmem:[#allocation2 + $0x1c] sm:$0xff]
        %v865 = vld [vmem:[#allocation2 + $0x24] sm:$0xff]
        %v866 = vstv %s861
        %v867 = vmul.f32 %v866, %v862
        %v868 = vmul.f32 %v866, %v863
        %v869 = vmul.f32 %v866, %v864
        %v870 = vmul.f32 %v866, %v865
        %v871 = vadd.f32 %v775, %v867
        %v872 = vadd.f32 %v776, %v868
        %v873 = vadd.f32 %v777, %v869
        %v874 = vadd.f32 %v778, %v870
        %s875 = sadd.s32 %s368, 21
        %s876 = sld [smem:[#allocation5 + %s875]]
        %v877 = vstv %s876
        %v878 = vmul.f32 %v877, %v862
        %v879 = vmul.f32 %v877, %v863
        %v880 = vmul.f32 %v877, %v864
        %v881 = vmul.f32 %v877, %v865
        %v882 = vadd.f32 %v802, %v878
        %v883 = vadd.f32 %v803, %v879
        %v884 = vadd.f32 %v804, %v880
        %v885 = vadd.f32 %v805, %v881
        %s886 = sadd.s32 %s368, 22
        %s887 = sld [smem:[#allocation5 + %s886]]
        %v888 = vstv %s887
        %v889 = vmul.f32 %v888, %v862
        %v890 = vmul.f32 %v888, %v863
        %v891 = vmul.f32 %v888, %v864
        %v892 = vmul.f32 %v888, %v865
        %v893 = vadd.f32 %v829, %v889
        %v894 = vadd.f32 %v830, %v890
        %v895 = vadd.f32 %v831, %v891
        %v896 = vadd.f32 %v832, %v892
        %s897 = sadd.s32 %s368, 23
        %s898 = sld [smem:[#allocation5 + %s897]]
        %v899 = vstv %s898
        %v900 = vmul.f32 %v899, %v862
        %v901 = vmul.f32 %v899, %v863
        %v902 = vmul.f32 %v899, %v864
        %v903 = vmul.f32 %v899, %v865
        %v904 = vadd.f32 %v856, %v900
        %v905 = vadd.f32 %v857, %v901
        %v906 = vadd.f32 %v858, %v902
        %v907 = vadd.f32 %v859, %v903
        %s908 = sadd.s32 %s368, 24
        %s909 = sld [smem:[#allocation5 + %s908]]
        %v910 = vstv %s909
        %v911 = vmul.f32 %v910, %v862
        %v912 = vmul.f32 %v910, %v863
        %v913 = vmul.f32 %v910, %v864
        %v914 = vmul.f32 %v910, %v865
        %919 = vrot.lane.b32.xlu0 %v911, 124
        %v920 = vpop.permute.xlu0 %919
        %921 = vrot.lane.b32.xlu0 %v912, 124
        %v922 = vpop.permute.xlu0 %921
        %923 = vrot.lane.b32.xlu0 %v913, 124
        %v924 = vpop.permute.xlu0 %923
        %925 = vrot.lane.b32.xlu0 %v914, 124
        %v926 = vpop.permute.xlu0 %925
        %v931 = vadd.f32 %v871, %v920
        %v932 = vadd.f32 %v872, %v922
        %v933 = vadd.f32 %v873, %v924
        %v934 = vadd.f32 %v874, %v926
        %939 = vrot.lane.b32.xlu0 %v882, 127
        %v940 = vpop.permute.xlu0 %939
        %941 = vrot.lane.b32.xlu0 %v883, 127
        %v942 = vpop.permute.xlu0 %941
        %943 = vrot.lane.b32.xlu0 %v884, 127
        %v944 = vpop.permute.xlu0 %943
        %945 = vrot.lane.b32.xlu0 %v885, 127
        %v946 = vpop.permute.xlu0 %945
        %v951 = vadd.f32 %v931, %v940
        %v952 = vadd.f32 %v932, %v942
        %v953 = vadd.f32 %v933, %v944
        %v954 = vadd.f32 %v934, %v946
        %959 = vrot.lane.b32.xlu0 %v893, 126
        %v960 = vpop.permute.xlu0 %959
        %961 = vrot.lane.b32.xlu0 %v894, 126
        %v962 = vpop.permute.xlu0 %961
        %963 = vrot.lane.b32.xlu0 %v895, 126
        %v964 = vpop.permute.xlu0 %963
        %965 = vrot.lane.b32.xlu0 %v896, 126
        %v966 = vpop.permute.xlu0 %965
        %v971 = vadd.f32 %v951, %v960
        %v972 = vadd.f32 %v952, %v962
        %v973 = vadd.f32 %v953, %v964
        %v974 = vadd.f32 %v954, %v966
        %979 = vrot.lane.b32.xlu0 %v904, 125
        %v980 = vpop.permute.xlu0 %979
        %981 = vrot.lane.b32.xlu0 %v905, 125
        %v982 = vpop.permute.xlu0 %981
        %983 = vrot.lane.b32.xlu0 %v906, 125
        %v984 = vpop.permute.xlu0 %983
        %985 = vrot.lane.b32.xlu0 %v907, 125
        %v986 = vpop.permute.xlu0 %985
        %v991 = vadd.f32 %v971, %v980
        %v992 = vadd.f32 %v972, %v982
        %v993 = vadd.f32 %v973, %v984
        %v994 = vadd.f32 %v974, %v986
        %s995 = sld [smem:[#allocation7 + %s19]]
        %v996 = vstv %s995
        %v997 = vadd.f32 %v991, %v996
        %v998 = vadd.f32 %v992, %v996
        %v999 = vadd.f32 %v993, %v996
        %v1000 = vadd.f32 %v994, %v996
        %1005 = vrot.lane.b32.xlu0 %v997, 9
        %v1006 = vpop.permute.xlu0 %1005
        %1007 = vrot.lane.b32.xlu0 %v998, 9
        %v1008 = vpop.permute.xlu0 %1007
        %1009 = vrot.lane.b32.xlu0 %v999, 9
        %v1010 = vpop.permute.xlu0 %1009
        %1011 = vrot.lane.b32.xlu0 %v1000, 9
        %v1012 = vpop.permute.xlu0 %1011
        %vm1017 = vcmask 203848
        %1018 = vst.msk [vmem:[#allocation3 + $0x9] sm:$0xff] %vm1017, %v1006
        %1019 = vst.msk [vmem:[#allocation3 + $0x11] sm:$0xff] %vm1017, %v1008
        %1020 = vst.msk [vmem:[#allocation3 + $0x31] sm:$0xff] %vm1017, %v1010
        %1021 = vst.msk [vmem:[#allocation3 + $0x39] sm:$0xff] %vm1017, %v1012
        %s1022 = sld [smem:[#allocation9 + %s368]]
        %v1023 = vld [vmem:[#allocation3] sm:$0xff]
        %v1024 = vld [vmem:[#allocation3 + $0x8] sm:$0xff]
        %v1025 = vld [vmem:[#allocation3 + $0x28] sm:$0xff]
        %v1026 = vld [vmem:[#allocation3 + $0x30] sm:$0xff]
        %v1027 = vstv %s1022
        %v1028 = vmul.f32 %v1027, %v1023
        %v1029 = vmul.f32 %v1027, %v1024
        %v1030 = vmul.f32 %v1027, %v1025
        %v1031 = vmul.f32 %v1027, %v1026
        %v1032 = vadd.f32 %v1028, 0.0
        %v1033 = vadd.f32 %v1029, 0.0
        %v1034 = vadd.f32 %v1030, 0.0
        %v1035 = vadd.f32 %v1031, 0.0
        %s1036 = sld [smem:[#allocation9 + %s383]]
        %v1037 = vstv %s1036
        %v1038 = vmul.f32 %v1037, %v1023
        %v1039 = vmul.f32 %v1037, %v1024
        %v1040 = vmul.f32 %v1037, %v1025
        %v1041 = vmul.f32 %v1037, %v1026
        %v1042 = vadd.f32 %v1038, 0.0
        %v1043 = vadd.f32 %v1039, 0.0
        %v1044 = vadd.f32 %v1040, 0.0
        %v1045 = vadd.f32 %v1041, 0.0
        %s1046 = sld [smem:[#allocation9 + %s394]]
        %v1047 = vstv %s1046
        %v1048 = vmul.f32 %v1047, %v1023
        %v1049 = vmul.f32 %v1047, %v1024
        %v1050 = vmul.f32 %v1047, %v1025
        %v1051 = vmul.f32 %v1047, %v1026
        %v1052 = vadd.f32 %v1048, 0.0
        %v1053 = vadd.f32 %v1049, 0.0
        %v1054 = vadd.f32 %v1050, 0.0
        %v1055 = vadd.f32 %v1051, 0.0
        %s1056 = sld [smem:[#allocation9 + %s405]]
        %v1057 = vstv %s1056
        %v1058 = vmul.f32 %v1057, %v1023
        %v1059 = vmul.f32 %v1057, %v1024
        %v1060 = vmul.f32 %v1057, %v1025
        %v1061 = vmul.f32 %v1057, %v1026
        %v1062 = vadd.f32 %v1058, 0.0
        %v1063 = vadd.f32 %v1059, 0.0
        %v1064 = vadd.f32 %v1060, 0.0
        %v1065 = vadd.f32 %v1061, 0.0
        %s1066 = sld [smem:[#allocation9 + %s416]]
        %v1067 = vstv %s1066
        %v1068 = vmul.f32 %v1067, %v1023
        %v1069 = vmul.f32 %v1067, %v1024
        %v1070 = vmul.f32 %v1067, %v1025
        %v1071 = vmul.f32 %v1067, %v1026
        %1076 = vrot.lane.b32.xlu0 %v1068, 116
        %v1077 = vpop.permute.xlu0 %1076
        %1078 = vrot.lane.b32.xlu0 %v1069, 116
        %v1079 = vpop.permute.xlu0 %1078
        %1080 = vrot.lane.b32.xlu0 %v1070, 116
        %v1081 = vpop.permute.xlu0 %1080
        %1082 = vrot.lane.b32.xlu0 %v1071, 116
        %v1083 = vpop.permute.xlu0 %1082
        %v1088 = vadd.f32 %v1032, %v1077
        %v1089 = vadd.f32 %v1033, %v1079
        %v1090 = vadd.f32 %v1034, %v1081
        %v1091 = vadd.f32 %v1035, %v1083
        %s1092 = sld [smem:[#allocation9 + %s443]]
        %v1093 = vstv %s1092
        %v1094 = vmul.f32 %v1093, %v1023
        %v1095 = vmul.f32 %v1093, %v1024
        %v1096 = vmul.f32 %v1093, %v1025
        %v1097 = vmul.f32 %v1093, %v1026
        %1102 = vrot.lane.b32.xlu0 %v1094, 116
        %v1103 = vpop.permute.xlu0 %1102
        %1104 = vrot.lane.b32.xlu0 %v1095, 116
        %v1105 = vpop.permute.xlu0 %1104
        %1106 = vrot.lane.b32.xlu0 %v1096, 116
        %v1107 = vpop.permute.xlu0 %1106
        %1108 = vrot.lane.b32.xlu0 %v1097, 116
        %v1109 = vpop.permute.xlu0 %1108
        %v1114 = vadd.f32 %v1042, %v1103
        %v1115 = vadd.f32 %v1043, %v1105
        %v1116 = vadd.f32 %v1044, %v1107
        %v1117 = vadd.f32 %v1045, %v1109
        %s1118 = sld [smem:[#allocation9 + %s474]]
        %v1119 = vstv %s1118
        %v1120 = vmul.f32 %v1119, %v1023
        %v1121 = vmul.f32 %v1119, %v1024
        %v1122 = vmul.f32 %v1119, %v1025
        %v1123 = vmul.f32 %v1119, %v1026
        %1128 = vrot.lane.b32.xlu0 %v1120, 116
        %v1129 = vpop.permute.xlu0 %1128
        %1130 = vrot.lane.b32.xlu0 %v1121, 116
        %v1131 = vpop.permute.xlu0 %1130
        %1132 = vrot.lane.b32.xlu0 %v1122, 116
        %v1133 = vpop.permute.xlu0 %1132
        %1134 = vrot.lane.b32.xlu0 %v1123, 116
        %v1135 = vpop.permute.xlu0 %1134
        %v1140 = vadd.f32 %v1052, %v1129
        %v1141 = vadd.f32 %v1053, %v1131
        %v1142 = vadd.f32 %v1054, %v1133
        %v1143 = vadd.f32 %v1055, %v1135
        %s1144 = sld [smem:[#allocation9 + %s501]]
        %v1145 = vld [vmem:[#allocation3 + $0x3] sm:$0xff]
        %v1146 = vld [vmem:[#allocation3 + $0xb] sm:$0xff]
        %v1147 = vld [vmem:[#allocation3 + $0x2b] sm:$0xff]
        %v1148 = vld [vmem:[#allocation3 + $0x33] sm:$0xff]
        %v1149 = vstv %s1144
        %v1150 = vmul.f32 %v1149, %v1145
        %v1151 = vmul.f32 %v1149, %v1146
        %v1152 = vmul.f32 %v1149, %v1147
        %v1153 = vmul.f32 %v1149, %v1148
        %1158 = vrot.lane.b32.xlu0 %v1150, 9
        %v1159 = vpop.permute.xlu0 %1158
        %1160 = vrot.lane.b32.xlu0 %v1151, 9
        %v1161 = vpop.permute.xlu0 %1160
        %1162 = vrot.lane.b32.xlu0 %v1152, 9
        %v1163 = vpop.permute.xlu0 %1162
        %1164 = vrot.lane.b32.xlu0 %v1153, 9
        %v1165 = vpop.permute.xlu0 %1164
        %v1170 = vadd.f32 %v1062, %v1159
        %v1171 = vadd.f32 %v1063, %v1161
        %v1172 = vadd.f32 %v1064, %v1163
        %v1173 = vadd.f32 %v1065, %v1165
        %s1174 = sld [smem:[#allocation9 + %s528]]
        %v1175 = vstv %s1174
        %v1176 = vmul.f32 %v1175, %v1145
        %v1177 = vmul.f32 %v1175, %v1146
        %v1178 = vmul.f32 %v1175, %v1147
        %v1179 = vmul.f32 %v1175, %v1148
        %1184 = vrot.lane.b32.xlu0 %v1176, 125
        %v1185 = vpop.permute.xlu0 %1184
        %1186 = vrot.lane.b32.xlu0 %v1177, 125
        %v1187 = vpop.permute.xlu0 %1186
        %1188 = vrot.lane.b32.xlu0 %v1178, 125
        %v1189 = vpop.permute.xlu0 %1188
        %1190 = vrot.lane.b32.xlu0 %v1179, 125
        %v1191 = vpop.permute.xlu0 %1190
        %v1196 = vadd.f32 %v1088, %v1185
        %v1197 = vadd.f32 %v1089, %v1187
        %v1198 = vadd.f32 %v1090, %v1189
        %v1199 = vadd.f32 %v1091, %v1191
        %s1200 = sld [smem:[#allocation9 + %s555]]
        %v1201 = vstv %s1200
        %v1202 = vmul.f32 %v1201, %v1145
        %v1203 = vmul.f32 %v1201, %v1146
        %v1204 = vmul.f32 %v1201, %v1147
        %v1205 = vmul.f32 %v1201, %v1148
        %1210 = vrot.lane.b32.xlu0 %v1202, 125
        %v1211 = vpop.permute.xlu0 %1210
        %1212 = vrot.lane.b32.xlu0 %v1203, 125
        %v1213 = vpop.permute.xlu0 %1212
        %1214 = vrot.lane.b32.xlu0 %v1204, 125
        %v1215 = vpop.permute.xlu0 %1214
        %1216 = vrot.lane.b32.xlu0 %v1205, 125
        %v1217 = vpop.permute.xlu0 %1216
        %v1222 = vadd.f32 %v1114, %v1211
        %v1223 = vadd.f32 %v1115, %v1213
        %v1224 = vadd.f32 %v1116, %v1215
        %v1225 = vadd.f32 %v1117, %v1217
        %s1226 = sld [smem:[#allocation9 + %s582]]
        %v1227 = vstv %s1226
        %v1228 = vmul.f32 %v1227, %v1145
        %v1229 = vmul.f32 %v1227, %v1146
        %v1230 = vmul.f32 %v1227, %v1147
        %v1231 = vmul.f32 %v1227, %v1148
        %1236 = vrot.lane.b32.xlu0 %v1228, 125
        %v1237 = vpop.permute.xlu0 %1236
        %1238 = vrot.lane.b32.xlu0 %v1229, 125
        %v1239 = vpop.permute.xlu0 %1238
        %1240 = vrot.lane.b32.xlu0 %v1230, 125
        %v1241 = vpop.permute.xlu0 %1240
        %1242 = vrot.lane.b32.xlu0 %v1231, 125
        %v1243 = vpop.permute.xlu0 %1242
        %v1248 = vadd.f32 %v1140, %v1237
        %v1249 = vadd.f32 %v1141, %v1239
        %v1250 = vadd.f32 %v1142, %v1241
        %v1251 = vadd.f32 %v1143, %v1243
        %s1252 = sld [smem:[#allocation9 + %s613]]
        %v1253 = vstv %s1252
        %v1254 = vmul.f32 %v1253, %v1145
        %v1255 = vmul.f32 %v1253, %v1146
        %v1256 = vmul.f32 %v1253, %v1147
        %v1257 = vmul.f32 %v1253, %v1148
        %1262 = vrot.lane.b32.xlu0 %v1254, 125
        %v1263 = vpop.permute.xlu0 %1262
        %1264 = vrot.lane.b32.xlu0 %v1255, 125
        %v1265 = vpop.permute.xlu0 %1264
        %1266 = vrot.lane.b32.xlu0 %v1256, 125
        %v1267 = vpop.permute.xlu0 %1266
        %1268 = vrot.lane.b32.xlu0 %v1257, 125
        %v1269 = vpop.permute.xlu0 %1268
        %v1274 = vadd.f32 %v1170, %v1263
        %v1275 = vadd.f32 %v1171, %v1265
        %v1276 = vadd.f32 %v1172, %v1267
        %v1277 = vadd.f32 %v1173, %v1269
        %s1278 = sld [smem:[#allocation9 + %s640]]
        %v1279 = vstv %s1278
        %v1280 = vmul.f32 %v1279, %v1145
        %v1281 = vmul.f32 %v1279, %v1146
        %v1282 = vmul.f32 %v1279, %v1147
        %v1283 = vmul.f32 %v1279, %v1148
        %1288 = vrot.lane.b32.xlu0 %v1280, 113
        %v1289 = vpop.permute.xlu0 %1288
        %1290 = vrot.lane.b32.xlu0 %v1281, 113
        %v1291 = vpop.permute.xlu0 %1290
        %1292 = vrot.lane.b32.xlu0 %v1282, 113
        %v1293 = vpop.permute.xlu0 %1292
        %1294 = vrot.lane.b32.xlu0 %v1283, 113
        %v1295 = vpop.permute.xlu0 %1294
        %v1300 = vadd.f32 %v1196, %v1289
        %v1301 = vadd.f32 %v1197, %v1291
        %v1302 = vadd.f32 %v1198, %v1293
        %v1303 = vadd.f32 %v1199, %v1295
        %s1304 = sld [smem:[#allocation9 + %s667]]
        %v1305 = vstv %s1304
        %v1306 = vmul.f32 %v1305, %v1145
        %v1307 = vmul.f32 %v1305, %v1146
        %v1308 = vmul.f32 %v1305, %v1147
        %v1309 = vmul.f32 %v1305, %v1148
        %1314 = vrot.lane.b32.xlu0 %v1306, 113
        %v1315 = vpop.permute.xlu0 %1314
        %1316 = vrot.lane.b32.xlu0 %v1307, 113
        %v1317 = vpop.permute.xlu0 %1316
        %1318 = vrot.lane.b32.xlu0 %v1308, 113
        %v1319 = vpop.permute.xlu0 %1318
        %1320 = vrot.lane.b32.xlu0 %v1309, 113
        %v1321 = vpop.permute.xlu0 %1320
        %v1326 = vadd.f32 %v1222, %v1315
        %v1327 = vadd.f32 %v1223, %v1317
        %v1328 = vadd.f32 %v1224, %v1319
        %v1329 = vadd.f32 %v1225, %v1321
        %s1330 = sld [smem:[#allocation9 + %s694]]
        %v1331 = vld [vmem:[#allocation3 + $0x6] sm:$0xff]
        %v1332 = vld [vmem:[#allocation3 + $0xe] sm:$0xff]
        %v1333 = vld [vmem:[#allocation3 + $0x2e] sm:$0xff]
        %v1334 = vld [vmem:[#allocation3 + $0x36] sm:$0xff]
        %v1335 = vstv %s1330
        %v1336 = vmul.f32 %v1335, %v1331
        %v1337 = vmul.f32 %v1335, %v1332
        %v1338 = vmul.f32 %v1335, %v1333
        %v1339 = vmul.f32 %v1335, %v1334
        %1344 = vrot.lane.b32.xlu0 %v1336, 6
        %v1345 = vpop.permute.xlu0 %1344
        %1346 = vrot.lane.b32.xlu0 %v1337, 6
        %v1347 = vpop.permute.xlu0 %1346
        %1348 = vrot.lane.b32.xlu0 %v1338, 6
        %v1349 = vpop.permute.xlu0 %1348
        %1350 = vrot.lane.b32.xlu0 %v1339, 6
        %v1351 = vpop.permute.xlu0 %1350
        %v1356 = vadd.f32 %v1248, %v1345
        %v1357 = vadd.f32 %v1249, %v1347
        %v1358 = vadd.f32 %v1250, %v1349
        %v1359 = vadd.f32 %v1251, %v1351
        %s1360 = sld [smem:[#allocation9 + %s721]]
        %v1361 = vstv %s1360
        %v1362 = vmul.f32 %v1361, %v1331
        %v1363 = vmul.f32 %v1361, %v1332
        %v1364 = vmul.f32 %v1361, %v1333
        %v1365 = vmul.f32 %v1361, %v1334
        %1370 = vrot.lane.b32.xlu0 %v1362, 6
        %v1371 = vpop.permute.xlu0 %1370
        %1372 = vrot.lane.b32.xlu0 %v1363, 6
        %v1373 = vpop.permute.xlu0 %1372
        %1374 = vrot.lane.b32.xlu0 %v1364, 6
        %v1375 = vpop.permute.xlu0 %1374
        %1376 = vrot.lane.b32.xlu0 %v1365, 6
        %v1377 = vpop.permute.xlu0 %1376
        %v1382 = vadd.f32 %v1274, %v1371
        %v1383 = vadd.f32 %v1275, %v1373
        %v1384 = vadd.f32 %v1276, %v1375
        %v1385 = vadd.f32 %v1277, %v1377
        %s1386 = sld [smem:[#allocation9 + %s752]]
        %v1387 = vstv %s1386
        %v1388 = vmul.f32 %v1387, %v1331
        %v1389 = vmul.f32 %v1387, %v1332
        %v1390 = vmul.f32 %v1387, %v1333
        %v1391 = vmul.f32 %v1387, %v1334
        %1396 = vrot.lane.b32.xlu0 %v1388, 122
        %v1397 = vpop.permute.xlu0 %1396
        %1398 = vrot.lane.b32.xlu0 %v1389, 122
        %v1399 = vpop.permute.xlu0 %1398
        %1400 = vrot.lane.b32.xlu0 %v1390, 122
        %v1401 = vpop.permute.xlu0 %1400
        %1402 = vrot.lane.b32.xlu0 %v1391, 122
        %v1403 = vpop.permute.xlu0 %1402
        %v1408 = vadd.f32 %v1300, %v1397
        %v1409 = vadd.f32 %v1301, %v1399
        %v1410 = vadd.f32 %v1302, %v1401
        %v1411 = vadd.f32 %v1303, %v1403
        %s1412 = sld [smem:[#allocation9 + %s779]]
        %v1413 = vstv %s1412
        %v1414 = vmul.f32 %v1413, %v1331
        %v1415 = vmul.f32 %v1413, %v1332
        %v1416 = vmul.f32 %v1413, %v1333
        %v1417 = vmul.f32 %v1413, %v1334
        %1422 = vrot.lane.b32.xlu0 %v1414, 122
        %v1423 = vpop.permute.xlu0 %1422
        %1424 = vrot.lane.b32.xlu0 %v1415, 122
        %v1425 = vpop.permute.xlu0 %1424
        %1426 = vrot.lane.b32.xlu0 %v1416, 122
        %v1427 = vpop.permute.xlu0 %1426
        %1428 = vrot.lane.b32.xlu0 %v1417, 122
        %v1429 = vpop.permute.xlu0 %1428
        %v1434 = vadd.f32 %v1326, %v1423
        %v1435 = vadd.f32 %v1327, %v1425
        %v1436 = vadd.f32 %v1328, %v1427
        %v1437 = vadd.f32 %v1329, %v1429
        %s1438 = sld [smem:[#allocation9 + %s806]]
        %v1439 = vstv %s1438
        %v1440 = vmul.f32 %v1439, %v1331
        %v1441 = vmul.f32 %v1439, %v1332
        %v1442 = vmul.f32 %v1439, %v1333
        %v1443 = vmul.f32 %v1439, %v1334
        %1448 = vrot.lane.b32.xlu0 %v1440, 122
        %v1449 = vpop.permute.xlu0 %1448
        %1450 = vrot.lane.b32.xlu0 %v1441, 122
        %v1451 = vpop.permute.xlu0 %1450
        %1452 = vrot.lane.b32.xlu0 %v1442, 122
        %v1453 = vpop.permute.xlu0 %1452
        %1454 = vrot.lane.b32.xlu0 %v1443, 122
        %v1455 = vpop.permute.xlu0 %1454
        %v1460 = vadd.f32 %v1356, %v1449
        %v1461 = vadd.f32 %v1357, %v1451
        %v1462 = vadd.f32 %v1358, %v1453
        %v1463 = vadd.f32 %v1359, %v1455
        %s1464 = sld [smem:[#allocation9 + %s833]]
        %v1465 = vstv %s1464
        %v1466 = vmul.f32 %v1465, %v1331
        %v1467 = vmul.f32 %v1465, %v1332
        %v1468 = vmul.f32 %v1465, %v1333
        %v1469 = vmul.f32 %v1465, %v1334
        %1474 = vrot.lane.b32.xlu0 %v1466, 122
        %v1475 = vpop.permute.xlu0 %1474
        %1476 = vrot.lane.b32.xlu0 %v1467, 122
        %v1477 = vpop.permute.xlu0 %1476
        %1478 = vrot.lane.b32.xlu0 %v1468, 122
        %v1479 = vpop.permute.xlu0 %1478
        %1480 = vrot.lane.b32.xlu0 %v1469, 122
        %v1481 = vpop.permute.xlu0 %1480
        %v1486 = vadd.f32 %v1382, %v1475
        %v1487 = vadd.f32 %v1383, %v1477
        %v1488 = vadd.f32 %v1384, %v1479
        %v1489 = vadd.f32 %v1385, %v1481
        %s1490 = sld [smem:[#allocation9 + %s860]]
        %v1491 = vstv %s1490
        %v1492 = vmul.f32 %v1491, %v1331
        %v1493 = vmul.f32 %v1491, %v1332
        %v1494 = vmul.f32 %v1491, %v1333
        %v1495 = vmul.f32 %v1491, %v1334
        %1500 = vrot.lane.b32.xlu0 %v1492, 110
        %v1501 = vpop.permute.xlu0 %1500
        %1502 = vrot.lane.b32.xlu0 %v1493, 110
        %v1503 = vpop.permute.xlu0 %1502
        %1504 = vrot.lane.b32.xlu0 %v1494, 110
        %v1505 = vpop.permute.xlu0 %1504
        %1506 = vrot.lane.b32.xlu0 %v1495, 110
        %v1507 = vpop.permute.xlu0 %1506
        %v1512 = vadd.f32 %v1408, %v1501
        %v1513 = vadd.f32 %v1409, %v1503
        %v1514 = vadd.f32 %v1410, %v1505
        %v1515 = vadd.f32 %v1411, %v1507
        %s1516 = sld [smem:[#allocation9 + %s875]]
        %v1517 = vld [vmem:[#allocation3 + $0x9] sm:$0xff]
        %v1518 = vld [vmem:[#allocation3 + $0x11] sm:$0xff]
        %v1519 = vld [vmem:[#allocation3 + $0x31] sm:$0xff]
        %v1520 = vld [vmem:[#allocation3 + $0x39] sm:$0xff]
        %v1521 = vstv %s1516
        %v1522 = vmul.f32 %v1521, %v1517
        %v1523 = vmul.f32 %v1521, %v1518
        %v1524 = vmul.f32 %v1521, %v1519
        %v1525 = vmul.f32 %v1521, %v1520
        %1530 = vrot.lane.b32.xlu0 %v1522, 3
        %v1531 = vpop.permute.xlu0 %1530
        %1532 = vrot.lane.b32.xlu0 %v1523, 3
        %v1533 = vpop.permute.xlu0 %1532
        %1534 = vrot.lane.b32.xlu0 %v1524, 3
        %v1535 = vpop.permute.xlu0 %1534
        %1536 = vrot.lane.b32.xlu0 %v1525, 3
        %v1537 = vpop.permute.xlu0 %1536
        %v1542 = vadd.f32 %v1434, %v1531
        %v1543 = vadd.f32 %v1435, %v1533
        %v1544 = vadd.f32 %v1436, %v1535
        %v1545 = vadd.f32 %v1437, %v1537
        %s1546 = sld [smem:[#allocation9 + %s886]]
        %v1547 = vstv %s1546
        %v1548 = vmul.f32 %v1547, %v1517
        %v1549 = vmul.f32 %v1547, %v1518
        %v1550 = vmul.f32 %v1547, %v1519
        %v1551 = vmul.f32 %v1547, %v1520
        %1556 = vrot.lane.b32.xlu0 %v1548, 3
        %v1557 = vpop.permute.xlu0 %1556
        %1558 = vrot.lane.b32.xlu0 %v1549, 3
        %v1559 = vpop.permute.xlu0 %1558
        %1560 = vrot.lane.b32.xlu0 %v1550, 3
        %v1561 = vpop.permute.xlu0 %1560
        %1562 = vrot.lane.b32.xlu0 %v1551, 3
        %v1563 = vpop.permute.xlu0 %1562
        %v1568 = vadd.f32 %v1460, %v1557
        %v1569 = vadd.f32 %v1461, %v1559
        %v1570 = vadd.f32 %v1462, %v1561
        %v1571 = vadd.f32 %v1463, %v1563
        %s1572 = sld [smem:[#allocation9 + %s897]]
        %v1573 = vstv %s1572
        %v1574 = vmul.f32 %v1573, %v1517
        %v1575 = vmul.f32 %v1573, %v1518
        %v1576 = vmul.f32 %v1573, %v1519
        %v1577 = vmul.f32 %v1573, %v1520
        %1582 = vrot.lane.b32.xlu0 %v1574, 3
        %v1583 = vpop.permute.xlu0 %1582
        %1584 = vrot.lane.b32.xlu0 %v1575, 3
        %v1585 = vpop.permute.xlu0 %1584
        %1586 = vrot.lane.b32.xlu0 %v1576, 3
        %v1587 = vpop.permute.xlu0 %1586
        %1588 = vrot.lane.b32.xlu0 %v1577, 3
        %v1589 = vpop.permute.xlu0 %1588
        %v1594 = vadd.f32 %v1486, %v1583
        %v1595 = vadd.f32 %v1487, %v1585
        %v1596 = vadd.f32 %v1488, %v1587
        %v1597 = vadd.f32 %v1489, %v1589
        %s1598 = sld [smem:[#allocation9 + %s908]]
        %v1599 = vstv %s1598
        %v1600 = vmul.f32 %v1599, %v1517
        %v1601 = vmul.f32 %v1599, %v1518
        %v1602 = vmul.f32 %v1599, %v1519
        %v1603 = vmul.f32 %v1599, %v1520
        %1608 = vrot.lane.b32.xlu0 %v1600, 119
        %v1609 = vpop.permute.xlu0 %1608
        %1610 = vrot.lane.b32.xlu0 %v1601, 119
        %v1611 = vpop.permute.xlu0 %1610
        %1612 = vrot.lane.b32.xlu0 %v1602, 119
        %v1613 = vpop.permute.xlu0 %1612
        %1614 = vrot.lane.b32.xlu0 %v1603, 119
        %v1615 = vpop.permute.xlu0 %1614
        %v1620 = vadd.f32 %v1512, %v1609
        %v1621 = vadd.f32 %v1513, %v1611
        %v1622 = vadd.f32 %v1514, %v1613
        %v1623 = vadd.f32 %v1515, %v1615
        %s1624 = sadd.s32 %s368, 25
        %s1625 = sld [smem:[#allocation9 + %s1624]]
        %v1626 = vstv %s1625
        %v1627 = vmul.f32 %v1626, %v1517
        %v1628 = vmul.f32 %v1626, %v1518
        %v1629 = vmul.f32 %v1626, %v1519
        %v1630 = vmul.f32 %v1626, %v1520
        %1635 = vrot.lane.b32.xlu0 %v1627, 119
        %v1636 = vpop.permute.xlu0 %1635
        %1637 = vrot.lane.b32.xlu0 %v1628, 119
        %v1638 = vpop.permute.xlu0 %1637
        %1639 = vrot.lane.b32.xlu0 %v1629, 119
        %v1640 = vpop.permute.xlu0 %1639
        %1641 = vrot.lane.b32.xlu0 %v1630, 119
        %v1642 = vpop.permute.xlu0 %1641
        %v1647 = vadd.f32 %v1542, %v1636
        %v1648 = vadd.f32 %v1543, %v1638
        %v1649 = vadd.f32 %v1544, %v1640
        %v1650 = vadd.f32 %v1545, %v1642
        %s1651 = sadd.s32 %s368, 26
        %s1652 = sld [smem:[#allocation9 + %s1651]]
        %v1653 = vstv %s1652
        %v1654 = vmul.f32 %v1653, %v1517
        %v1655 = vmul.f32 %v1653, %v1518
        %v1656 = vmul.f32 %v1653, %v1519
        %v1657 = vmul.f32 %v1653, %v1520
        %1662 = vrot.lane.b32.xlu0 %v1654, 119
        %v1663 = vpop.permute.xlu0 %1662
        %1664 = vrot.lane.b32.xlu0 %v1655, 119
        %v1665 = vpop.permute.xlu0 %1664
        %1666 = vrot.lane.b32.xlu0 %v1656, 119
        %v1667 = vpop.permute.xlu0 %1666
        %1668 = vrot.lane.b32.xlu0 %v1657, 119
        %v1669 = vpop.permute.xlu0 %1668
        %v1674 = vadd.f32 %v1568, %v1663
        %v1675 = vadd.f32 %v1569, %v1665
        %v1676 = vadd.f32 %v1570, %v1667
        %v1677 = vadd.f32 %v1571, %v1669
        %s1678 = sadd.s32 %s368, 27
        %s1679 = sld [smem:[#allocation9 + %s1678]]
        %v1680 = vstv %s1679
        %v1681 = vmul.f32 %v1680, %v1517
        %v1682 = vmul.f32 %v1680, %v1518
        %v1683 = vmul.f32 %v1680, %v1519
        %v1684 = vmul.f32 %v1680, %v1520
        %1689 = vrot.lane.b32.xlu0 %v1681, 119
        %v1690 = vpop.permute.xlu0 %1689
        %1691 = vrot.lane.b32.xlu0 %v1682, 119
        %v1692 = vpop.permute.xlu0 %1691
        %1693 = vrot.lane.b32.xlu0 %v1683, 119
        %v1694 = vpop.permute.xlu0 %1693
        %1695 = vrot.lane.b32.xlu0 %v1684, 119
        %v1696 = vpop.permute.xlu0 %1695
        %v1701 = vadd.f32 %v1594, %v1690
        %v1702 = vadd.f32 %v1595, %v1692
        %v1703 = vadd.f32 %v1596, %v1694
        %v1704 = vadd.f32 %v1597, %v1696
        %s1705 = sadd.s32 %s368, 28
        %s1706 = sld [smem:[#allocation9 + %s1705]]
        %v1707 = vld [vmem:[#allocation3 + $0xc] sm:$0xff]
        %v1708 = vld [vmem:[#allocation3 + $0x14] sm:$0xff]
        %v1709 = vld [vmem:[#allocation3 + $0x34] sm:$0xff]
        %v1710 = vld [vmem:[#allocation3 + $0x3c] sm:$0xff]
        %v1711 = vstv %s1706
        %v1712 = vmul.f32 %v1711, %v1707
        %v1713 = vmul.f32 %v1711, %v1708
        %v1714 = vmul.f32 %v1711, %v1709
        %v1715 = vmul.f32 %v1711, %v1710
        %v1716 = vadd.f32 %v1620, %v1712
        %v1717 = vadd.f32 %v1621, %v1713
        %v1718 = vadd.f32 %v1622, %v1714
        %v1719 = vadd.f32 %v1623, %v1715
        %s1720 = sadd.s32 %s368, 29
        %s1721 = sld [smem:[#allocation9 + %s1720]]
        %v1722 = vstv %s1721
        %v1723 = vmul.f32 %v1722, %v1707
        %v1724 = vmul.f32 %v1722, %v1708
        %v1725 = vmul.f32 %v1722, %v1709
        %v1726 = vmul.f32 %v1722, %v1710
        %v1727 = vadd.f32 %v1647, %v1723
        %v1728 = vadd.f32 %v1648, %v1724
        %v1729 = vadd.f32 %v1649, %v1725
        %v1730 = vadd.f32 %v1650, %v1726
        %s1731 = sadd.s32 %s368, 30
        %s1732 = sld [smem:[#allocation9 + %s1731]]
        %v1733 = vstv %s1732
        %v1734 = vmul.f32 %v1733, %v1707
        %v1735 = vmul.f32 %v1733, %v1708
        %v1736 = vmul.f32 %v1733, %v1709
        %v1737 = vmul.f32 %v1733, %v1710
        %v1738 = vadd.f32 %v1674, %v1734
        %v1739 = vadd.f32 %v1675, %v1735
        %v1740 = vadd.f32 %v1676, %v1736
        %v1741 = vadd.f32 %v1677, %v1737
        %s1742 = sadd.s32 %s368, 31
        %s1743 = sld [smem:[#allocation9 + %s1742]]
        %v1744 = vstv %s1743
        %v1745 = vmul.f32 %v1744, %v1707
        %v1746 = vmul.f32 %v1744, %v1708
        %v1747 = vmul.f32 %v1744, %v1709
        %v1748 = vmul.f32 %v1744, %v1710
        %v1749 = vadd.f32 %v1701, %v1745
        %v1750 = vadd.f32 %v1702, %v1746
        %v1751 = vadd.f32 %v1703, %v1747
        %v1752 = vadd.f32 %v1704, %v1748
        %s1753 = sadd.s32 %s368, 32
        %s1754 = sld [smem:[#allocation9 + %s1753]]
        %v1755 = vstv %s1754
        %v1756 = vmul.f32 %v1755, %v1707
        %v1757 = vmul.f32 %v1755, %v1708
        %v1758 = vmul.f32 %v1755, %v1709
        %v1759 = vmul.f32 %v1755, %v1710
        %1764 = vrot.lane.b32.xlu0 %v1756, 116
        %v1765 = vpop.permute.xlu0 %1764
        %1766 = vrot.lane.b32.xlu0 %v1757, 116
        %v1767 = vpop.permute.xlu0 %1766
        %1768 = vrot.lane.b32.xlu0 %v1758, 116
        %v1769 = vpop.permute.xlu0 %1768
        %1770 = vrot.lane.b32.xlu0 %v1759, 116
        %v1771 = vpop.permute.xlu0 %1770
        %v1776 = vadd.f32 %v1716, %v1765
        %v1777 = vadd.f32 %v1717, %v1767
        %v1778 = vadd.f32 %v1718, %v1769
        %v1779 = vadd.f32 %v1719, %v1771
        %s1780 = sadd.s32 %s368, 33
        %s1781 = sld [smem:[#allocation9 + %s1780]]
        %v1782 = vstv %s1781
        %v1783 = vmul.f32 %v1782, %v1707
        %v1784 = vmul.f32 %v1782, %v1708
        %v1785 = vmul.f32 %v1782, %v1709
        %v1786 = vmul.f32 %v1782, %v1710
        %1791 = vrot.lane.b32.xlu0 %v1783, 116
        %v1792 = vpop.permute.xlu0 %1791
        %1793 = vrot.lane.b32.xlu0 %v1784, 116
        %v1794 = vpop.permute.xlu0 %1793
        %1795 = vrot.lane.b32.xlu0 %v1785, 116
        %v1796 = vpop.permute.xlu0 %1795
        %1797 = vrot.lane.b32.xlu0 %v1786, 116
        %v1798 = vpop.permute.xlu0 %1797
        %v1803 = vadd.f32 %v1727, %v1792
        %v1804 = vadd.f32 %v1728, %v1794
        %v1805 = vadd.f32 %v1729, %v1796
        %v1806 = vadd.f32 %v1730, %v1798
        %s1807 = sadd.s32 %s368, 34
        %s1808 = sld [smem:[#allocation9 + %s1807]]
        %v1809 = vstv %s1808
        %v1810 = vmul.f32 %v1809, %v1707
        %v1811 = vmul.f32 %v1809, %v1708
        %v1812 = vmul.f32 %v1809, %v1709
        %v1813 = vmul.f32 %v1809, %v1710
        %1818 = vrot.lane.b32.xlu0 %v1810, 116
        %v1819 = vpop.permute.xlu0 %1818
        %1820 = vrot.lane.b32.xlu0 %v1811, 116
        %v1821 = vpop.permute.xlu0 %1820
        %1822 = vrot.lane.b32.xlu0 %v1812, 116
        %v1823 = vpop.permute.xlu0 %1822
        %1824 = vrot.lane.b32.xlu0 %v1813, 116
        %v1825 = vpop.permute.xlu0 %1824
        %v1830 = vadd.f32 %v1738, %v1819
        %v1831 = vadd.f32 %v1739, %v1821
        %v1832 = vadd.f32 %v1740, %v1823
        %v1833 = vadd.f32 %v1741, %v1825
        %s1834 = sadd.s32 %s368, 35
        %s1835 = sld [smem:[#allocation9 + %s1834]]
        %v1836 = vld [vmem:[#allocation3 + $0xf] sm:$0xff]
        %v1837 = vld [vmem:[#allocation3 + $0x17] sm:$0xff]
        %v1838 = vld [vmem:[#allocation3 + $0x37] sm:$0xff]
        %v1839 = vld [vmem:[#allocation3 + $0x3f] sm:$0xff]
        %v1840 = vstv %s1835
        %v1841 = vmul.f32 %v1840, %v1836
        %v1842 = vmul.f32 %v1840, %v1837
        %v1843 = vmul.f32 %v1840, %v1838
        %v1844 = vmul.f32 %v1840, %v1839
        %1849 = vrot.lane.b32.xlu0 %v1841, 9
        %v1850 = vpop.permute.xlu0 %1849
        %1851 = vrot.lane.b32.xlu0 %v1842, 9
        %v1852 = vpop.permute.xlu0 %1851
        %1853 = vrot.lane.b32.xlu0 %v1843, 9
        %v1854 = vpop.permute.xlu0 %1853
        %1855 = vrot.lane.b32.xlu0 %v1844, 9
        %v1856 = vpop.permute.xlu0 %1855
        %v1861 = vadd.f32 %v1749, %v1850
        %v1862 = vadd.f32 %v1750, %v1852
        %v1863 = vadd.f32 %v1751, %v1854
        %v1864 = vadd.f32 %v1752, %v1856
        %s1865 = sadd.s32 %s368, 36
        %s1866 = sld [smem:[#allocation9 + %s1865]]
        %v1867 = vstv %s1866
        %v1868 = vmul.f32 %v1867, %v1836
        %v1869 = vmul.f32 %v1867, %v1837
        %v1870 = vmul.f32 %v1867, %v1838
        %v1871 = vmul.f32 %v1867, %v1839
        %1876 = vrot.lane.b32.xlu0 %v1868, 125
        %v1877 = vpop.permute.xlu0 %1876
        %1878 = vrot.lane.b32.xlu0 %v1869, 125
        %v1879 = vpop.permute.xlu0 %1878
        %1880 = vrot.lane.b32.xlu0 %v1870, 125
        %v1881 = vpop.permute.xlu0 %1880
        %1882 = vrot.lane.b32.xlu0 %v1871, 125
        %v1883 = vpop.permute.xlu0 %1882
        %v1888 = vadd.f32 %v1776, %v1877
        %v1889 = vadd.f32 %v1777, %v1879
        %v1890 = vadd.f32 %v1778, %v1881
        %v1891 = vadd.f32 %v1779, %v1883
        %s1892 = sadd.s32 %s368, 37
        %s1893 = sld [smem:[#allocation9 + %s1892]]
        %v1894 = vstv %s1893
        %v1895 = vmul.f32 %v1894, %v1836
        %v1896 = vmul.f32 %v1894, %v1837
        %v1897 = vmul.f32 %v1894, %v1838
        %v1898 = vmul.f32 %v1894, %v1839
        %1903 = vrot.lane.b32.xlu0 %v1895, 125
        %v1904 = vpop.permute.xlu0 %1903
        %1905 = vrot.lane.b32.xlu0 %v1896, 125
        %v1906 = vpop.permute.xlu0 %1905
        %1907 = vrot.lane.b32.xlu0 %v1897, 125
        %v1908 = vpop.permute.xlu0 %1907
        %1909 = vrot.lane.b32.xlu0 %v1898, 125
        %v1910 = vpop.permute.xlu0 %1909
        %v1915 = vadd.f32 %v1803, %v1904
        %v1916 = vadd.f32 %v1804, %v1906
        %v1917 = vadd.f32 %v1805, %v1908
        %v1918 = vadd.f32 %v1806, %v1910
        %s1919 = sadd.s32 %s368, 38
        %s1920 = sld [smem:[#allocation9 + %s1919]]
        %v1921 = vstv %s1920
        %v1922 = vmul.f32 %v1921, %v1836
        %v1923 = vmul.f32 %v1921, %v1837
        %v1924 = vmul.f32 %v1921, %v1838
        %v1925 = vmul.f32 %v1921, %v1839
        %1930 = vrot.lane.b32.xlu0 %v1922, 125
        %v1931 = vpop.permute.xlu0 %1930
        %1932 = vrot.lane.b32.xlu0 %v1923, 125
        %v1933 = vpop.permute.xlu0 %1932
        %1934 = vrot.lane.b32.xlu0 %v1924, 125
        %v1935 = vpop.permute.xlu0 %1934
        %1936 = vrot.lane.b32.xlu0 %v1925, 125
        %v1937 = vpop.permute.xlu0 %1936
        %v1942 = vadd.f32 %v1830, %v1931
        %v1943 = vadd.f32 %v1831, %v1933
        %v1944 = vadd.f32 %v1832, %v1935
        %v1945 = vadd.f32 %v1833, %v1937
        %s1946 = sadd.s32 %s368, 39
        %s1947 = sld [smem:[#allocation9 + %s1946]]
        %v1948 = vstv %s1947
        %v1949 = vmul.f32 %v1948, %v1836
        %v1950 = vmul.f32 %v1948, %v1837
        %v1951 = vmul.f32 %v1948, %v1838
        %v1952 = vmul.f32 %v1948, %v1839
        %1957 = vrot.lane.b32.xlu0 %v1949, 125
        %v1958 = vpop.permute.xlu0 %1957
        %1959 = vrot.lane.b32.xlu0 %v1950, 125
        %v1960 = vpop.permute.xlu0 %1959
        %1961 = vrot.lane.b32.xlu0 %v1951, 125
        %v1962 = vpop.permute.xlu0 %1961
        %1963 = vrot.lane.b32.xlu0 %v1952, 125
        %v1964 = vpop.permute.xlu0 %1963
        %v1969 = vadd.f32 %v1861, %v1958
        %v1970 = vadd.f32 %v1862, %v1960
        %v1971 = vadd.f32 %v1863, %v1962
        %v1972 = vadd.f32 %v1864, %v1964
        %s1973 = sadd.s32 %s368, 40
        %s1974 = sld [smem:[#allocation9 + %s1973]]
        %v1975 = vstv %s1974
        %v1976 = vmul.f32 %v1975, %v1836
        %v1977 = vmul.f32 %v1975, %v1837
        %v1978 = vmul.f32 %v1975, %v1838
        %v1979 = vmul.f32 %v1975, %v1839
        %1984 = vrot.lane.b32.xlu0 %v1976, 113
        %v1985 = vpop.permute.xlu0 %1984
        %1986 = vrot.lane.b32.xlu0 %v1977, 113
        %v1987 = vpop.permute.xlu0 %1986
        %1988 = vrot.lane.b32.xlu0 %v1978, 113
        %v1989 = vpop.permute.xlu0 %1988
        %1990 = vrot.lane.b32.xlu0 %v1979, 113
        %v1991 = vpop.permute.xlu0 %1990
        %v1996 = vadd.f32 %v1888, %v1985
        %v1997 = vadd.f32 %v1889, %v1987
        %v1998 = vadd.f32 %v1890, %v1989
        %v1999 = vadd.f32 %v1891, %v1991
        %s2000 = sadd.s32 %s368, 41
        %s2001 = sld [smem:[#allocation9 + %s2000]]
        %v2002 = vstv %s2001
        %v2003 = vmul.f32 %v2002, %v1836
        %v2004 = vmul.f32 %v2002, %v1837
        %v2005 = vmul.f32 %v2002, %v1838
        %v2006 = vmul.f32 %v2002, %v1839
        %2011 = vrot.lane.b32.xlu0 %v2003, 113
        %v2012 = vpop.permute.xlu0 %2011
        %2013 = vrot.lane.b32.xlu0 %v2004, 113
        %v2014 = vpop.permute.xlu0 %2013
        %2015 = vrot.lane.b32.xlu0 %v2005, 113
        %v2016 = vpop.permute.xlu0 %2015
        %2017 = vrot.lane.b32.xlu0 %v2006, 113
        %v2018 = vpop.permute.xlu0 %2017
        %v2023 = vadd.f32 %v1915, %v2012
        %v2024 = vadd.f32 %v1916, %v2014
        %v2025 = vadd.f32 %v1917, %v2016
        %v2026 = vadd.f32 %v1918, %v2018
        %s2027 = sadd.s32 %s368, 42
        %s2028 = sld [smem:[#allocation9 + %s2027]]
        %v2029 = vld [vmem:[#allocation3 + $0x12] sm:$0xff]
        %v2030 = vld [vmem:[#allocation3 + $0x1a] sm:$0xff]
        %v2031 = vld [vmem:[#allocation3 + $0x3a] sm:$0xff]
        %v2032 = vld [vmem:[#allocation3 + $0x42] sm:$0xff]
        %v2033 = vstv %s2028
        %v2034 = vmul.f32 %v2033, %v2029
        %v2035 = vmul.f32 %v2033, %v2030
        %v2036 = vmul.f32 %v2033, %v2031
        %v2037 = vmul.f32 %v2033, %v2032
        %2042 = vrot.lane.b32.xlu0 %v2034, 6
        %v2043 = vpop.permute.xlu0 %2042
        %2044 = vrot.lane.b32.xlu0 %v2035, 6
        %v2045 = vpop.permute.xlu0 %2044
        %2046 = vrot.lane.b32.xlu0 %v2036, 6
        %v2047 = vpop.permute.xlu0 %2046
        %2048 = vrot.lane.b32.xlu0 %v2037, 6
        %v2049 = vpop.permute.xlu0 %2048
        %v2054 = vadd.f32 %v1942, %v2043
        %v2055 = vadd.f32 %v1943, %v2045
        %v2056 = vadd.f32 %v1944, %v2047
        %v2057 = vadd.f32 %v1945, %v2049
        %s2058 = sadd.s32 %s368, 43
        %s2059 = sld [smem:[#allocation9 + %s2058]]
        %v2060 = vstv %s2059
        %v2061 = vmul.f32 %v2060, %v2029
        %v2062 = vmul.f32 %v2060, %v2030
        %v2063 = vmul.f32 %v2060, %v2031
        %v2064 = vmul.f32 %v2060, %v2032
        %2069 = vrot.lane.b32.xlu0 %v2061, 6
        %v2070 = vpop.permute.xlu0 %2069
        %2071 = vrot.lane.b32.xlu0 %v2062, 6
        %v2072 = vpop.permute.xlu0 %2071
        %2073 = vrot.lane.b32.xlu0 %v2063, 6
        %v2074 = vpop.permute.xlu0 %2073
        %2075 = vrot.lane.b32.xlu0 %v2064, 6
        %v2076 = vpop.permute.xlu0 %2075
        %v2081 = vadd.f32 %v1969, %v2070
        %v2082 = vadd.f32 %v1970, %v2072
        %v2083 = vadd.f32 %v1971, %v2074
        %v2084 = vadd.f32 %v1972, %v2076
        %s2085 = sadd.s32 %s368, 44
        %s2086 = sld [smem:[#allocation9 + %s2085]]
        %v2087 = vstv %s2086
        %v2088 = vmul.f32 %v2087, %v2029
        %v2089 = vmul.f32 %v2087, %v2030
        %v2090 = vmul.f32 %v2087, %v2031
        %v2091 = vmul.f32 %v2087, %v2032
        %2096 = vrot.lane.b32.xlu0 %v2088, 122
        %v2097 = vpop.permute.xlu0 %2096
        %2098 = vrot.lane.b32.xlu0 %v2089, 122
        %v2099 = vpop.permute.xlu0 %2098
        %2100 = vrot.lane.b32.xlu0 %v2090, 122
        %v2101 = vpop.permute.xlu0 %2100
        %2102 = vrot.lane.b32.xlu0 %v2091, 122
        %v2103 = vpop.permute.xlu0 %2102
        %v2108 = vadd.f32 %v1996, %v2097
        %v2109 = vadd.f32 %v1997, %v2099
        %v2110 = vadd.f32 %v1998, %v2101
        %v2111 = vadd.f32 %v1999, %v2103
        %s2112 = sadd.s32 %s368, 45
        %s2113 = sld [smem:[#allocation9 + %s2112]]
        %v2114 = vstv %s2113
        %v2115 = vmul.f32 %v2114, %v2029
        %v2116 = vmul.f32 %v2114, %v2030
        %v2117 = vmul.f32 %v2114, %v2031
        %v2118 = vmul.f32 %v2114, %v2032
        %2123 = vrot.lane.b32.xlu0 %v2115, 122
        %v2124 = vpop.permute.xlu0 %2123
        %2125 = vrot.lane.b32.xlu0 %v2116, 122
        %v2126 = vpop.permute.xlu0 %2125
        %2127 = vrot.lane.b32.xlu0 %v2117, 122
        %v2128 = vpop.permute.xlu0 %2127
        %2129 = vrot.lane.b32.xlu0 %v2118, 122
        %v2130 = vpop.permute.xlu0 %2129
        %v2135 = vadd.f32 %v2023, %v2124
        %v2136 = vadd.f32 %v2024, %v2126
        %v2137 = vadd.f32 %v2025, %v2128
        %v2138 = vadd.f32 %v2026, %v2130
        %s2139 = sadd.s32 %s368, 46
        %s2140 = sld [smem:[#allocation9 + %s2139]]
        %v2141 = vstv %s2140
        %v2142 = vmul.f32 %v2141, %v2029
        %v2143 = vmul.f32 %v2141, %v2030
        %v2144 = vmul.f32 %v2141, %v2031
        %v2145 = vmul.f32 %v2141, %v2032
        %2150 = vrot.lane.b32.xlu0 %v2142, 122
        %v2151 = vpop.permute.xlu0 %2150
        %2152 = vrot.lane.b32.xlu0 %v2143, 122
        %v2153 = vpop.permute.xlu0 %2152
        %2154 = vrot.lane.b32.xlu0 %v2144, 122
        %v2155 = vpop.permute.xlu0 %2154
        %2156 = vrot.lane.b32.xlu0 %v2145, 122
        %v2157 = vpop.permute.xlu0 %2156
        %v2162 = vadd.f32 %v2054, %v2151
        %v2163 = vadd.f32 %v2055, %v2153
        %v2164 = vadd.f32 %v2056, %v2155
        %v2165 = vadd.f32 %v2057, %v2157
        %s2166 = sadd.s32 %s368, 47
        %s2167 = sld [smem:[#allocation9 + %s2166]]
        %v2168 = vstv %s2167
        %v2169 = vmul.f32 %v2168, %v2029
        %v2170 = vmul.f32 %v2168, %v2030
        %v2171 = vmul.f32 %v2168, %v2031
        %v2172 = vmul.f32 %v2168, %v2032
        %2177 = vrot.lane.b32.xlu0 %v2169, 122
        %v2178 = vpop.permute.xlu0 %2177
        %2179 = vrot.lane.b32.xlu0 %v2170, 122
        %v2180 = vpop.permute.xlu0 %2179
        %2181 = vrot.lane.b32.xlu0 %v2171, 122
        %v2182 = vpop.permute.xlu0 %2181
        %2183 = vrot.lane.b32.xlu0 %v2172, 122
        %v2184 = vpop.permute.xlu0 %2183
        %v2189 = vadd.f32 %v2081, %v2178
        %v2190 = vadd.f32 %v2082, %v2180
        %v2191 = vadd.f32 %v2083, %v2182
        %v2192 = vadd.f32 %v2084, %v2184
        %s2193 = sadd.s32 %s368, 48
        %s2194 = sld [smem:[#allocation9 + %s2193]]
        %v2195 = vstv %s2194
        %v2196 = vmul.f32 %v2195, %v2029
        %v2197 = vmul.f32 %v2195, %v2030
        %v2198 = vmul.f32 %v2195, %v2031
        %v2199 = vmul.f32 %v2195, %v2032
        %2204 = vrot.lane.b32.xlu0 %v2196, 110
        %v2205 = vpop.permute.xlu0 %2204
        %2206 = vrot.lane.b32.xlu0 %v2197, 110
        %v2207 = vpop.permute.xlu0 %2206
        %2208 = vrot.lane.b32.xlu0 %v2198, 110
        %v2209 = vpop.permute.xlu0 %2208
        %2210 = vrot.lane.b32.xlu0 %v2199, 110
        %v2211 = vpop.permute.xlu0 %2210
        %v2216 = vadd.f32 %v2108, %v2205
        %v2217 = vadd.f32 %v2109, %v2207
        %v2218 = vadd.f32 %v2110, %v2209
        %v2219 = vadd.f32 %v2111, %v2211
        %2224 = vrot.lane.b32.xlu0 %v2135, 125
        %v2225 = vpop.permute.xlu0 %2224
        %2226 = vrot.lane.b32.xlu0 %v2136, 125
        %v2227 = vpop.permute.xlu0 %2226
        %2228 = vrot.lane.b32.xlu0 %v2137, 125
        %v2229 = vpop.permute.xlu0 %2228
        %2230 = vrot.lane.b32.xlu0 %v2138, 125
        %v2231 = vpop.permute.xlu0 %2230
        %v2236 = vadd.f32 %v2216, %v2225
        %v2237 = vadd.f32 %v2217, %v2227
        %v2238 = vadd.f32 %v2218, %v2229
        %v2239 = vadd.f32 %v2219, %v2231
        %2244 = vrot.lane.b32.xlu0 %v2162, 122
        %v2245 = vpop.permute.xlu0 %2244
        %2246 = vrot.lane.b32.xlu0 %v2163, 122
        %v2247 = vpop.permute.xlu0 %2246
        %2248 = vrot.lane.b32.xlu0 %v2164, 122
        %v2249 = vpop.permute.xlu0 %2248
        %2250 = vrot.lane.b32.xlu0 %v2165, 122
        %v2251 = vpop.permute.xlu0 %2250
        %v2256 = vadd.f32 %v2236, %v2245
        %v2257 = vadd.f32 %v2237, %v2247
        %v2258 = vadd.f32 %v2238, %v2249
        %v2259 = vadd.f32 %v2239, %v2251
        %2264 = vrot.lane.b32.xlu0 %v2189, 119
        %v2265 = vpop.permute.xlu0 %2264
        %2266 = vrot.lane.b32.xlu0 %v2190, 119
        %v2267 = vpop.permute.xlu0 %2266
        %2268 = vrot.lane.b32.xlu0 %v2191, 119
        %v2269 = vpop.permute.xlu0 %2268
        %2270 = vrot.lane.b32.xlu0 %v2192, 119
        %v2271 = vpop.permute.xlu0 %2270
        %v2276 = vadd.f32 %v2256, %v2265
        %v2277 = vadd.f32 %v2257, %v2267
        %v2278 = vadd.f32 %v2258, %v2269
        %v2279 = vadd.f32 %v2259, %v2271
        %s2280 = sld [smem:[#allocation10 + %s19]]
        %v2281 = vstv %s2280
        %v2282 = vadd.f32 %v2276, %v2281
        %v2283 = vadd.f32 %v2277, %v2281
        %v2284 = vadd.f32 %v2278, %v2281
        %v2285 = vadd.f32 %v2279, %v2281
        %vm2286 = vcmask 130048
        %2287 = vst.msk [vmem:[%s322] sm:$0xff] %vm2286, %v2282
        %2288 = vst.msk [vmem:[%s322 + $0x8] sm:$0xff] %vm2286, %v2283
        %2289 = vst.msk [vmem:[%s322 + $0x10] sm:$0xff] %vm2286, %v2284
        %2290 = vst.msk [vmem:[%s322 + $0x18] sm:$0xff] %vm2286, %v2285
        %s2291 = sand.u32 %s137, 1
        %s2292 = sand.u32 %s137, 1
        %s2293 = smul.addr %s2292, 32
        %s2294 = scalar_lea.vmem [#allocation12], %s2293
        // Predicated region
        $region95: #{temporal_attention.2} parent=73 // pred_check
          %p2295 = pneg %p147
        $region96: #{temporal_attention.2} parent=73 // pred_check_branch
          %2297 = sbr.rel (%p2295) target = $region98
        $region97: #{temporal_attention.2} parent=73 // pred_region
          %s2298 = smul.addr %s19, 2
          %s2299 = smul.addr %s2298, 8
          %s2300 = scalar_lea.vmem %s5, %s2299
          // Predicated region
          $region99: #{temporal_attention.2} parent=97 // pred_check
            _
          $region100: #{temporal_attention.2} parent=97 // pred_check_branch
            %2302 = sbr.rel (0) target = $region102
          $region101: #{temporal_attention.2} parent=97 // pred_region
            // Predicated region
            $region103: #{temporal_attention.2} parent=101 // pred_check
              _
            $region104: #{temporal_attention.2} parent=101 // pred_check_branch
              %2304 = sbr.rel (0) target = $region106
            $region105: #{temporal_attention.2} parent=101 // pred_region
              // Predicated region
              $region118: #{temporal_attention.2} parent=105 // pred_check
                _
              $region119: #{temporal_attention.2} parent=105 // pred_check_branch
                %2326 = sbr.rel (0) target = $region121
              $region120: #{temporal_attention.2} parent=105 // pred_region
                loop: start=0, step=1, limit=1
                $region122: #{temporal_attention.2} parent=120 // loop_pre_header
                  _
                $region123: #{temporal_attention.2} parent=120 // loop_header
                  %s2328 = sphi 0, %s2332
                  %p2329 = scmp.ge.s32.totalorder %s2328, 1
                  %s2333 = sphi %s2294, %s2294
                  %s2334 = sphi %s2300, %s2300
                $region124: #{temporal_attention.2} parent=120 // loop_header_branch
                  %2331 = sbr.rel (%p2329) target = $region128
                $region125: #{temporal_attention.2} parent=120 // loop_body
                  %v2335 = vld [vmem:[%s2333] sm:$0xff]
                  %2336 = vst [vmem:[%s2334] sm:$0xff] %v2335
                  %v2337 = vld [vmem:[%s2333 + $0x8] sm:$0xff]
                  %2338 = vst [vmem:[%s2334 + $0x8] sm:$0xff] %v2337
                  %v2339 = vld [vmem:[%s2333 + $0x10] sm:$0xff]
                  %2340 = vst [vmem:[%s2334 + $0x200] sm:$0xff] %v2339
                  %v2341 = vld [vmem:[%s2333 + $0x18] sm:$0xff]
                  %2342 = vst [vmem:[%s2334 + $0x208] sm:$0xff] %v2341
                $region126: #{temporal_attention.2} parent=120 // loop_footer
                  %s2332 = sadd.s32 1, %s2328
                $region127: #{temporal_attention.2} parent=120 // loop_footer_branch
                  %2327 = sbr.rel target = $region123
                $region128: #{temporal_attention.2} parent=120 // loop_exit
                  _
              $region121: #{temporal_attention.2} parent=105 // pred_fallthru
                _
              // Predicated region
              $region129: #{temporal_attention.2} parent=105 // pred_check
                _
              $region130: #{temporal_attention.2} parent=105 // pred_check_branch
                %2344 = sbr.rel target = $region132
              $region131: #{temporal_attention.2} parent=105 // pred_region
                _
              $region132: #{temporal_attention.2} parent=105 // pred_fallthru
                _
            $region106: #{temporal_attention.2} parent=101 // pred_fallthru
              _
            // Predicated region
            $region107: #{temporal_attention.2} parent=101 // pred_check
              _
            $region108: #{temporal_attention.2} parent=101 // pred_check_branch
              %2306 = sbr.rel target = $region110
            $region109: #{temporal_attention.2} parent=101 // pred_region
              %s2308 = ssub.s32 256, 1
              loop: start=0, step=1, limit=1
              $region111: #{temporal_attention.2} parent=109 // loop_pre_header
                _
              $region112: #{temporal_attention.2} parent=109 // loop_header
                %s2310 = sphi 0, %s2314
                %p2311 = scmp.ge.s32.totalorder %s2310, 1
                %s2315 = sphi %s2294, %s2294
                %s2316 = sphi %s2300, %s2300
              $region113: #{temporal_attention.2} parent=109 // loop_header_branch
                %2313 = sbr.rel (%p2311) target = $region117
              $region114: #{temporal_attention.2} parent=109 // loop_body
                %v2317 = vld [vmem:[%s2315] sm:%s2308]
                %2318 = vst [vmem:[%s2316] sm:%s2308] %v2317
                %v2319 = vld [vmem:[%s2315 + $0x8] sm:%s2308]
                %2320 = vst [vmem:[%s2316 + $0x8] sm:%s2308] %v2319
                %v2321 = vld [vmem:[%s2315 + $0x10] sm:%s2308]
                %2322 = vst [vmem:[%s2316 + $0x200] sm:%s2308] %v2321
                %v2323 = vld [vmem:[%s2315 + $0x18] sm:%s2308]
                %2324 = vst [vmem:[%s2316 + $0x208] sm:%s2308] %v2323
              $region115: #{temporal_attention.2} parent=109 // loop_footer
                %s2314 = sadd.s32 1, %s2310
              $region116: #{temporal_attention.2} parent=109 // loop_footer_branch
                %2309 = sbr.rel target = $region112
              $region117: #{temporal_attention.2} parent=109 // loop_exit
                _
            $region110: #{temporal_attention.2} parent=101 // pred_fallthru
              _
          $region102: #{temporal_attention.2} parent=97 // pred_fallthru
            _
          %2345 = vnop
        $region98: #{temporal_attention.2} parent=73 // pred_fallthru
          _
      $region74: #{temporal_attention.2} parent=5 // pred_fallthru
        _
      %p2346 = scmp.le.s32.totalorder 2, %s14
      // Predicated region
      $region133: #{temporal_attention.2} parent=5 // pred_check
        %p2347 = pneg %p2346
      $region134: #{temporal_attention.2} parent=5 // pred_check_branch
        %2349 = sbr.rel (%p2347) target = $region136
      $region135: #{temporal_attention.2} parent=5 // pred_region
        %s2350 = ssub.s32 %s14, 2
        // Predicated region
        $region137: #{temporal_attention.2} parent=135 // pred_check
          %p2351 = pneg %p153
        $region138: #{temporal_attention.2} parent=135 // pred_check_branch
          %2353 = sbr.rel (%p2351) target = $region140
        $region139: #{temporal_attention.2} parent=135 // pred_region
          %s2354 = sand.u32 %s138, 1
          %s2355 = sand.u32 %s138, 1
          %s2356 = smul.addr %s2355, 32
          %s2357 = scalar_lea.vmem [#allocation12], %s2356
        $region140: #{temporal_attention.2} parent=135 // pred_fallthru
          _
      $region136: #{temporal_attention.2} parent=5 // pred_fallthru
        _
    $region6: #{temporal_attention.2} parent=1 // loop_footer
      %s18 = sadd.s32 1, %s14
    $region7: #{temporal_attention.2} parent=1 // loop_footer_branch
      %13 = sbr.rel target = $region3
    $region8: #{temporal_attention.2} parent=1 // loop_exit
      _
    %2358 = vsyncpa [#allocation6], 1
    %s2359 = scalar_lea.sflag [#allocation6], 1
    %2360 = vsyncpa %s2359, 1
    %2361 = vsyncpa [#allocation8], 1
    %2362 = vsyncpa [#allocation11], 1

</llo_original>
